<compile_context>
chip_gen: v6e
topology: v6e:2x2x1
jax: 0.10.0
libtpu: 0.0.40
codegen_flags: <defaults>
</compile_context>

<pallas_src>
import jax
import jax.numpy as jnp
from jax.experimental import pallas as pl
from jax.experimental.pallas import tpu as pltpu

C_IN = 128   # channels of feats['C3']
C_MID = 256  # conv1 output channels
C_OUT = 128  # conv2 / conv3 output channels (descriptor dim)


# ---------------------------------------------------------------------------
# Fused kernel: conv1(1x1)+ReLU -> conv2(3x3,pad=1)+ReLU -> conv3(1x1)
#               -> channelwise L2 normalize, for one (batch, row-tile) step.
# ---------------------------------------------------------------------------
def _desc_head_kernel(xm_ref, xt_ref, xb_ref, w1_ref, b1_ref, w2_ref, b2_ref,
                      w3_ref, b3_ref, o_ref, h1_ref, acc_ref):
    # xm_ref: (1, TR, W, C_IN) f32   -- the tile's own input rows
    # xt_ref: (1, 1,  W, C_IN) f32   -- row above (clamped; zeroed at image top)
    # xb_ref: (1, 1,  W, C_IN) f32   -- row below (clamped; zeroed at image bottom)
    # w1_ref: (C_IN, C_MID) bf16 ; b1_ref: (1, C_MID) f32
    # w2_ref: (3, C_MID, 3*C_OUT) bf16 (kx taps concatenated) ; b2_ref: (1, C_OUT)
    # w3_ref: (C_OUT, C_OUT) bf16 ; b3_ref: (1, C_OUT) f32
    # o_ref : (1, TR, W, C_OUT) f32
    # h1_ref: VMEM ((TR+2)*W, C_MID) f32 scratch  (conv1 output incl. row halo)
    # acc_ref: VMEM (TR*W, C_OUT) f32 scratch     (3x3 conv accumulator)
    TR, W = o_ref.shape[1], o_ref.shape[2]
    R = TR * W
    t = pl.program_id(1)
    nt = pl.num_programs(1)

    def conv1(x2d):  # (rows, C_IN) f32 -> (rows, C_MID) f32, ReLU'd
        h = jnp.dot(x2d.astype(jnp.bfloat16), w1_ref[...],
                    preferred_element_type=jnp.float32)
        return jnp.maximum(h + b1_ref[...], 0.0)

    # ---- conv1 (1x1) + ReLU on the main rows and the two halo rows ----
    h1_ref[pl.ds(W, R), :] = conv1(xm_ref[...].reshape(R, C_IN))
    h1_ref[pl.ds(0, W), :] = conv1(xt_ref[...].reshape(W, C_IN))
    h1_ref[pl.ds(W + R, W), :] = conv1(xb_ref[...].reshape(W, C_IN))

    # 3x3 conv uses zero padding on conv1's OUTPUT at the image border,
    # so overwrite the halo rows with zeros at the top/bottom tiles.
    @pl.when(t == 0)
    def _():
        h1_ref[pl.ds(0, W), :] = jnp.zeros((W, C_MID), h1_ref.dtype)

    @pl.when(t == nt - 1)
    def _():
        h1_ref[pl.ds(W + R, W), :] = jnp.zeros((W, C_MID), h1_ref.dtype)

    # ---- conv2 (3x3): one full-width matmul per ky against all three kx
    #      taps at once, then shift-accumulate the (R, C_OUT) results along
    #      the flattened row axis (sublane roll) with column masks that
    #      implement the left/right zero padding. ----
    col = jax.lax.broadcasted_iota(jnp.int32, (R, C_OUT), 0) % W
    for ky in range(3):
        rows = h1_ref[pl.ds(ky * W, R), :].astype(jnp.bfloat16)   # (R, C_MID)
        m = jnp.dot(rows, w2_ref[ky], preferred_element_type=jnp.float32)
        left = m[:, :C_OUT]                 # kx = 0  (dx = -1)
        center = m[:, C_OUT:2 * C_OUT]      # kx = 1  (dx =  0)
        right = m[:, 2 * C_OUT:]            # kx = 2  (dx = +1)
        contrib = (
            center
            + jnp.where(col >= 1, pltpu.roll(left, shift=1, axis=0), 0.0)
            + jnp.where(col <= W - 2, pltpu.roll(right, shift=R - 1, axis=0), 0.0)
        )
        if ky == 0:
            acc_ref[...] = contrib
        else:
            acc_ref[...] += contrib

    # ---- ReLU, conv3 (1x1), L2 normalize ----
    h2 = jnp.maximum(acc_ref[...] + b2_ref[...], 0.0)             # (R, C_OUT)
    z = jnp.dot(h2.astype(jnp.bfloat16), w3_ref[...],
                preferred_element_type=jnp.float32) + b3_ref[...]
    # F.normalize(p=2): z / max(||z||, 1e-12) == z * rsqrt(max(sumsq, 1e-24))
    ssq = jnp.sum(z * z, axis=-1, keepdims=True)
    z = z * jax.lax.rsqrt(jnp.maximum(ssq, 1e-24))
    o_ref[...] = z.reshape(1, TR, W, C_OUT).astype(o_ref.dtype)


# ---------------------------------------------------------------------------
# Wrappers
# ---------------------------------------------------------------------------
def _pick_row_tile(H, W, max_rows=2048):
    """Largest row tile that divides H and keeps TR*W (tile pixels) bounded."""
    for tr in (64, 32, 16, 8, 4, 2, 1):
        if H % tr == 0 and tr * W <= max_rows:
            return tr
    # TODO(synk): add column tiling for extremely wide feature maps.
    return 1


def desc_extractor_regress_nhwc(x_nhwc, params):
    """x_nhwc: [B, H, W, 128] -> L2-normalized descriptors [B, H, W, 128]."""
    B, H, W, C = x_nhwc.shape
    assert C == C_IN
    TR = _pick_row_tile(H, W)
    NT = H // TR

    x = x_nhwc.astype(jnp.float32)
    # bf16 MXU operands; biases / accumulation stay f32.
    w1 = params["w1"].astype(jnp.bfloat16)                          # (C_IN, C_MID)
    b1 = params["b1"].reshape(1, C_MID).astype(jnp.float32)
    # HWIO (3,3,C_MID,C_OUT) -> (ky, C_MID, 3*C_OUT): kx taps concatenated on out axis.
    w2cat = jnp.transpose(params["w2"], (0, 2, 1, 3)) \
               .reshape(3, C_MID, 3 * C_OUT).astype(jnp.bfloat16)
    b2 = params["b2"].reshape(1, C_OUT).astype(jnp.float32)
    w3 = params["w3"].astype(jnp.bfloat16)                          # (C_OUT, C_OUT)
    b3 = params["b3"].reshape(1, C_OUT).astype(jnp.float32)

    out = pl.pallas_call(
        _desc_head_kernel,
        out_shape=jax.ShapeDtypeStruct((B, H, W, C_OUT), jnp.float32),
        grid=(B, NT),
        in_specs=[
            # main rows of this tile
            pl.BlockSpec((1, TR, W, C_IN), lambda b, t: (b, t, 0, 0)),
            # one-row top halo (clamped at the image border; kernel zeroes it there)
            pl.BlockSpec((1, 1, W, C_IN),
                         lambda b, t: (b, jnp.maximum(t * TR - 1, 0), 0, 0)),
            # one-row bottom halo (clamped; kernel zeroes it at the bottom tile)
            pl.BlockSpec((1, 1, W, C_IN),
                         lambda b, t: (b, jnp.minimum((t + 1) * TR, H - 1), 0, 0)),
            # weights / biases: resident (constant index_map)
            pl.BlockSpec((C_IN, C_MID), lambda b, t: (0, 0)),
            pl.BlockSpec((1, C_MID), lambda b, t: (0, 0)),
            pl.BlockSpec((3, C_MID, 3 * C_OUT), lambda b, t: (0, 0, 0)),
            pl.BlockSpec((1, C_OUT), lambda b, t: (0, 0)),
            pl.BlockSpec((C_OUT, C_OUT), lambda b, t: (0, 0)),
            pl.BlockSpec((1, C_OUT), lambda b, t: (0, 0)),
        ],
        out_specs=pl.BlockSpec((1, TR, W, C_OUT), lambda b, t: (b, t, 0, 0)),
        scratch_shapes=[
            pltpu.VMEM(((TR + 2) * W, C_MID), jnp.float32),   # conv1 output + halo
            pltpu.VMEM((TR * W, C_OUT), jnp.float32),         # 3x3 accumulator
        ],
        compiler_params=pltpu.CompilerParams(
            dimension_semantics=("parallel", "parallel"),
            vmem_limit_bytes=48 * 1024 * 1024),
    )(x, x, x, w1, b1, w2cat, b2, w3, b3)
    return out


def desc_extractor_forward(feats_c3_nchw, params):
    """Module-faithful entry point: [B, 128, H, W] -> [B, 128, H, W] (NCHW)."""
    x = jnp.transpose(feats_c3_nchw, (0, 2, 3, 1))
    out = desc_extractor_regress_nhwc(x, params)
    # If the downstream consumer takes NHWC, call desc_extractor_regress_nhwc
    # directly and skip both transposes.
    return jnp.transpose(out, (0, 3, 1, 2))


# ---------------------------------------------------------------------------
# Pure-JAX reference (f32 XLA convs) for correctness checking.
# ---------------------------------------------------------------------------
def ref_forward(feats_c3_nchw, params):
    x = jnp.transpose(feats_c3_nchw, (0, 2, 3, 1)).astype(jnp.float32)
    dn = ("NHWC", "HWIO", "NHWC")
    h = jax.lax.conv_general_dilated(
        x, params["w1"].reshape(1, 1, C_IN, C_MID), (1, 1), "VALID",
        dimension_numbers=dn) + params["b1"]
    h = jnp.maximum(h, 0.0)
    h = jax.lax.conv_general_dilated(
        h, params["w2"], (1, 1), "SAME", dimension_numbers=dn) + params["b2"]
    h = jnp.maximum(h, 0.0)
    h = jax.lax.conv_general_dilated(
        h, params["w3"].reshape(1, 1, C_OUT, C_OUT), (1, 1), "VALID",
        dimension_numbers=dn) + params["b3"]
    norm = jnp.sqrt(jnp.sum(h * h, axis=-1, keepdims=True))
    h = h / jnp.maximum(norm, 1e-12)
    return jnp.transpose(h, (0, 3, 1, 2))


def init_params(key):
    ks = jax.random.split(key, 6)
    def w(k, shape, fan_in):
        return jax.random.normal(k, shape, jnp.float32) / jnp.sqrt(fan_in)
    return {
        "w1": w(ks[0], (C_IN, C_MID), C_IN),              # 1x1 conv, (in, out)
        "b1": 0.01 * jax.random.normal(ks[1], (C_MID,), jnp.float32),
        "w2": w(ks[2], (3, 3, C_MID, C_OUT), 9 * C_MID),  # HWIO
        "b2": 0.01 * jax.random.normal(ks[3], (C_OUT,), jnp.float32),
        "w3": w(ks[4], (C_OUT, C_OUT), C_OUT),            # 1x1 conv, (in, out)
        "b3": 0.01 * jax.random.normal(ks[5], (C_OUT,), jnp.float32),
    }


if __name__ == "__main__":
    key = jax.random.PRNGKey(0)
    k_feat, k_par = jax.random.split(key)

    # Backbone 'C3' feature map (128 channels), small spatial size.
    B, H, W = 2, 8, 8
    feats_c3 = jax.random.normal(k_feat, (B, C_IN, H, W), jnp.float32)
    params = init_params(k_par)

    descs = jax.block_until_ready(desc_extractor_forward(feats_c3, params))
    ref = jax.block_until_ready(ref_forward(feats_c3, params))

    # bf16 MXU operands (f32 accumulation) vs. pure-f32 reference.
    err = float(jnp.max(jnp.abs(descs - ref)))
    if err > 3e-2:
        raise AssertionError(f"Pallas output mismatch: max abs err {err}")

    # sanity: unit L2 norm along channel dim
    norms = jnp.sqrt(jnp.sum(descs * descs, axis=1))
    if not bool(jnp.allclose(norms, 1.0, atol=1e-3)):
        raise AssertionError("descriptors are not L2-normalized")

    print("KERNEL_OK")
</pallas_src>

<mosaic_0001>
module attributes {stable_mosaic.version = 11 : i64} {
  func.func @_desc_head_kernel(%arg0: i32, %arg1: i32, %arg2: memref<1x8x8x128xf32, #tpu.memory_space<vmem>>, %arg3: memref<1x1x8x128xf32, #tpu.memory_space<vmem>>, %arg4: memref<1x1x8x128xf32, #tpu.memory_space<vmem>>, %arg5: memref<128x256xbf16, #tpu.memory_space<vmem>>, %arg6: memref<1x256xf32, #tpu.memory_space<vmem>>, %arg7: memref<3x256x384xbf16, #tpu.memory_space<vmem>>, %arg8: memref<1x128xf32, #tpu.memory_space<vmem>>, %arg9: memref<128x128xbf16, #tpu.memory_space<vmem>>, %arg10: memref<1x128xf32, #tpu.memory_space<vmem>>, %arg11: memref<1x8x8x128xf32, #tpu.memory_space<vmem>>, %arg12: memref<80x256xf32, #tpu.memory_space<vmem>>, %arg13: memref<64x128xf32, #tpu.memory_space<vmem>>) attributes {dimension_semantics = [#tpu.dimension_semantics<parallel>, #tpu.dimension_semantics<parallel>], iteration_bounds = array<i64: 2, 1>, scalar_prefetch = 0 : i64, scratch_operands = 2 : i64, tpu.core_type = #tpu.core_type<tc>, window_params = [{transform_indices = @transform_0, window_bounds = array<i64: 1, 8, 8, 128>}, {transform_indices = @transform_1, window_bounds = array<i64: 1, 1, 8, 128>}, {transform_indices = @transform_2, window_bounds = array<i64: 1, 1, 8, 128>}, {pipeline_mode = #tpu.pipeline_mode<synchronous>, transform_indices = @transform_3, window_bounds = array<i64: 128, 256>}, {pipeline_mode = #tpu.pipeline_mode<synchronous>, transform_indices = @transform_4, window_bounds = array<i64: 1, 256>}, {pipeline_mode = #tpu.pipeline_mode<synchronous>, transform_indices = @transform_5, window_bounds = array<i64: 3, 256, 384>}, {pipeline_mode = #tpu.pipeline_mode<synchronous>, transform_indices = @transform_6, window_bounds = array<i64: 1, 128>}, {pipeline_mode = #tpu.pipeline_mode<synchronous>, transform_indices = @transform_7, window_bounds = array<i64: 128, 128>}, {pipeline_mode = #tpu.pipeline_mode<synchronous>, transform_indices = @transform_8, window_bounds = array<i64: 1, 128>}, {transform_indices = @transform_9, window_bounds = array<i64: 1, 8, 8, 128>}]} {
    %c0 = arith.constant 0 : index
    %c0_0 = arith.constant 0 : index
    %c0_1 = arith.constant 0 : index
    %c0_2 = arith.constant 0 : index
    %0 = vector.load %arg2[%c0, %c0_0, %c0_1, %c0_2] : memref<1x8x8x128xf32, #tpu.memory_space<vmem>>, vector<1x8x8x128xf32>
    %1 = vector.shape_cast %0 : vector<1x8x8x128xf32> to vector<64x128xf32>
    %2 = arith.truncf %1 : vector<64x128xf32> to vector<64x128xbf16>
    %c0_3 = arith.constant 0 : index
    %c0_4 = arith.constant 0 : index
    %3 = vector.load %arg5[%c0_3, %c0_4] : memref<128x256xbf16, #tpu.memory_space<vmem>>, vector<128x256xbf16>
    %cst = arith.constant dense<0.000000e+00> : vector<64x256xf32>
    %4 = tpu.matmul %2, %3, %cst {dimension_numbers = #tpu.dot_dimension_numbers<[1], [0], [0], [1], [0, 0, 1, 1], [], []>} : vector<64x128xbf16>, vector<128x256xbf16>, vector<64x256xf32> -> vector<64x256xf32>
    %c0_5 = arith.constant 0 : index
    %c0_6 = arith.constant 0 : index
    %5 = vector.load %arg6[%c0_5, %c0_6] : memref<1x256xf32, #tpu.memory_space<vmem>>, vector<1x256xf32>
    %6 = vector.broadcast %5 : vector<1x256xf32> to vector<64x256xf32>
    %7 = arith.addf %4, %6 : vector<64x256xf32>
    %cst_7 = arith.constant 0.000000e+00 : f32
    %8 = vector.broadcast %cst_7 : f32 to vector<64x256xf32>
    %9 = arith.maximumf %7, %8 : vector<64x256xf32>
    %c8 = arith.constant 8 : index
    %c0_8 = arith.constant 0 : index
    %10 = vector.load %arg12[%c8, %c0_8] : memref<80x256xf32, #tpu.memory_space<vmem>>, vector<64x256xf32>
    tpu.vector_store %arg12[%c8, %c0_8], %9 {strides = array<i32>} : memref<80x256xf32, #tpu.memory_space<vmem>>, vector<64x256xf32>,
    %c0_9 = arith.constant 0 : index
    %c0_10 = arith.constant 0 : index
    %c0_11 = arith.constant 0 : index
    %c0_12 = arith.constant 0 : index
    %11 = vector.load %arg3[%c0_9, %c0_10, %c0_11, %c0_12] : memref<1x1x8x128xf32, #tpu.memory_space<vmem>>, vector<1x1x8x128xf32>
    %12 = vector.shape_cast %11 : vector<1x1x8x128xf32> to vector<8x128xf32>
    %13 = arith.truncf %12 : vector<8x128xf32> to vector<8x128xbf16>
    %c0_13 = arith.constant 0 : index
    %c0_14 = arith.constant 0 : index
    %14 = vector.load %arg5[%c0_13, %c0_14] : memref<128x256xbf16, #tpu.memory_space<vmem>>, vector<128x256xbf16>
    %cst_15 = arith.constant dense<0.000000e+00> : vector<8x256xf32>
    %15 = tpu.matmul %13, %14, %cst_15 {dimension_numbers = #tpu.dot_dimension_numbers<[1], [0], [0], [1], [0, 0, 1, 1], [], []>} : vector<8x128xbf16>, vector<128x256xbf16>, vector<8x256xf32> -> vector<8x256xf32>
    %c0_16 = arith.constant 0 : index
    %c0_17 = arith.constant 0 : index
    %16 = vector.load %arg6[%c0_16, %c0_17] : memref<1x256xf32, #tpu.memory_space<vmem>>, vector<1x256xf32>
    %17 = vector.broadcast %16 : vector<1x256xf32> to vector<8x256xf32>
    %18 = arith.addf %15, %17 : vector<8x256xf32>
    %cst_18 = arith.constant 0.000000e+00 : f32
    %19 = vector.broadcast %cst_18 : f32 to vector<8x256xf32>
    %20 = arith.maximumf %18, %19 : vector<8x256xf32>
    %c0_19 = arith.constant 0 : index
    %c0_20 = arith.constant 0 : index
    %21 = vector.load %arg12[%c0_19, %c0_20] : memref<80x256xf32, #tpu.memory_space<vmem>>, vector<8x256xf32>
    tpu.vector_store %arg12[%c0_19, %c0_20], %20 {strides = array<i32>} : memref<80x256xf32, #tpu.memory_space<vmem>>, vector<8x256xf32>,
    %c0_21 = arith.constant 0 : index
    %c0_22 = arith.constant 0 : index
    %c0_23 = arith.constant 0 : index
    %c0_24 = arith.constant 0 : index
    %22 = vector.load %arg4[%c0_21, %c0_22, %c0_23, %c0_24] : memref<1x1x8x128xf32, #tpu.memory_space<vmem>>, vector<1x1x8x128xf32>
    %23 = vector.shape_cast %22 : vector<1x1x8x128xf32> to vector<8x128xf32>
    %24 = arith.truncf %23 : vector<8x128xf32> to vector<8x128xbf16>
    %c0_25 = arith.constant 0 : index
    %c0_26 = arith.constant 0 : index
    %25 = vector.load %arg5[%c0_25, %c0_26] : memref<128x256xbf16, #tpu.memory_space<vmem>>, vector<128x256xbf16>
    %cst_27 = arith.constant dense<0.000000e+00> : vector<8x256xf32>
    %26 = tpu.matmul %24, %25, %cst_27 {dimension_numbers = #tpu.dot_dimension_numbers<[1], [0], [0], [1], [0, 0, 1, 1], [], []>} : vector<8x128xbf16>, vector<128x256xbf16>, vector<8x256xf32> -> vector<8x256xf32>
    %c0_28 = arith.constant 0 : index
    %c0_29 = arith.constant 0 : index
    %27 = vector.load %arg6[%c0_28, %c0_29] : memref<1x256xf32, #tpu.memory_space<vmem>>, vector<1x256xf32>
    %28 = vector.broadcast %27 : vector<1x256xf32> to vector<8x256xf32>
    %29 = arith.addf %26, %28 : vector<8x256xf32>
    %cst_30 = arith.constant 0.000000e+00 : f32
    %30 = vector.broadcast %cst_30 : f32 to vector<8x256xf32>
    %31 = arith.maximumf %29, %30 : vector<8x256xf32>
    %c72 = arith.constant 72 : index
    %c0_31 = arith.constant 0 : index
    %32 = vector.load %arg12[%c72, %c0_31] : memref<80x256xf32, #tpu.memory_space<vmem>>, vector<8x256xf32>
    tpu.vector_store %arg12[%c72, %c0_31], %31 {strides = array<i32>} : memref<80x256xf32, #tpu.memory_space<vmem>>, vector<8x256xf32>,
    %c0_i32 = arith.constant 0 : i32
    %33 = arith.cmpi eq, %arg1, %c0_i32 : i32
    %34 = arith.extui %33 : i1 to i32
    %c0_i32_32 = arith.constant 0 : i32
    %35 = arith.cmpi ne, %34, %c0_i32_32 : i32
    scf.if %35 {
      %cst_96 = arith.constant 0.000000e+00 : f32
      %145 = vector.broadcast %cst_96 : f32 to vector<8x256xf32>
      %c0_97 = arith.constant 0 : index
      %c0_98 = arith.constant 0 : index
      %146 = vector.load %arg12[%c0_97, %c0_98] : memref<80x256xf32, #tpu.memory_space<vmem>>, vector<8x256xf32>
      tpu.vector_store %arg12[%c0_97, %c0_98], %145 {strides = array<i32>} : memref<80x256xf32, #tpu.memory_space<vmem>>, vector<8x256xf32>,
    } else {
    }
    %c0_i32_33 = arith.constant 0 : i32
    %36 = arith.cmpi eq, %arg1, %c0_i32_33 : i32
    %37 = arith.extui %36 : i1 to i32
    %c0_i32_34 = arith.constant 0 : i32
    %38 = arith.cmpi ne, %37, %c0_i32_34 : i32
    scf.if %38 {
      %cst_96 = arith.constant 0.000000e+00 : f32
      %145 = vector.broadcast %cst_96 : f32 to vector<8x256xf32>
      %c72_97 = arith.constant 72 : index
      %c0_98 = arith.constant 0 : index
      %146 = vector.load %arg12[%c72_97, %c0_98] : memref<80x256xf32, #tpu.memory_space<vmem>>, vector<8x256xf32>
      tpu.vector_store %arg12[%c72_97, %c0_98], %145 {strides = array<i32>} : memref<80x256xf32, #tpu.memory_space<vmem>>, vector<8x256xf32>,
    } else {
    }
    %39 = tpu.iota {dimensions = array<i32: 0>} : vector<64x128xi32>
    %c8_i32 = arith.constant 8 : i32
    %c0_i32_35 = arith.constant 0 : i32
    %40 = arith.cmpi eq, %c8_i32, %c0_i32_35 : i32
    %c1_i32 = arith.constant 1 : i32
    %41 = arith.select %40, %c1_i32, %c8_i32 : i32
    %42 = vector.broadcast %41 : i32 to vector<64x128xi32>
    %43 = arith.remsi %39, %42 : vector<64x128xi32>
    %c0_i32_36 = arith.constant 0 : i32
    %44 = vector.broadcast %c0_i32_36 : i32 to vector<64x128xi32>
    %45 = arith.cmpi ne, %43, %44 : vector<64x128xi32>
    %c0_i32_37 = arith.constant 0 : i32
    %46 = vector.broadcast %c0_i32_37 : i32 to vector<64x128xi32>
    %47 = arith.cmpi slt, %43, %46 : vector<64x128xi32>
    %c0_i32_38 = arith.constant 0 : i32
    %48 = arith.cmpi slt, %41, %c0_i32_38 : i32
    %49 = vector.broadcast %48 : i1 to vector<64x128xi1>
    %50 = vector.broadcast %49 : vector<64x128xi1> to vector<64x128xi1>
    %51 = arith.xori %47, %50 : vector<64x128xi1>
    %52 = arith.andi %51, %45 : vector<64x128xi1>
    %53 = vector.broadcast %41 : i32 to vector<64x128xi32>
    %54 = arith.addi %43, %53 : vector<64x128xi32>
    %55 = arith.select %52, %54, %43 : vector<64x128xi1>, vector<64x128xi32>
    %c0_39 = arith.constant 0 : index
    %c0_40 = arith.constant 0 : index
    %56 = vector.load %arg12[%c0_39, %c0_40] : memref<80x256xf32, #tpu.memory_space<vmem>>, vector<64x256xf32>
    %57 = arith.truncf %56 : vector<64x256xf32> to vector<64x256xbf16>
    %c0_41 = arith.constant 0 : index
    %c0_42 = arith.constant 0 : index
    %c0_43 = arith.constant 0 : index
    %58 = vector.load %arg7[%c0_41, %c0_42, %c0_43] : memref<3x256x384xbf16, #tpu.memory_space<vmem>>, vector<1x256x384xbf16>
    %59 = vector.shape_cast %58 : vector<1x256x384xbf16> to vector<256x384xbf16>
    %cst_44 = arith.constant dense<0.000000e+00> : vector<64x384xf32>
    %60 = tpu.matmul %57, %59, %cst_44 {dimension_numbers = #tpu.dot_dimension_numbers<[1], [0], [0], [1], [0, 0, 1, 1], [], []>} : vector<64x256xbf16>, vector<256x384xbf16>, vector<64x384xf32> -> vector<64x384xf32>
    %61 = vector.extract_strided_slice %60 {offsets = [0, 0], sizes = [64, 128], strides = [1, 1]} : vector<64x384xf32> to vector<64x128xf32>
    %62 = vector.extract_strided_slice %60 {offsets = [0, 128], sizes = [64, 128], strides = [1, 1]} : vector<64x384xf32> to vector<64x128xf32>
    %63 = vector.extract_strided_slice %60 {offsets = [0, 256], sizes = [64, 128], strides = [1, 1]} : vector<64x384xf32> to vector<64x128xf32>
    %c1_i32_45 = arith.constant 1 : i32
    %64 = vector.broadcast %c1_i32_45 : i32 to vector<64x128xi32>
    %65 = arith.cmpi sge, %55, %64 : vector<64x128xi32>
    %c1_i32_46 = arith.constant 1 : i32
    %66 = tpu.dynamic_rotate %61 by %c1_i32_46 dim 0 : vector<64x128xf32>, i32 -> vector<64x128xf32>
    %cst_47 = arith.constant 0.000000e+00 : f32
    %67 = vector.broadcast %cst_47 : f32 to vector<64x128xf32>
    %68 = arith.select %65, %66, %67 : vector<64x128xi1>, vector<64x128xf32>
    %69 = arith.addf %62, %68 : vector<64x128xf32>
    %c6_i32 = arith.constant 6 : i32
    %70 = vector.broadcast %c6_i32 : i32 to vector<64x128xi32>
    %71 = arith.cmpi sle, %55, %70 : vector<64x128xi32>
    %c63_i32 = arith.constant 63 : i32
    %72 = tpu.dynamic_rotate %63 by %c63_i32 dim 0 : vector<64x128xf32>, i32 -> vector<64x128xf32>
    %cst_48 = arith.constant 0.000000e+00 : f32
    %73 = vector.broadcast %cst_48 : f32 to vector<64x128xf32>
    %74 = arith.select %71, %72, %73 : vector<64x128xi1>, vector<64x128xf32>
    %75 = arith.addf %69, %74 : vector<64x128xf32>
    %c0_49 = arith.constant 0 : index
    %c0_50 = arith.constant 0 : index
    %76 = vector.load %arg13[%c0_49, %c0_50] : memref<64x128xf32, #tpu.memory_space<vmem>>, vector<64x128xf32>
    tpu.vector_store %arg13[%c0_49, %c0_50], %75 {strides = array<i32>} : memref<64x128xf32, #tpu.memory_space<vmem>>, vector<64x128xf32>,
    %c8_51 = arith.constant 8 : index
    %c0_52 = arith.constant 0 : index
    %77 = vector.load %arg12[%c8_51, %c0_52] : memref<80x256xf32, #tpu.memory_space<vmem>>, vector<64x256xf32>
    %78 = arith.truncf %77 : vector<64x256xf32> to vector<64x256xbf16>
    %c1 = arith.constant 1 : index
    %c0_53 = arith.constant 0 : index
    %c0_54 = arith.constant 0 : index
    %79 = vector.load %arg7[%c1, %c0_53, %c0_54] : memref<3x256x384xbf16, #tpu.memory_space<vmem>>, vector<1x256x384xbf16>
    %80 = vector.shape_cast %79 : vector<1x256x384xbf16> to vector<256x384xbf16>
    %cst_55 = arith.constant dense<0.000000e+00> : vector<64x384xf32>
    %81 = tpu.matmul %78, %80, %cst_55 {dimension_numbers = #tpu.dot_dimension_numbers<[1], [0], [0], [1], [0, 0, 1, 1], [], []>} : vector<64x256xbf16>, vector<256x384xbf16>, vector<64x384xf32> -> vector<64x384xf32>
    %82 = vector.extract_strided_slice %81 {offsets = [0, 0], sizes = [64, 128], strides = [1, 1]} : vector<64x384xf32> to vector<64x128xf32>
    %83 = vector.extract_strided_slice %81 {offsets = [0, 128], sizes = [64, 128], strides = [1, 1]} : vector<64x384xf32> to vector<64x128xf32>
    %84 = vector.extract_strided_slice %81 {offsets = [0, 256], sizes = [64, 128], strides = [1, 1]} : vector<64x384xf32> to vector<64x128xf32>
    %c1_i32_56 = arith.constant 1 : i32
    %85 = vector.broadcast %c1_i32_56 : i32 to vector<64x128xi32>
    %86 = arith.cmpi sge, %55, %85 : vector<64x128xi32>
    %c1_i32_57 = arith.constant 1 : i32
    %87 = tpu.dynamic_rotate %82 by %c1_i32_57 dim 0 : vector<64x128xf32>, i32 -> vector<64x128xf32>
    %cst_58 = arith.constant 0.000000e+00 : f32
    %88 = vector.broadcast %cst_58 : f32 to vector<64x128xf32>
    %89 = arith.select %86, %87, %88 : vector<64x128xi1>, vector<64x128xf32>
    %90 = arith.addf %83, %89 : vector<64x128xf32>
    %c6_i32_59 = arith.constant 6 : i32
    %91 = vector.broadcast %c6_i32_59 : i32 to vector<64x128xi32>
    %92 = arith.cmpi sle, %55, %91 : vector<64x128xi32>
    %c63_i32_60 = arith.constant 63 : i32
    %93 = tpu.dynamic_rotate %84 by %c63_i32_60 dim 0 : vector<64x128xf32>, i32 -> vector<64x128xf32>
    %cst_61 = arith.constant 0.000000e+00 : f32
    %94 = vector.broadcast %cst_61 : f32 to vector<64x128xf32>
    %95 = arith.select %92, %93, %94 : vector<64x128xi1>, vector<64x128xf32>
    %96 = arith.addf %90, %95 : vector<64x128xf32>
    %c0_62 = arith.constant 0 : index
    %c0_63 = arith.constant 0 : index
    %97 = vector.load %arg13[%c0_62, %c0_63] : memref<64x128xf32, #tpu.memory_space<vmem>>, vector<64x128xf32>
    %98 = arith.addf %97, %96 : vector<64x128xf32>
    %c0_64 = arith.constant 0 : index
    %c0_65 = arith.constant 0 : index
    %99 = vector.load %arg13[%c0_64, %c0_65] : memref<64x128xf32, #tpu.memory_space<vmem>>, vector<64x128xf32>
    tpu.vector_store %arg13[%c0_64, %c0_65], %98 {strides = array<i32>} : memref<64x128xf32, #tpu.memory_space<vmem>>, vector<64x128xf32>,
    %c16 = arith.constant 16 : index
    %c0_66 = arith.constant 0 : index
    %100 = vector.load %arg12[%c16, %c0_66] : memref<80x256xf32, #tpu.memory_space<vmem>>, vector<64x256xf32>
    %101 = arith.truncf %100 : vector<64x256xf32> to vector<64x256xbf16>
    %c2 = arith.constant 2 : index
    %c0_67 = arith.constant 0 : index
    %c0_68 = arith.constant 0 : index
    %102 = vector.load %arg7[%c2, %c0_67, %c0_68] : memref<3x256x384xbf16, #tpu.memory_space<vmem>>, vector<1x256x384xbf16>
    %103 = vector.shape_cast %102 : vector<1x256x384xbf16> to vector<256x384xbf16>
    %cst_69 = arith.constant dense<0.000000e+00> : vector<64x384xf32>
    %104 = tpu.matmul %101, %103, %cst_69 {dimension_numbers = #tpu.dot_dimension_numbers<[1], [0], [0], [1], [0, 0, 1, 1], [], []>} : vector<64x256xbf16>, vector<256x384xbf16>, vector<64x384xf32> -> vector<64x384xf32>
    %105 = vector.extract_strided_slice %104 {offsets = [0, 0], sizes = [64, 128], strides = [1, 1]} : vector<64x384xf32> to vector<64x128xf32>
    %106 = vector.extract_strided_slice %104 {offsets = [0, 128], sizes = [64, 128], strides = [1, 1]} : vector<64x384xf32> to vector<64x128xf32>
    %107 = vector.extract_strided_slice %104 {offsets = [0, 256], sizes = [64, 128], strides = [1, 1]} : vector<64x384xf32> to vector<64x128xf32>
    %c1_i32_70 = arith.constant 1 : i32
    %108 = vector.broadcast %c1_i32_70 : i32 to vector<64x128xi32>
    %109 = arith.cmpi sge, %55, %108 : vector<64x128xi32>
    %c1_i32_71 = arith.constant 1 : i32
    %110 = tpu.dynamic_rotate %105 by %c1_i32_71 dim 0 : vector<64x128xf32>, i32 -> vector<64x128xf32>
    %cst_72 = arith.constant 0.000000e+00 : f32
    %111 = vector.broadcast %cst_72 : f32 to vector<64x128xf32>
    %112 = arith.select %109, %110, %111 : vector<64x128xi1>, vector<64x128xf32>
    %113 = arith.addf %106, %112 : vector<64x128xf32>
    %c6_i32_73 = arith.constant 6 : i32
    %114 = vector.broadcast %c6_i32_73 : i32 to vector<64x128xi32>
    %115 = arith.cmpi sle, %55, %114 : vector<64x128xi32>
    %c63_i32_74 = arith.constant 63 : i32
    %116 = tpu.dynamic_rotate %107 by %c63_i32_74 dim 0 : vector<64x128xf32>, i32 -> vector<64x128xf32>
    %cst_75 = arith.constant 0.000000e+00 : f32
    %117 = vector.broadcast %cst_75 : f32 to vector<64x128xf32>
    %118 = arith.select %115, %116, %117 : vector<64x128xi1>, vector<64x128xf32>
    %119 = arith.addf %113, %118 : vector<64x128xf32>
    %c0_76 = arith.constant 0 : index
    %c0_77 = arith.constant 0 : index
    %120 = vector.load %arg13[%c0_76, %c0_77] : memref<64x128xf32, #tpu.memory_space<vmem>>, vector<64x128xf32>
    %121 = arith.addf %120, %119 : vector<64x128xf32>
    %c0_78 = arith.constant 0 : index
    %c0_79 = arith.constant 0 : index
    %122 = vector.load %arg13[%c0_78, %c0_79] : memref<64x128xf32, #tpu.memory_space<vmem>>, vector<64x128xf32>
    tpu.vector_store %arg13[%c0_78, %c0_79], %121 {strides = array<i32>} : memref<64x128xf32, #tpu.memory_space<vmem>>, vector<64x128xf32>,
    %c0_80 = arith.constant 0 : index
    %c0_81 = arith.constant 0 : index
    %123 = vector.load %arg13[%c0_80, %c0_81] : memref<64x128xf32, #tpu.memory_space<vmem>>, vector<64x128xf32>
    %c0_82 = arith.constant 0 : index
    %c0_83 = arith.constant 0 : index
    %124 = vector.load %arg8[%c0_82, %c0_83] : memref<1x128xf32, #tpu.memory_space<vmem>>, vector<1x128xf32>
    %125 = vector.broadcast %124 : vector<1x128xf32> to vector<64x128xf32>
    %126 = arith.addf %123, %125 : vector<64x128xf32>
    %cst_84 = arith.constant 0.000000e+00 : f32
    %127 = vector.broadcast %cst_84 : f32 to vector<64x128xf32>
    %128 = arith.maximumf %126, %127 : vector<64x128xf32>
    %129 = arith.truncf %128 : vector<64x128xf32> to vector<64x128xbf16>
    %c0_85 = arith.constant 0 : index
    %c0_86 = arith.constant 0 : index
    %130 = vector.load %arg9[%c0_85, %c0_86] : memref<128x128xbf16, #tpu.memory_space<vmem>>, vector<128x128xbf16>
    %cst_87 = arith.constant dense<0.000000e+00> : vector<64x128xf32>
    %131 = tpu.matmul %129, %130, %cst_87 {dimension_numbers = #tpu.dot_dimension_numbers<[1], [0], [0], [1], [0, 0, 1, 1], [], []>} : vector<64x128xbf16>, vector<128x128xbf16>, vector<64x128xf32> -> vector<64x128xf32>
    %c0_88 = arith.constant 0 : index
    %c0_89 = arith.constant 0 : index
    %132 = vector.load %arg10[%c0_88, %c0_89] : memref<1x128xf32, #tpu.memory_space<vmem>>, vector<1x128xf32>
    %133 = vector.broadcast %132 : vector<1x128xf32> to vector<64x128xf32>
    %134 = arith.addf %131, %133 : vector<64x128xf32>
    %135 = arith.mulf %134, %134 : vector<64x128xf32>
    %cst_90 = arith.constant dense<0.000000e+00> : vector<64xf32>
    %136 = vector.multi_reduction <add>, %135, %cst_90 [1] : vector<64x128xf32> to vector<64xf32>
    %137 = vector.shape_cast %136 : vector<64xf32> to vector<64x1xf32>
    %cst_91 = arith.constant 1.000000e-24 : f32
    %138 = vector.broadcast %cst_91 : f32 to vector<64x1xf32>
    %139 = arith.maximumf %137, %138 : vector<64x1xf32>
    %140 = math.rsqrt %139 : vector<64x1xf32>
    %141 = vector.broadcast %140 : vector<64x1xf32> to vector<64x128xf32>
    %142 = arith.mulf %134, %141 : vector<64x128xf32>
    %143 = vector.shape_cast %142 : vector<64x128xf32> to vector<1x8x8x128xf32>
    %c0_92 = arith.constant 0 : index
    %c0_93 = arith.constant 0 : index
    %c0_94 = arith.constant 0 : index
    %c0_95 = arith.constant 0 : index
    %144 = vector.load %arg11[%c0_92, %c0_93, %c0_94, %c0_95] : memref<1x8x8x128xf32, #tpu.memory_space<vmem>>, vector<1x8x8x128xf32>
    tpu.vector_store %arg11[%c0_92, %c0_93, %c0_94, %c0_95], %143 {strides = array<i32>} : memref<1x8x8x128xf32, #tpu.memory_space<vmem>>, vector<1x8x8x128xf32>,
    return
  }
  func.func @transform_0(%arg0: i32, %arg1: i32) -> (i32, i32, i32, i32) {
    %c0_i32 = arith.constant 0 : i32
    %c0_i32_0 = arith.constant 0 : i32
    %c0_i32_1 = arith.constant 0 : i32
    return %arg0, %arg1, %c0_i32, %c0_i32_0 : i32, i32, i32, i32
  }
  func.func @transform_1(%arg0: i32, %arg1: i32) -> (i32, i32, i32, i32) {
    %c8_i32 = arith.constant 8 : i32
    %0 = arith.muli %arg1, %c8_i32 : i32
    %c1_i32 = arith.constant 1 : i32
    %1 = arith.subi %0, %c1_i32 : i32
    %c0_i32 = arith.constant 0 : i32
    %2 = arith.maxsi %1, %c0_i32 : i32
    %c0_i32_0 = arith.constant 0 : i32
    %c0_i32_1 = arith.constant 0 : i32
    %c0_i32_2 = arith.constant 0 : i32
    return %arg0, %2, %c0_i32_0, %c0_i32_1 : i32, i32, i32, i32
  }
  func.func @transform_2(%arg0: i32, %arg1: i32) -> (i32, i32, i32, i32) {
    %c1_i32 = arith.constant 1 : i32
    %0 = arith.addi %arg1, %c1_i32 : i32
    %c8_i32 = arith.constant 8 : i32
    %1 = arith.muli %0, %c8_i32 : i32
    %c7_i32 = arith.constant 7 : i32
    %2 = arith.minsi %1, %c7_i32 : i32
    %c0_i32 = arith.constant 0 : i32
    %c0_i32_0 = arith.constant 0 : i32
    %c0_i32_1 = arith.constant 0 : i32
    return %arg0, %2, %c0_i32, %c0_i32_0 : i32, i32, i32, i32
  }
  func.func @transform_3(%arg0: i32, %arg1: i32) -> (i32, i32) {
    %c0_i32 = arith.constant 0 : i32
    %c0_i32_0 = arith.constant 0 : i32
    %c0_i32_1 = arith.constant 0 : i32
    return %c0_i32, %c0_i32_0 : i32, i32
  }
  func.func @transform_4(%arg0: i32, %arg1: i32) -> (i32, i32) {
    %c0_i32 = arith.constant 0 : i32
    %c0_i32_0 = arith.constant 0 : i32
    %c0_i32_1 = arith.constant 0 : i32
    return %c0_i32, %c0_i32_0 : i32, i32
  }
  func.func @transform_5(%arg0: i32, %arg1: i32) -> (i32, i32, i32) {
    %c0_i32 = arith.constant 0 : i32
    %c0_i32_0 = arith.constant 0 : i32
    %c0_i32_1 = arith.constant 0 : i32
    %c0_i32_2 = arith.constant 0 : i32
    return %c0_i32, %c0_i32_0, %c0_i32_1 : i32, i32, i32
  }
  func.func @transform_6(%arg0: i32, %arg1: i32) -> (i32, i32) {
    %c0_i32 = arith.constant 0 : i32
    %c0_i32_0 = arith.constant 0 : i32
    %c0_i32_1 = arith.constant 0 : i32
    return %c0_i32, %c0_i32_0 : i32, i32
  }
  func.func @transform_7(%arg0: i32, %arg1: i32) -> (i32, i32) {
    %c0_i32 = arith.constant 0 : i32
    %c0_i32_0 = arith.constant 0 : i32
    %c0_i32_1 = arith.constant 0 : i32
    return %c0_i32, %c0_i32_0 : i32, i32
  }
  func.func @transform_8(%arg0: i32, %arg1: i32) -> (i32, i32) {
    %c0_i32 = arith.constant 0 : i32
    %c0_i32_0 = arith.constant 0 : i32
    %c0_i32_1 = arith.constant 0 : i32
    return %c0_i32, %c0_i32_0 : i32, i32
  }
  func.func @transform_9(%arg0: i32, %arg1: i32) -> (i32, i32, i32, i32) {
    %c0_i32 = arith.constant 0 : i32
    %c0_i32_0 = arith.constant 0 : i32
    %c0_i32_1 = arith.constant 0 : i32
    return %arg0, %arg1, %c0_i32, %c0_i32_0 : i32, i32, i32, i32
  }
}

</mosaic_0001>

<llo_original>
// kernel: tpu_custom_call.1
$region0: #{tpu_custom_call.1}
  #allocation0 [shape = 'u32[]', space=smem, size = 0x4, offset = 0x4, fixed_abs, tag = 'smem constant byte address 0x4 - core index']
  #allocation1 [shape = 'u32[144,128]{1,0:T(1,128)}', space=vmem, size = 0x12000, scoped, tag = 'internal scratch']
  #allocation2 [shape = 'f32[80,256]{1,0:T(8,128)}', space=vmem, size = 0x14000, scoped, tag = 'scratch operand']
  #allocation3 [shape = 'f32[64,128]{1,0:T(8,128)}', space=vmem, size = 0x8000, scoped, tag = 'scratch operand']
  %s0 = inlined_call_operand.hbm [shape: f32[2,8,8,128], index: 0, kind: input, shape index: {}]
  %s1 = inlined_call_operand.hbm [shape: f32[2,8,8,128], index: 1, kind: input, shape index: {}]
  %s2 = inlined_call_operand.hbm [shape: f32[2,8,8,128], index: 2, kind: input, shape index: {}]
  %s3 = inlined_call_operand.hbm [shape: bf16[128,256], index: 3, kind: input, shape index: {}]
  %s4 = inlined_call_operand.vmem [shape: f32[1,256], index: 4, kind: input, shape index: {}]
  %s5 = inlined_call_operand.hbm [shape: bf16[3,256,384], index: 5, kind: input, shape index: {}]
  %s6 = inlined_call_operand.vmem [shape: f32[1,128], index: 6, kind: input, shape index: {}]
  %s7 = inlined_call_operand.hbm [shape: bf16[128,128], index: 7, kind: input, shape index: {}]
  %s8 = inlined_call_operand.vmem [shape: f32[1,128], index: 8, kind: input, shape index: {}]
  %s9 = inlined_call_operand.hbm [shape: f32[2,8,8,128], index: 9, kind: output, shape index: {}]
  %s10 = sld [smem:[#allocation0]]
  $region97: #{tpu_custom_call.1} parent=0
    _
  %s12 = ssub.s32 1, %s10
  %s13 = scalar_select 0, %s12, %s10
  $region1: #{tpu_custom_call.1} parent=0
    #allocation4 [shape = 'u8[65536]{0}', space=vmem, size = 0x10000, scoped, tag = 'input window, operand 0']
    #allocation5 [shape = 's32[2]{0}', space=sflag, size = 0x8, scoped, tag = 'scoped memory for tpu_custom_call.1']
    #allocation6 [shape = 's32[2]{0}', space=sflag, size = 0x8, scoped, tag = 'scoped memory for tpu_custom_call.1']
    #allocation7 [shape = 'u8[8192]{0}', space=vmem, size = 0x2000, scoped, tag = 'input window, operand 1']
    #allocation8 [shape = 's32[2]{0}', space=sflag, size = 0x8, scoped, tag = 'scoped memory for tpu_custom_call.1']
    #allocation9 [shape = 'u8[8192]{0}', space=vmem, size = 0x2000, scoped, tag = 'input window, operand 2']
    #allocation10 [shape = 'u8[65536]{0}', space=vmem, size = 0x10000, scoped, tag = 'input window, operand 3, single buffered']
    #allocation11 [shape = 's32[1]{0}', space=sflag, size = 0x4, scoped, tag = 'scoped memory for tpu_custom_call.1']
    #allocation12 [shape = 'u8[589824]{0}', space=vmem, size = 0x90000, scoped, tag = 'input window, operand 5, single buffered']
    #allocation13 [shape = 'u8[32768]{0}', space=vmem, size = 0x8000, scoped, tag = 'input window, operand 7, single buffered']
    #allocation14 [shape = 's32[1]{0}', space=sflag, size = 0x4, scoped, tag = 'scoped memory for tpu_custom_call.1']
    #allocation15 [shape = 'u8[65536]{0}', space=vmem, size = 0x10000, scoped, tag = 'output window, operand 0']
    %14 = vsyncpa [#allocation5], 0
    %s15 = scalar_lea.sflag [#allocation5], 1
    %16 = vsyncpa %s15, 0
    %17 = vsyncpa [#allocation8], 0
    %s18 = scalar_lea.sflag [#allocation8], 1
    %19 = vsyncpa %s18, 0
    %20 = vsyncpa [#allocation11], 0
    %21 = vsyncpa [#allocation14], 0
    %22 = vsyncpa [#allocation6], 0
    %s23 = scalar_lea.sflag [#allocation6], 1
    %24 = vsyncpa %s23, 0
    loop: start=0, step=1, limit=4
    $region2: #{tpu_custom_call.1} parent=1 // loop_pre_header
      _
    $region3: #{tpu_custom_call.1} parent=1 // loop_header
      %s26 = sphi 0, %s30
      %p27 = scmp.ge.s32.totalorder %s26, 4
      %s33 = sphi 0, %s45
      %s34 = sphi 0, %s41
      %s35 = sphi 0, %s33
      %s36 = sphi 0, %s34
      %s37 = sphi 0, %s35
      %s38 = sphi 0, %s36
      %s50 = sphi 0, %s52
      %s53 = sphi 0, %s50
      %s54 = sphi 0, %s53
      %s70 = sphi 0, %s54
      %s86 = sphi 0, %s88
      %s89 = sphi 0, %s86
      %s90 = sphi 0, %s89
      %s106 = sphi 0, %s90
      %s122 = sphi 0, %s124
      %s125 = sphi 0, %s122
      %s126 = sphi 0, %s125
      %s142 = sphi 0, %s126
      %s146 = sphi 0, %s146
      %s148 = sphi 0, %s146
      %s149 = sphi 0, %s148
      %s163 = sphi 0, %s149
      %s167 = sphi 0, %s167
      %s169 = sphi 0, %s167
      %s170 = sphi 0, %s169
      %s184 = sphi 0, %s170
      %s188 = sphi 0, %s188
      %s190 = sphi 0, %s188
      %s191 = sphi 0, %s190
      %s205 = sphi 0, %s191
      %s209 = sphi 0, %s209
      %s211 = sphi 0, %s209
      %s212 = sphi 0, %s211
      %s226 = sphi 0, %s212
      %s230 = sphi 0, %s230
      %s232 = sphi 0, %s230
      %s233 = sphi 0, %s232
      %s247 = sphi 0, %s233
      %s251 = sphi 0, %s251
      %s253 = sphi 0, %s251
      %s254 = sphi 0, %s253
      %s268 = sphi 0, %s254
      %s276 = sphi 0, %s278
      %s279 = sphi 0, %s276
      %s280 = sphi 0, %s279
      %s296 = sphi 0, %s280
    $region4: #{tpu_custom_call.1} parent=1 // loop_header_branch
      %29 = sbr.rel (%p27) target = $region8
    $region5: #{tpu_custom_call.1} parent=1 // loop_body
      %s31 = ssub.s32 %s26, 1
      %s32 = ssub.s32 %s26, 2
      %s39 = sadd.s32 1, %s34
      %p40 = scmp.ge.s32.totalorder %s39, 1
      %s41 = scalar_select %p40, 0, %s39
      %s42 = sadd.s32 1, %s33
      %s43 = scalar_select %p40, %s42, %s33
      %p44 = scmp.ge.s32.totalorder %s43, 2
      %s45 = scalar_select %p44, 0, %s43
      %s46 = ssub.s32 %s33, %s45
      %s47 = ssub.s32 %s34, %s41
      %s48 = sor.u32 %s46, %s47
      %p49 = scmp.eq.s32.totalorder %s48, 0
      %s51 = sadd.s32 %s50, 1
      %s52 = scalar_select %p49, %s50, %s51
      %p55 = pneg %p49
      %p56 = scmp.eq.s32.totalorder %s26, 1
      %p57 = por %p55, %p56
      %p58 = scmp.ne.s32.totalorder %s50, %s53
      %p59 = scmp.eq.s32.totalorder %s26, 0
      %p60 = por %p58, %p59
      %p61 = scmp.ne.s32.totalorder %s50, %s53
      %p62 = scmp.eq.s32.totalorder %s31, 1
      %p63 = por %p61, %p62
      %p64 = scmp.ne.s32.totalorder %s53, %s54
      %p65 = scmp.eq.s32.totalorder %s31, 0
      %p66 = por %p64, %p65
      %p67 = scmp.ne.s32.totalorder %s53, %s54
      %p68 = scmp.eq.s32.totalorder %s32, 1
      %p69 = por %p67, %p68
      %p71 = scmp.ne.s32.totalorder %s54, %s70
      %p72 = scmp.eq.s32.totalorder %s32, 0
      %p73 = por %p71, %p72
      %s74 = smul.u32 %s34, 8
      %s75 = ssub.s32 %s74, 1
      %p76 = scmp.gt.s32.totalorder %s75, 0
      %s77 = scalar_select %p76, %s75, 0
      %s78 = smul.u32 %s41, 8
      %s79 = ssub.s32 %s78, 1
      %p80 = scmp.gt.s32.totalorder %s79, 0
      %s81 = scalar_select %p80, %s79, 0
      %s82 = ssub.s32 %s33, %s45
      %s83 = ssub.s32 %s77, %s81
      %s84 = sor.u32 %s82, %s83
      %p85 = scmp.eq.s32.totalorder %s84, 0
      %s87 = sadd.s32 %s86, 1
      %s88 = scalar_select %p85, %s86, %s87
      %p91 = pneg %p85
      %p92 = scmp.eq.s32.totalorder %s26, 1
      %p93 = por %p91, %p92
      %p94 = scmp.ne.s32.totalorder %s86, %s89
      %p95 = scmp.eq.s32.totalorder %s26, 0
      %p96 = por %p94, %p95
      %p97 = scmp.ne.s32.totalorder %s86, %s89
      %p98 = scmp.eq.s32.totalorder %s31, 1
      %p99 = por %p97, %p98
      %p100 = scmp.ne.s32.totalorder %s89, %s90
      %p101 = scmp.eq.s32.totalorder %s31, 0
      %p102 = por %p100, %p101
      %p103 = scmp.ne.s32.totalorder %s89, %s90
      %p104 = scmp.eq.s32.totalorder %s32, 1
      %p105 = por %p103, %p104
      %p107 = scmp.ne.s32.totalorder %s90, %s106
      %p108 = scmp.eq.s32.totalorder %s32, 0
      %p109 = por %p107, %p108
      %s110 = sadd.s32 %s34, 1
      %s111 = smul.u32 %s110, 8
      %p112 = scmp.lt.s32.totalorder %s111, 7
      %s113 = scalar_select %p112, %s111, 7
      %s114 = sadd.s32 %s41, 1
      %s115 = smul.u32 %s114, 8
      %p116 = scmp.lt.s32.totalorder %s115, 7
      %s117 = scalar_select %p116, %s115, 7
      %s118 = ssub.s32 %s33, %s45
      %s119 = ssub.s32 %s113, %s117
      %s120 = sor.u32 %s118, %s119
      %p121 = scmp.eq.s32.totalorder %s120, 0
      %s123 = sadd.s32 %s122, 1
      %s124 = scalar_select %p121, %s122, %s123
      %p127 = pneg %p121
      %p128 = scmp.eq.s32.totalorder %s26, 1
      %p129 = por %p127, %p128
      %p130 = scmp.ne.s32.totalorder %s122, %s125
      %p131 = scmp.eq.s32.totalorder %s26, 0
      %p132 = por %p130, %p131
      %p133 = scmp.ne.s32.totalorder %s122, %s125
      %p134 = scmp.eq.s32.totalorder %s31, 1
      %p135 = por %p133, %p134
      %p136 = scmp.ne.s32.totalorder %s125, %s126
      %p137 = scmp.eq.s32.totalorder %s31, 0
      %p138 = por %p136, %p137
      %p139 = scmp.ne.s32.totalorder %s125, %s126
      %p140 = scmp.eq.s32.totalorder %s32, 1
      %p141 = por %p139, %p140
      %p143 = scmp.ne.s32.totalorder %s126, %s142
      %p144 = scmp.eq.s32.totalorder %s32, 0
      %p145 = por %p143, %p144
      %s147 = sadd.s32 %s146, 1
      %p150 = scmp.eq.s32.totalorder %s26, 1
      %p151 = scmp.ne.s32.totalorder %s146, %s148
      %p152 = scmp.eq.s32.totalorder %s26, 0
      %p153 = por %p151, %p152
      %p154 = scmp.ne.s32.totalorder %s146, %s148
      %p155 = scmp.eq.s32.totalorder %s31, 1
      %p156 = por %p154, %p155
      %p157 = scmp.ne.s32.totalorder %s148, %s149
      %p158 = scmp.eq.s32.totalorder %s31, 0
      %p159 = por %p157, %p158
      %p160 = scmp.ne.s32.totalorder %s148, %s149
      %p161 = scmp.eq.s32.totalorder %s32, 1
      %p162 = por %p160, %p161
      %p164 = scmp.ne.s32.totalorder %s149, %s163
      %p165 = scmp.eq.s32.totalorder %s32, 0
      %p166 = por %p164, %p165
      %s168 = sadd.s32 %s167, 1
      %p171 = scmp.eq.s32.totalorder %s26, 1
      %p172 = scmp.ne.s32.totalorder %s167, %s169
      %p173 = scmp.eq.s32.totalorder %s26, 0
      %p174 = por %p172, %p173
      %p175 = scmp.ne.s32.totalorder %s167, %s169
      %p176 = scmp.eq.s32.totalorder %s31, 1
      %p177 = por %p175, %p176
      %p178 = scmp.ne.s32.totalorder %s169, %s170
      %p179 = scmp.eq.s32.totalorder %s31, 0
      %p180 = por %p178, %p179
      %p181 = scmp.ne.s32.totalorder %s169, %s170
      %p182 = scmp.eq.s32.totalorder %s32, 1
      %p183 = por %p181, %p182
      %p185 = scmp.ne.s32.totalorder %s170, %s184
      %p186 = scmp.eq.s32.totalorder %s32, 0
      %p187 = por %p185, %p186
      %s189 = sadd.s32 %s188, 1
      %p192 = scmp.eq.s32.totalorder %s26, 1
      %p193 = scmp.ne.s32.totalorder %s188, %s190
      %p194 = scmp.eq.s32.totalorder %s26, 0
      %p195 = por %p193, %p194
      %p196 = scmp.ne.s32.totalorder %s188, %s190
      %p197 = scmp.eq.s32.totalorder %s31, 1
      %p198 = por %p196, %p197
      %p199 = scmp.ne.s32.totalorder %s190, %s191
      %p200 = scmp.eq.s32.totalorder %s31, 0
      %p201 = por %p199, %p200
      %p202 = scmp.ne.s32.totalorder %s190, %s191
      %p203 = scmp.eq.s32.totalorder %s32, 1
      %p204 = por %p202, %p203
      %p206 = scmp.ne.s32.totalorder %s191, %s205
      %p207 = scmp.eq.s32.totalorder %s32, 0
      %p208 = por %p206, %p207
      %s210 = sadd.s32 %s209, 1
      %p213 = scmp.eq.s32.totalorder %s26, 1
      %p214 = scmp.ne.s32.totalorder %s209, %s211
      %p215 = scmp.eq.s32.totalorder %s26, 0
      %p216 = por %p214, %p215
      %p217 = scmp.ne.s32.totalorder %s209, %s211
      %p218 = scmp.eq.s32.totalorder %s31, 1
      %p219 = por %p217, %p218
      %p220 = scmp.ne.s32.totalorder %s211, %s212
      %p221 = scmp.eq.s32.totalorder %s31, 0
      %p222 = por %p220, %p221
      %p223 = scmp.ne.s32.totalorder %s211, %s212
      %p224 = scmp.eq.s32.totalorder %s32, 1
      %p225 = por %p223, %p224
      %p227 = scmp.ne.s32.totalorder %s212, %s226
      %p228 = scmp.eq.s32.totalorder %s32, 0
      %p229 = por %p227, %p228
      %s231 = sadd.s32 %s230, 1
      %p234 = scmp.eq.s32.totalorder %s26, 1
      %p235 = scmp.ne.s32.totalorder %s230, %s232
      %p236 = scmp.eq.s32.totalorder %s26, 0
      %p237 = por %p235, %p236
      %p238 = scmp.ne.s32.totalorder %s230, %s232
      %p239 = scmp.eq.s32.totalorder %s31, 1
      %p240 = por %p238, %p239
      %p241 = scmp.ne.s32.totalorder %s232, %s233
      %p242 = scmp.eq.s32.totalorder %s31, 0
      %p243 = por %p241, %p242
      %p244 = scmp.ne.s32.totalorder %s232, %s233
      %p245 = scmp.eq.s32.totalorder %s32, 1
      %p246 = por %p244, %p245
      %p248 = scmp.ne.s32.totalorder %s233, %s247
      %p249 = scmp.eq.s32.totalorder %s32, 0
      %p250 = por %p248, %p249
      %s252 = sadd.s32 %s251, 1
      %p255 = scmp.eq.s32.totalorder %s26, 1
      %p256 = scmp.ne.s32.totalorder %s251, %s253
      %p257 = scmp.eq.s32.totalorder %s26, 0
      %p258 = por %p256, %p257
      %p259 = scmp.ne.s32.totalorder %s251, %s253
      %p260 = scmp.eq.s32.totalorder %s31, 1
      %p261 = por %p259, %p260
      %p262 = scmp.ne.s32.totalorder %s253, %s254
      %p263 = scmp.eq.s32.totalorder %s31, 0
      %p264 = por %p262, %p263
      %p265 = scmp.ne.s32.totalorder %s253, %s254
      %p266 = scmp.eq.s32.totalorder %s32, 1
      %p267 = por %p265, %p266
      %p269 = scmp.ne.s32.totalorder %s254, %s268
      %p270 = scmp.eq.s32.totalorder %s32, 0
      %p271 = por %p269, %p270
      %s272 = ssub.s32 %s33, %s45
      %s273 = ssub.s32 %s34, %s41
      %s274 = sor.u32 %s272, %s273
      %p275 = scmp.eq.s32.totalorder %s274, 0
      %s277 = sadd.s32 %s276, 1
      %s278 = scalar_select %p275, %s276, %s277
      %p281 = pneg %p275
      %p282 = scmp.eq.s32.totalorder %s26, 1
      %p283 = por %p281, %p282
      %p284 = scmp.ne.s32.totalorder %s276, %s279
      %p285 = scmp.eq.s32.totalorder %s26, 0
      %p286 = por %p284, %p285
      %p287 = scmp.ne.s32.totalorder %s276, %s279
      %p288 = scmp.eq.s32.totalorder %s31, 1
      %p289 = por %p287, %p288
      %p290 = scmp.ne.s32.totalorder %s279, %s280
      %p291 = scmp.eq.s32.totalorder %s31, 0
      %p292 = por %p290, %p291
      %p293 = scmp.ne.s32.totalorder %s279, %s280
      %p294 = scmp.eq.s32.totalorder %s32, 1
      %p295 = por %p293, %p294
      %p297 = scmp.ne.s32.totalorder %s280, %s296
      %p298 = scmp.eq.s32.totalorder %s32, 0
      %p299 = por %p297, %p298
      %p300 = scmp.le.s32.totalorder 1, %s26
      %p301 = scmp.lt.s32.totalorder %s26, 3
      %p302 = pnand %p300, %p301
      %p303 = pneg %p302
      // Predicated region
      $region9: #{tpu_custom_call.1} parent=5 // pred_check
        _
      $region10: #{tpu_custom_call.1} parent=5 // pred_check_branch
        %305 = sbr.rel (%p302) target = $region12
      $region11: #{tpu_custom_call.1} parent=5 // pred_region
        %s306 = ssub.s32 %s26, 1
        // Predicated region
        $region13: #{tpu_custom_call.1} parent=11 // pred_check
          %p307 = pneg %p159
        $region14: #{tpu_custom_call.1} parent=11 // pred_check_branch
          %309 = sbr.rel (%p307) target = $region16
        $region15: #{tpu_custom_call.1} parent=11 // pred_region
          %s311 = ssub.s32 2048, 2048
          %312 = vsyncadd [#allocation11], %s311
          %s313 = sshll.u32 [#allocation10], 4
          %s314 = int_to_ptr.vmem [resolvable:$true] %s313
          %319 = dma.hbm_to_vmem [thread:$0]  %s3, 2048, %s314, [#allocation11], 128, 128, 8
        $region16: #{tpu_custom_call.1} parent=11 // pred_fallthru
          _
        // Predicated region
        $region17: #{tpu_custom_call.1} parent=11 // pred_check
          %p320 = pneg %p180
        $region18: #{tpu_custom_call.1} parent=11 // pred_check_branch
          %322 = sbr.rel (%p320) target = $region20
        $region19: #{tpu_custom_call.1} parent=11 // pred_region
          _
        $region20: #{tpu_custom_call.1} parent=11 // pred_fallthru
          _
        // Predicated region
        $region21: #{tpu_custom_call.1} parent=11 // pred_check
          %p323 = pneg %p201
        $region22: #{tpu_custom_call.1} parent=11 // pred_check_branch
          %325 = sbr.rel (%p323) target = $region24
        $region23: #{tpu_custom_call.1} parent=11 // pred_region
          %s327 = ssub.s32 18432, 18432
          %328 = vsyncadd [#allocation11], %s327
          %s329 = sshll.u32 [#allocation12], 4
          %s330 = int_to_ptr.vmem [resolvable:$true] %s329
          %335 = dma.hbm_to_vmem [thread:$0]  %s5, 18432, %s330, [#allocation11], 192, 192, 12
        $region24: #{tpu_custom_call.1} parent=11 // pred_fallthru
          _
        // Predicated region
        $region25: #{tpu_custom_call.1} parent=11 // pred_check
          %p336 = pneg %p222
        $region26: #{tpu_custom_call.1} parent=11 // pred_check_branch
          %338 = sbr.rel (%p336) target = $region28
        $region27: #{tpu_custom_call.1} parent=11 // pred_region
          _
        $region28: #{tpu_custom_call.1} parent=11 // pred_fallthru
          _
        // Predicated region
        $region29: #{tpu_custom_call.1} parent=11 // pred_check
          %p339 = pneg %p243
        $region30: #{tpu_custom_call.1} parent=11 // pred_check_branch
          %341 = sbr.rel (%p339) target = $region32
        $region31: #{tpu_custom_call.1} parent=11 // pred_region
          %s343 = ssub.s32 1024, 1024
          %344 = vsyncadd [#allocation14], %s343
          %s345 = sshll.u32 [#allocation13], 4
          %s346 = int_to_ptr.vmem [resolvable:$true] %s345
          %351 = dma.hbm_to_vmem [thread:$0]  %s7, 1024, %s346, [#allocation14], 64, 64, 4
        $region32: #{tpu_custom_call.1} parent=11 // pred_fallthru
          _
        // Predicated region
        $region33: #{tpu_custom_call.1} parent=11 // pred_check
          %p352 = pneg %p264
        $region34: #{tpu_custom_call.1} parent=11 // pred_check_branch
          %354 = sbr.rel (%p352) target = $region36
        $region35: #{tpu_custom_call.1} parent=11 // pred_region
          _
        $region36: #{tpu_custom_call.1} parent=11 // pred_fallthru
          _
      $region12: #{tpu_custom_call.1} parent=5 // pred_fallthru
        _
      %p355 = scmp.lt.s32.totalorder %s26, 2
      // Predicated region
      $region37: #{tpu_custom_call.1} parent=5 // pred_check
        %p356 = pneg %p355
      $region38: #{tpu_custom_call.1} parent=5 // pred_check_branch
        %358 = sbr.rel (%p356) target = $region40
      $region39: #{tpu_custom_call.1} parent=5 // pred_region
        // Predicated region
        $region41: #{tpu_custom_call.1} parent=39 // pred_check
          %p359 = pneg %p60
        $region42: #{tpu_custom_call.1} parent=39 // pred_check_branch
          %361 = sbr.rel (%p359) target = $region44
        $region43: #{tpu_custom_call.1} parent=39 // pred_region
          %s362 = sand.u32 %s50, 1
          %s363 = scalar_lea.sflag [#allocation5], %s362
          %s364 = sand.u32 %s50, 1
          %s365 = smul.addr %s364, 64
          %s366 = scalar_lea.vmem [#allocation4], %s365
          %s367 = smul.u32 8, %s34
          %s369 = ssub.s32 1024, 1024
          %370 = vsyncadd %s363, %s369
          %s371 = smul.addr %s33, 8
          %s372 = sadd.s32 %s367, %s371
          %s373 = smul.addr %s372, 128
          %s374 = scalar_lea.hbm %s0, %s373
          %s375 = sshll.u32 %s366, 4
          %s376 = int_to_ptr.vmem [resolvable:$true] %s375
          %381 = dma.hbm_to_vmem [thread:$0]  %s374, 1024, %s376, %s363, 128, 128, 8
        $region44: #{tpu_custom_call.1} parent=39 // pred_fallthru
          _
        // Predicated region
        $region45: #{tpu_custom_call.1} parent=39 // pred_check
          %p382 = pneg %p96
        $region46: #{tpu_custom_call.1} parent=39 // pred_check_branch
          %384 = sbr.rel (%p382) target = $region48
        $region47: #{tpu_custom_call.1} parent=39 // pred_region
          %s385 = sand.u32 %s26, 1
          %s386 = scalar_lea.sflag [#allocation8], %s385
          %s387 = sand.u32 %s86, 1
          %s388 = smul.addr %s387, 8
          %s389 = scalar_lea.vmem [#allocation7], %s388
          %s390 = smul.u32 %s34, 8
          %s391 = ssub.s32 %s390, 1
          %p392 = scmp.gt.s32.totalorder %s391, 0
          %s393 = scalar_select %p392, %s391, 0
          %s395 = ssub.s32 128, 128
          %396 = vsyncadd %s386, %s395
          %s397 = smul.addr %s33, 8
          %s398 = sadd.s32 %s393, %s397
          %s399 = smul.addr %s398, 128
          %s400 = scalar_lea.hbm %s1, %s399
          %s402 = sshll.u32 %s389, 4
          %s403 = int_to_ptr.vmem [resolvable:$true] %s402
          %405 = dma.hbm_to_vmem [thread:$0]  %s400, 128, %s403, %s386
        $region48: #{tpu_custom_call.1} parent=39 // pred_fallthru
          _
        // Predicated region
        $region49: #{tpu_custom_call.1} parent=39 // pred_check
          %p406 = pneg %p132
        $region50: #{tpu_custom_call.1} parent=39 // pred_check_branch
          %408 = sbr.rel (%p406) target = $region52
        $region51: #{tpu_custom_call.1} parent=39 // pred_region
          %s409 = sand.u32 %s26, 1
          %s410 = scalar_lea.sflag [#allocation8], %s409
          %s411 = sand.u32 %s122, 1
          %s412 = smul.addr %s411, 8
          %s413 = scalar_lea.vmem [#allocation9], %s412
          %s414 = sadd.s32 %s34, 1
          %s415 = smul.u32 %s414, 8
          %p416 = scmp.lt.s32.totalorder %s415, 7
          %s417 = scalar_select %p416, %s415, 7
          %s419 = ssub.s32 128, 128
          %420 = vsyncadd %s410, %s419
          %s421 = smul.addr %s33, 8
          %s422 = sadd.s32 %s417, %s421
          %s423 = smul.addr %s422, 128
          %s424 = scalar_lea.hbm %s2, %s423
          %s426 = sshll.u32 %s413, 4
          %s427 = int_to_ptr.vmem [resolvable:$true] %s426
          %429 = dma.hbm_to_vmem [thread:$0]  %s424, 128, %s427, %s410
        $region52: #{tpu_custom_call.1} parent=39 // pred_fallthru
          _
      $region40: #{tpu_custom_call.1} parent=5 // pred_fallthru
        _
      %p430 = scmp.le.s32.totalorder 1, %s26
      %p431 = scmp.lt.s32.totalorder %s26, 3
      %p432 = pnand %p430, %p431
      %p433 = pneg %p432
      // Predicated region
      $region53: #{tpu_custom_call.1} parent=5 // pred_check
        _
      $region54: #{tpu_custom_call.1} parent=5 // pred_check_branch
        %435 = sbr.rel (%p432) target = $region56
      $region55: #{tpu_custom_call.1} parent=5 // pred_region
        %s436 = ssub.s32 %s26, 1
        %s437 = sand.u32 %s53, 1
        %s438 = scalar_lea.sflag [#allocation5], %s437
        %s439 = sand.u32 %s53, 1
        %s440 = smul.addr %s439, 64
        %s441 = scalar_lea.vmem [#allocation4], %s440
        // Predicated region
        $region57: #{tpu_custom_call.1} parent=55 // pred_check
          %p442 = pneg %p66
        $region58: #{tpu_custom_call.1} parent=55 // pred_check_branch
          %444 = sbr.rel (%p442) target = $region60
        $region59: #{tpu_custom_call.1} parent=55 // pred_region
          %445 = dma.done %s438, 1024
        $region60: #{tpu_custom_call.1} parent=55 // pred_fallthru
          _
        %s446 = sand.u32 %s31, 1
        %s447 = scalar_lea.sflag [#allocation8], %s446
        %s448 = sand.u32 %s89, 1
        %s449 = smul.addr %s448, 8
        %s450 = scalar_lea.vmem [#allocation7], %s449
        // Predicated region
        $region61: #{tpu_custom_call.1} parent=55 // pred_check
          %p451 = pneg %p102
        $region62: #{tpu_custom_call.1} parent=55 // pred_check_branch
          %453 = sbr.rel (%p451) target = $region64
        $region63: #{tpu_custom_call.1} parent=55 // pred_region
          %454 = dma.done %s447, 128
        $region64: #{tpu_custom_call.1} parent=55 // pred_fallthru
          _
        %s455 = sand.u32 %s31, 1
        %s456 = scalar_lea.sflag [#allocation8], %s455
        %s457 = sand.u32 %s125, 1
        %s458 = smul.addr %s457, 8
        %s459 = scalar_lea.vmem [#allocation9], %s458
        // Predicated region
        $region65: #{tpu_custom_call.1} parent=55 // pred_check
          %p460 = pneg %p138
        $region66: #{tpu_custom_call.1} parent=55 // pred_check_branch
          %462 = sbr.rel (%p460) target = $region68
        $region67: #{tpu_custom_call.1} parent=55 // pred_region
          %463 = dma.done %s456, 128
        $region68: #{tpu_custom_call.1} parent=55 // pred_fallthru
          _
        // Predicated region
        $region69: #{tpu_custom_call.1} parent=55 // pred_check
          %p464 = pneg %p159
        $region70: #{tpu_custom_call.1} parent=55 // pred_check_branch
          %466 = sbr.rel (%p464) target = $region72
        $region71: #{tpu_custom_call.1} parent=55 // pred_region
          %467 = dma.done [#allocation11], 2048
        $region72: #{tpu_custom_call.1} parent=55 // pred_fallthru
          _
        // Predicated region
        $region73: #{tpu_custom_call.1} parent=55 // pred_check
          %p468 = pneg %p201
        $region74: #{tpu_custom_call.1} parent=55 // pred_check_branch
          %470 = sbr.rel (%p468) target = $region76
        $region75: #{tpu_custom_call.1} parent=55 // pred_region
          %471 = dma.done [#allocation11], 18432
        $region76: #{tpu_custom_call.1} parent=55 // pred_fallthru
          _
        // Predicated region
        $region77: #{tpu_custom_call.1} parent=55 // pred_check
          %p472 = pneg %p243
        $region78: #{tpu_custom_call.1} parent=55 // pred_check_branch
          %474 = sbr.rel (%p472) target = $region80
        $region79: #{tpu_custom_call.1} parent=55 // pred_region
          %475 = dma.done [#allocation14], 1024
        $region80: #{tpu_custom_call.1} parent=55 // pred_fallthru
          _
        %s476 = sand.u32 %s53, 1
        %s477 = scalar_lea.sflag [#allocation5], %s476
        %s478 = sand.u32 %s53, 1
        %s479 = smul.addr %s478, 64
        %s480 = scalar_lea.vmem [#allocation4], %s479
        %p481 = pneg %p66
        %p482 = pneg %p63
        %s483 = sand.u32 %s31, 1
        %s484 = scalar_lea.sflag [#allocation8], %s483
        %s485 = sand.u32 %s89, 1
        %s486 = smul.addr %s485, 8
        %s487 = scalar_lea.vmem [#allocation7], %s486
        %p488 = pneg %p102
        %p489 = pneg %p99
        %s490 = sand.u32 %s31, 1
        %s491 = scalar_lea.sflag [#allocation8], %s490
        %s492 = sand.u32 %s125, 1
        %s493 = smul.addr %s492, 8
        %s494 = scalar_lea.vmem [#allocation9], %s493
        %p495 = pneg %p138
        %p496 = pneg %p135
        %p497 = pneg %p159
        %p498 = pneg %p156
        %p499 = pneg %p180
        %p500 = pneg %p177
        %p501 = pneg %p201
        %p502 = pneg %p198
        %p503 = pneg %p222
        %p504 = pneg %p219
        %p505 = pneg %p243
        %p506 = pneg %p240
        %p507 = pneg %p264
        %p508 = pneg %p261
        %p509 = pneg %p292
        %p510 = pneg %p289
        %s511 = sand.u32 %s279, 1
        %s512 = scalar_lea.sflag [#allocation6], %s511
        %s513 = sand.u32 %s279, 1
        %s514 = smul.addr %s513, 64
        %s515 = scalar_lea.vmem [#allocation15], %s514
        %s516 = smul.u32 8, %s36
        %s517 = smul.u32 %s36, 8
        %s518 = ssub.s32 %s517, 1
        %p519 = scmp.gt.s32.totalorder %s518, 0
        %s520 = scalar_select %p519, %s518, 0
        %s521 = sadd.s32 %s36, 1
        %s522 = smul.u32 %s521, 8
        %p523 = scmp.lt.s32.totalorder %s522, 7
        %s524 = scalar_select %p523, %s522, 7
        %s525 = smul.u32 8, %s36
        %v527 = vld [vmem:[%s441] sm:$0xff]
        %v528 = vld [vmem:[%s441 + $0x8] sm:$0xff]
        %v529 = vld [vmem:[%s441 + $0x10] sm:$0xff]
        %v530 = vld [vmem:[%s441 + $0x18] sm:$0xff]
        %v531 = vld [vmem:[%s441 + $0x20] sm:$0xff]
        %v532 = vld [vmem:[%s441 + $0x28] sm:$0xff]
        %v533 = vld [vmem:[%s441 + $0x30] sm:$0xff]
        %v534 = vld [vmem:[%s441 + $0x38] sm:$0xff]
        %v535 = vpack.c.bf16 %v528, %v527
        %v536 = vpack.c.bf16 %v530, %v529
        %v537 = vpack.c.bf16 %v532, %v531
        %v538 = vpack.c.bf16 %v534, %v533
        %v539 = vld [vmem:[#allocation10] sm:$0xff]
        %v540 = vld [vmem:[#allocation10 + $0x8] sm:$0xff]
        %v541 = vld [vmem:[#allocation10 + $0x10] sm:$0xff]
        %v542 = vld [vmem:[#allocation10 + $0x18] sm:$0xff]
        %v543 = vld [vmem:[#allocation10 + $0x20] sm:$0xff]
        %v544 = vld [vmem:[#allocation10 + $0x28] sm:$0xff]
        %v545 = vld [vmem:[#allocation10 + $0x30] sm:$0xff]
        %v546 = vld [vmem:[#allocation10 + $0x38] sm:$0xff]
        %v547 = vld [vmem:[#allocation10 + $0x40] sm:$0xff]
        %v548 = vld [vmem:[#allocation10 + $0x48] sm:$0xff]
        %v549 = vld [vmem:[#allocation10 + $0x50] sm:$0xff]
        %v550 = vld [vmem:[#allocation10 + $0x58] sm:$0xff]
        %v551 = vld [vmem:[#allocation10 + $0x60] sm:$0xff]
        %v552 = vld [vmem:[#allocation10 + $0x68] sm:$0xff]
        %v553 = vld [vmem:[#allocation10 + $0x70] sm:$0xff]
        %v554 = vld [vmem:[#allocation10 + $0x78] sm:$0xff]
        %v555 = vld [vmem:[%s4] sm:$0x3]
        %v557 = vlaneseq
        %v558 = vshrl.u32 %v557, 7
        %v559 = vsub.s32 0, %v558
        %v560 = vrot.slane %v555, %v559
        %v561 = vlaneseq
        %v562 = vshrl.u32 %v561, 7
        %v563 = vsub.s32 1, %v562
        %v564 = vrot.slane %v555, %v563
        %v583 = vunpack.c.l.b16 %v539
        %v584 = vunpack.c.h.b16 %v539
        %v585 = vunpack.c.l.b16 %v540
        %v586 = vunpack.c.h.b16 %v540
        %v587 = vunpack.c.l.b16 %v541
        %v588 = vunpack.c.h.b16 %v541
        %v589 = vunpack.c.l.b16 %v542
        %v590 = vunpack.c.h.b16 %v542
        %v591 = vunpack.c.l.b16 %v543
        %v592 = vunpack.c.h.b16 %v543
        %v593 = vunpack.c.l.b16 %v544
        %v594 = vunpack.c.h.b16 %v544
        %v595 = vunpack.c.l.b16 %v545
        %v596 = vunpack.c.h.b16 %v545
        %v597 = vunpack.c.l.b16 %v546
        %v598 = vunpack.c.h.b16 %v546
        %v599 = vunpack.c.l.b16 %v547
        %v600 = vunpack.c.h.b16 %v547
        %v601 = vunpack.c.l.b16 %v548
        %v602 = vunpack.c.h.b16 %v548
        %v603 = vunpack.c.l.b16 %v549
        %v604 = vunpack.c.h.b16 %v549
        %v605 = vunpack.c.l.b16 %v550
        %v606 = vunpack.c.h.b16 %v550
        %v607 = vunpack.c.l.b16 %v551
        %v608 = vunpack.c.h.b16 %v551
        %v609 = vunpack.c.l.b16 %v552
        %v610 = vunpack.c.h.b16 %v552
        %v611 = vunpack.c.l.b16 %v553
        %v612 = vunpack.c.h.b16 %v553
        %v613 = vunpack.c.l.b16 %v554
        %v614 = vunpack.c.h.b16 %v554
        %v615 = vpack.c.b16 %v585, %v583
        %v616 = vpack.c.b16 %v586, %v584
        %v617 = vpack.c.b16 %v589, %v587
        %v618 = vpack.c.b16 %v590, %v588
        %v619 = vpack.c.b16 %v593, %v591
        %v620 = vpack.c.b16 %v594, %v592
        %v621 = vpack.c.b16 %v597, %v595
        %v622 = vpack.c.b16 %v598, %v596
        %v623 = vpack.c.b16 %v601, %v599
        %v624 = vpack.c.b16 %v602, %v600
        %v625 = vpack.c.b16 %v605, %v603
        %v626 = vpack.c.b16 %v606, %v604
        %v627 = vpack.c.b16 %v609, %v607
        %v628 = vpack.c.b16 %v610, %v608
        %v629 = vpack.c.b16 %v613, %v611
        %v630 = vpack.c.b16 %v614, %v612
        %647 = vmatprep.subr.bf16.mxu0 %v630
        %648 = vmatpush1.bf16.msra.mxu0 %v629
        %649 = vmatprep.subr.bf16.mxu0 %v628
        %650 = vmatpush1.bf16.msra.mxu0 %v627
        %651 = vmatprep.subr.bf16.mxu0 %v626
        %652 = vmatpush1.bf16.msra.mxu0 %v625
        %653 = vmatprep.subr.bf16.mxu0 %v624
        %654 = vmatpush1.bf16.msra.mxu0 %v623
        %655 = vmatprep.subr.bf16.mxu0 %v622
        %656 = vmatpush1.bf16.msra.mxu0 %v621
        %657 = vmatprep.subr.bf16.mxu0 %v620
        %658 = vmatpush1.bf16.msra.mxu0 %v619
        %659 = vmatprep.subr.bf16.mxu0 %v618
        %660 = vmatpush1.bf16.msra.mxu0 %v617
        %661 = vmatprep.subr.bf16.mxu0 %v616
        %662 = vmatpush1.bf16.msra.mxu0 %v615
        %663 = vmatprep.subr.bf16.mxu0 0
        %664 = vmatpush2.bf16.msra.mxu0 0
        %665 = vmatprep.subr.bf16.mxu0 0
        %666 = vmatpush2.bf16.msra.mxu0 0
        %667 = vmatprep.subr.bf16.mxu0 0
        %668 = vmatpush2.bf16.msra.mxu0 0
        %669 = vmatprep.subr.bf16.mxu0 0
        %670 = vmatpush2.bf16.msra.mxu0 0
        %671 = vmatprep.subr.bf16.mxu0 0
        %672 = vmatpush2.bf16.msra.mxu0 0
        %673 = vmatprep.subr.bf16.mxu0 0
        %674 = vmatpush2.bf16.msra.mxu0 0
        %675 = vmatprep.subr.bf16.mxu0 0
        %676 = vmatpush2.bf16.msra.mxu0 0
        %677 = vmatprep.subr.bf16.mxu0 0
        %678 = vmatpush2.bf16.msra.mxu0 0
        %679 = vmatprep.mubr.bf16.mxu0 0
        %680 = vmatmul.mubr.bf16.gmra.mxu0 %v535
        %v681 = vpop.f32.mrf.mxu0
        %v682 = vadd.f32 %v560, %v681
        %v683 = vpop.f32.mrf.mxu0
        %v684 = vadd.f32 %v564, %v683
        %v685 = vpop.f32.mrf.mxu0
        %v686 = vadd.f32 %v560, %v685
        %v687 = vpop.f32.mrf.mxu0
        %v688 = vadd.f32 %v564, %v687
        %689 = vmatprep.mubr.bf16.mxu0 0
        %690 = vmatmul.mubr.bf16.gmra.mxu0 %v536
        %v691 = vpop.f32.mrf.mxu0
        %v692 = vadd.f32 %v560, %v691
        %v693 = vpop.f32.mrf.mxu0
        %v694 = vadd.f32 %v564, %v693
        %v695 = vpop.f32.mrf.mxu0
        %v696 = vadd.f32 %v560, %v695
        %v697 = vpop.f32.mrf.mxu0
        %v698 = vadd.f32 %v564, %v697
        %699 = vmatprep.mubr.bf16.mxu0 0
        %700 = vmatmul.mubr.bf16.gmra.mxu0 %v537
        %v701 = vpop.f32.mrf.mxu0
        %v702 = vadd.f32 %v560, %v701
        %v703 = vpop.f32.mrf.mxu0
        %v704 = vadd.f32 %v564, %v703
        %v705 = vpop.f32.mrf.mxu0
        %v706 = vadd.f32 %v560, %v705
        %v707 = vpop.f32.mrf.mxu0
        %v708 = vadd.f32 %v564, %v707
        %709 = vmatprep.mubr.bf16.mxu0 0
        %710 = vmatmul.mubr.bf16.gmra.mxu0 %v538
        %v711 = vpop.f32.mrf.mxu0
        %v712 = vadd.f32 %v560, %v711
        %v713 = vpop.f32.mrf.mxu0
        %v714 = vadd.f32 %v564, %v713
        %v715 = vpop.f32.mrf.mxu0
        %v716 = vadd.f32 %v560, %v715
        %v717 = vpop.f32.mrf.mxu0
        %v718 = vadd.f32 %v564, %v717
        %719 = vdwg.mxu0
        %v720 = vmax.f32 %v682, 0.0
        %v721 = vmax.f32 %v684, 0.0
        %v722 = vmax.f32 %v686, 0.0
        %v723 = vmax.f32 %v688, 0.0
        %v724 = vmax.f32 %v692, 0.0
        %v725 = vmax.f32 %v694, 0.0
        %v726 = vmax.f32 %v696, 0.0
        %v727 = vmax.f32 %v698, 0.0
        %v728 = vmax.f32 %v702, 0.0
        %v729 = vmax.f32 %v704, 0.0
        %v730 = vmax.f32 %v706, 0.0
        %v731 = vmax.f32 %v708, 0.0
        %v732 = vmax.f32 %v712, 0.0
        %v733 = vmax.f32 %v714, 0.0
        %v734 = vmax.f32 %v716, 0.0
        %v735 = vmax.f32 %v718, 0.0
        %736 = vst [vmem:[#allocation2 + $0x10] sm:$0xff] %v720
        %737 = vst [vmem:[#allocation2 + $0x18] sm:$0xff] %v721
        %738 = vst [vmem:[#allocation2 + $0x20] sm:$0xff] %v722
        %739 = vst [vmem:[#allocation2 + $0x28] sm:$0xff] %v723
        %740 = vst [vmem:[#allocation2 + $0x30] sm:$0xff] %v724
        %741 = vst [vmem:[#allocation2 + $0x38] sm:$0xff] %v725
        %742 = vst [vmem:[#allocation2 + $0x40] sm:$0xff] %v726
        %743 = vst [vmem:[#allocation2 + $0x48] sm:$0xff] %v727
        %744 = vst [vmem:[#allocation2 + $0x50] sm:$0xff] %v728
        %745 = vst [vmem:[#allocation2 + $0x58] sm:$0xff] %v729
        %746 = vst [vmem:[#allocation2 + $0x60] sm:$0xff] %v730
        %747 = vst [vmem:[#allocation2 + $0x68] sm:$0xff] %v731
        %748 = vst [vmem:[#allocation2 + $0x70] sm:$0xff] %v732
        %749 = vst [vmem:[#allocation2 + $0x78] sm:$0xff] %v733
        %750 = vst [vmem:[#allocation2 + $0x80] sm:$0xff] %v734
        %751 = vst [vmem:[#allocation2 + $0x88] sm:$0xff] %v735
        %v752 = vld [vmem:[%s450] sm:$0xff]
        %v753 = vpack.c.bf16 %v752, %v752
        %v754 = vld [vmem:[#allocation10] sm:$0xff]
        %v755 = vld [vmem:[#allocation10 + $0x8] sm:$0xff]
        %v756 = vld [vmem:[#allocation10 + $0x10] sm:$0xff]
        %v757 = vld [vmem:[#allocation10 + $0x18] sm:$0xff]
        %v758 = vld [vmem:[#allocation10 + $0x20] sm:$0xff]
        %v759 = vld [vmem:[#allocation10 + $0x28] sm:$0xff]
        %v760 = vld [vmem:[#allocation10 + $0x30] sm:$0xff]
        %v761 = vld [vmem:[#allocation10 + $0x38] sm:$0xff]
        %v762 = vld [vmem:[#allocation10 + $0x40] sm:$0xff]
        %v763 = vld [vmem:[#allocation10 + $0x48] sm:$0xff]
        %v764 = vld [vmem:[#allocation10 + $0x50] sm:$0xff]
        %v765 = vld [vmem:[#allocation10 + $0x58] sm:$0xff]
        %v766 = vld [vmem:[#allocation10 + $0x60] sm:$0xff]
        %v767 = vld [vmem:[#allocation10 + $0x68] sm:$0xff]
        %v768 = vld [vmem:[#allocation10 + $0x70] sm:$0xff]
        %v769 = vld [vmem:[#allocation10 + $0x78] sm:$0xff]
        %v770 = vld [vmem:[%s4] sm:$0x3]
        %v772 = vlaneseq
        %v773 = vshrl.u32 %v772, 7
        %v774 = vsub.s32 0, %v773
        %v775 = vrot.slane %v770, %v774
        %v776 = vlaneseq
        %v777 = vshrl.u32 %v776, 7
        %v778 = vsub.s32 1, %v777
        %v779 = vrot.slane %v770, %v778
        %v798 = vunpack.c.l.b16 %v754
        %v799 = vunpack.c.h.b16 %v754
        %v800 = vunpack.c.l.b16 %v755
        %v801 = vunpack.c.h.b16 %v755
        %v802 = vunpack.c.l.b16 %v756
        %v803 = vunpack.c.h.b16 %v756
        %v804 = vunpack.c.l.b16 %v757
        %v805 = vunpack.c.h.b16 %v757
        %v806 = vunpack.c.l.b16 %v758
        %v807 = vunpack.c.h.b16 %v758
        %v808 = vunpack.c.l.b16 %v759
        %v809 = vunpack.c.h.b16 %v759
        %v810 = vunpack.c.l.b16 %v760
        %v811 = vunpack.c.h.b16 %v760
        %v812 = vunpack.c.l.b16 %v761
        %v813 = vunpack.c.h.b16 %v761
        %v814 = vunpack.c.l.b16 %v762
        %v815 = vunpack.c.h.b16 %v762
        %v816 = vunpack.c.l.b16 %v763
        %v817 = vunpack.c.h.b16 %v763
        %v818 = vunpack.c.l.b16 %v764
        %v819 = vunpack.c.h.b16 %v764
        %v820 = vunpack.c.l.b16 %v765
        %v821 = vunpack.c.h.b16 %v765
        %v822 = vunpack.c.l.b16 %v766
        %v823 = vunpack.c.h.b16 %v766
        %v824 = vunpack.c.l.b16 %v767
        %v825 = vunpack.c.h.b16 %v767
        %v826 = vunpack.c.l.b16 %v768
        %v827 = vunpack.c.h.b16 %v768
        %v828 = vunpack.c.l.b16 %v769
        %v829 = vunpack.c.h.b16 %v769
        %v830 = vpack.c.b16 %v800, %v798
        %v831 = vpack.c.b16 %v801, %v799
        %v832 = vpack.c.b16 %v804, %v802
        %v833 = vpack.c.b16 %v805, %v803
        %v834 = vpack.c.b16 %v808, %v806
        %v835 = vpack.c.b16 %v809, %v807
        %v836 = vpack.c.b16 %v812, %v810
        %v837 = vpack.c.b16 %v813, %v811
        %v838 = vpack.c.b16 %v816, %v814
        %v839 = vpack.c.b16 %v817, %v815
        %v840 = vpack.c.b16 %v820, %v818
        %v841 = vpack.c.b16 %v821, %v819
        %v842 = vpack.c.b16 %v824, %v822
        %v843 = vpack.c.b16 %v825, %v823
        %v844 = vpack.c.b16 %v828, %v826
        %v845 = vpack.c.b16 %v829, %v827
        %862 = vmatprep.subr.bf16.mxu0 %v845
        %863 = vmatpush1.bf16.msra.mxu0 %v844
        %864 = vmatprep.subr.bf16.mxu0 %v843
        %865 = vmatpush1.bf16.msra.mxu0 %v842
        %866 = vmatprep.subr.bf16.mxu0 %v841
        %867 = vmatpush1.bf16.msra.mxu0 %v840
        %868 = vmatprep.subr.bf16.mxu0 %v839
        %869 = vmatpush1.bf16.msra.mxu0 %v838
        %870 = vmatprep.subr.bf16.mxu0 %v837
        %871 = vmatpush1.bf16.msra.mxu0 %v836
        %872 = vmatprep.subr.bf16.mxu0 %v835
        %873 = vmatpush1.bf16.msra.mxu0 %v834
        %874 = vmatprep.subr.bf16.mxu0 %v833
        %875 = vmatpush1.bf16.msra.mxu0 %v832
        %876 = vmatprep.subr.bf16.mxu0 %v831
        %877 = vmatpush1.bf16.msra.mxu0 %v830
        %878 = vmatprep.subr.bf16.mxu0 0
        %879 = vmatpush2.bf16.msra.mxu0 0
        %880 = vmatprep.subr.bf16.mxu0 0
        %881 = vmatpush2.bf16.msra.mxu0 0
        %882 = vmatprep.subr.bf16.mxu0 0
        %883 = vmatpush2.bf16.msra.mxu0 0
        %884 = vmatprep.subr.bf16.mxu0 0
        %885 = vmatpush2.bf16.msra.mxu0 0
        %886 = vmatprep.subr.bf16.mxu0 0
        %887 = vmatpush2.bf16.msra.mxu0 0
        %888 = vmatprep.subr.bf16.mxu0 0
        %889 = vmatpush2.bf16.msra.mxu0 0
        %890 = vmatprep.subr.bf16.mxu0 0
        %891 = vmatpush2.bf16.msra.mxu0 0
        %892 = vmatprep.subr.bf16.mxu0 0
        %893 = vmatpush2.bf16.msra.mxu0 0
        %894 = vmatprep.mubr.bf16.mxu0 0
        %895 = vmatmul.mubr.bf16.gmra.mxu0 %v753
        %v896 = vpop.f32.mrf.mxu0
        %v897 = vadd.f32 %v775, %v896
        %v898 = vpop.f32.mrf.mxu0
        %v899 = vadd.f32 %v779, %v898
        %v900 = vpop.f32.mrf.mxu0
        %v901 = vpop.f32.mrf.mxu0
        %902 = vdwg.mxu0
        %v903 = vmax.f32 %v897, 0.0
        %v904 = vmax.f32 %v899, 0.0
        %905 = vst [vmem:[#allocation2] sm:$0xff] %v903
        %906 = vst [vmem:[#allocation2 + $0x8] sm:$0xff] %v904
        %v907 = vld [vmem:[%s459] sm:$0xff]
        %v908 = vpack.c.bf16 %v907, %v907
        %v909 = vld [vmem:[#allocation10] sm:$0xff]
        %v910 = vld [vmem:[#allocation10 + $0x8] sm:$0xff]
        %v911 = vld [vmem:[#allocation10 + $0x10] sm:$0xff]
        %v912 = vld [vmem:[#allocation10 + $0x18] sm:$0xff]
        %v913 = vld [vmem:[#allocation10 + $0x20] sm:$0xff]
        %v914 = vld [vmem:[#allocation10 + $0x28] sm:$0xff]
        %v915 = vld [vmem:[#allocation10 + $0x30] sm:$0xff]
        %v916 = vld [vmem:[#allocation10 + $0x38] sm:$0xff]
        %v917 = vld [vmem:[#allocation10 + $0x40] sm:$0xff]
        %v918 = vld [vmem:[#allocation10 + $0x48] sm:$0xff]
        %v919 = vld [vmem:[#allocation10 + $0x50] sm:$0xff]
        %v920 = vld [vmem:[#allocation10 + $0x58] sm:$0xff]
        %v921 = vld [vmem:[#allocation10 + $0x60] sm:$0xff]
        %v922 = vld [vmem:[#allocation10 + $0x68] sm:$0xff]
        %v923 = vld [vmem:[#allocation10 + $0x70] sm:$0xff]
        %v924 = vld [vmem:[#allocation10 + $0x78] sm:$0xff]
        %v925 = vld [vmem:[%s4] sm:$0x3]
        %v927 = vlaneseq
        %v928 = vshrl.u32 %v927, 7
        %v929 = vsub.s32 0, %v928
        %v930 = vrot.slane %v925, %v929
        %v931 = vlaneseq
        %v932 = vshrl.u32 %v931, 7
        %v933 = vsub.s32 1, %v932
        %v934 = vrot.slane %v925, %v933
        %v953 = vunpack.c.l.b16 %v909
        %v954 = vunpack.c.h.b16 %v909
        %v955 = vunpack.c.l.b16 %v910
        %v956 = vunpack.c.h.b16 %v910
        %v957 = vunpack.c.l.b16 %v911
        %v958 = vunpack.c.h.b16 %v911
        %v959 = vunpack.c.l.b16 %v912
        %v960 = vunpack.c.h.b16 %v912
        %v961 = vunpack.c.l.b16 %v913
        %v962 = vunpack.c.h.b16 %v913
        %v963 = vunpack.c.l.b16 %v914
        %v964 = vunpack.c.h.b16 %v914
        %v965 = vunpack.c.l.b16 %v915
        %v966 = vunpack.c.h.b16 %v915
        %v967 = vunpack.c.l.b16 %v916
        %v968 = vunpack.c.h.b16 %v916
        %v969 = vunpack.c.l.b16 %v917
        %v970 = vunpack.c.h.b16 %v917
        %v971 = vunpack.c.l.b16 %v918
        %v972 = vunpack.c.h.b16 %v918
        %v973 = vunpack.c.l.b16 %v919
        %v974 = vunpack.c.h.b16 %v919
        %v975 = vunpack.c.l.b16 %v920
        %v976 = vunpack.c.h.b16 %v920
        %v977 = vunpack.c.l.b16 %v921
        %v978 = vunpack.c.h.b16 %v921
        %v979 = vunpack.c.l.b16 %v922
        %v980 = vunpack.c.h.b16 %v922
        %v981 = vunpack.c.l.b16 %v923
        %v982 = vunpack.c.h.b16 %v923
        %v983 = vunpack.c.l.b16 %v924
        %v984 = vunpack.c.h.b16 %v924
        %v985 = vpack.c.b16 %v955, %v953
        %v986 = vpack.c.b16 %v956, %v954
        %v987 = vpack.c.b16 %v959, %v957
        %v988 = vpack.c.b16 %v960, %v958
        %v989 = vpack.c.b16 %v963, %v961
        %v990 = vpack.c.b16 %v964, %v962
        %v991 = vpack.c.b16 %v967, %v965
        %v992 = vpack.c.b16 %v968, %v966
        %v993 = vpack.c.b16 %v971, %v969
        %v994 = vpack.c.b16 %v972, %v970
        %v995 = vpack.c.b16 %v975, %v973
        %v996 = vpack.c.b16 %v976, %v974
        %v997 = vpack.c.b16 %v979, %v977
        %v998 = vpack.c.b16 %v980, %v978
        %v999 = vpack.c.b16 %v983, %v981
        %v1000 = vpack.c.b16 %v984, %v982
        %1017 = vmatprep.subr.bf16.mxu0 %v1000
        %1018 = vmatpush1.bf16.msra.mxu0 %v999
        %1019 = vmatprep.subr.bf16.mxu0 %v998
        %1020 = vmatpush1.bf16.msra.mxu0 %v997
        %1021 = vmatprep.subr.bf16.mxu0 %v996
        %1022 = vmatpush1.bf16.msra.mxu0 %v995
        %1023 = vmatprep.subr.bf16.mxu0 %v994
        %1024 = vmatpush1.bf16.msra.mxu0 %v993
        %1025 = vmatprep.subr.bf16.mxu0 %v992
        %1026 = vmatpush1.bf16.msra.mxu0 %v991
        %1027 = vmatprep.subr.bf16.mxu0 %v990
        %1028 = vmatpush1.bf16.msra.mxu0 %v989
        %1029 = vmatprep.subr.bf16.mxu0 %v988
        %1030 = vmatpush1.bf16.msra.mxu0 %v987
        %1031 = vmatprep.subr.bf16.mxu0 %v986
        %1032 = vmatpush1.bf16.msra.mxu0 %v985
        %1033 = vmatprep.subr.bf16.mxu0 0
        %1034 = vmatpush2.bf16.msra.mxu0 0
        %1035 = vmatprep.subr.bf16.mxu0 0
        %1036 = vmatpush2.bf16.msra.mxu0 0
        %1037 = vmatprep.subr.bf16.mxu0 0
        %1038 = vmatpush2.bf16.msra.mxu0 0
        %1039 = vmatprep.subr.bf16.mxu0 0
        %1040 = vmatpush2.bf16.msra.mxu0 0
        %1041 = vmatprep.subr.bf16.mxu0 0
        %1042 = vmatpush2.bf16.msra.mxu0 0
        %1043 = vmatprep.subr.bf16.mxu0 0
        %1044 = vmatpush2.bf16.msra.mxu0 0
        %1045 = vmatprep.subr.bf16.mxu0 0
        %1046 = vmatpush2.bf16.msra.mxu0 0
        %1047 = vmatprep.subr.bf16.mxu0 0
        %1048 = vmatpush2.bf16.msra.mxu0 0
        %1049 = vmatprep.mubr.bf16.mxu0 0
        %1050 = vmatmul.mubr.bf16.gmra.mxu0 %v908
        %v1051 = vpop.f32.mrf.mxu0
        %v1052 = vadd.f32 %v930, %v1051
        %v1053 = vpop.f32.mrf.mxu0
        %v1054 = vadd.f32 %v934, %v1053
        %v1055 = vpop.f32.mrf.mxu0
        %v1056 = vpop.f32.mrf.mxu0
        %1057 = vdwg.mxu0
        %v1058 = vmax.f32 %v1052, 0.0
        %v1059 = vmax.f32 %v1054, 0.0
        %1060 = vst [vmem:[#allocation2 + $0x90] sm:$0xff] %v1058
        %1061 = vst [vmem:[#allocation2 + $0x98] sm:$0xff] %v1059
        %p1062 = scmp.eq.s32.totalorder %s36, 0
        // Predicated region
        $region81: #{tpu_custom_call.1} parent=55 // pred_check
          %p1063 = pneg %p1062
        $region82: #{tpu_custom_call.1} parent=55 // pred_check_branch
          %1065 = sbr.rel (%p1063) target = $region84
        $region83: #{tpu_custom_call.1} parent=55 // pred_region
          %1066 = vst [vmem:[#allocation2] sm:$0xff] 0.0
          %1067 = vst [vmem:[#allocation2 + $0x8] sm:$0xff] 0.0
          %1068 = vst [vmem:[#allocation2 + $0x90] sm:$0xff] 0.0
          %1069 = vst [vmem:[#allocation2 + $0x98] sm:$0xff] 0.0
        $region84: #{tpu_custom_call.1} parent=55 // pred_fallthru
          _
        %v1070 = vlaneseq
        %v1071 = vshrl.u32 %v1070, 7
        %v1072 = vadd.s32 %v1071, 8
        %v1073 = vadd.s32 %v1071, 16
        %v1074 = vadd.s32 %v1071, 24
        %v1075 = vadd.s32 %v1071, 32
        %v1076 = vadd.s32 %v1071, 40
        %v1077 = vadd.s32 %v1071, 48
        %v1078 = vadd.s32 %v1071, 56
        %vm1079 = vcmp.lt.s32.totalorder %v1071, 0
        %v1080 = vsub.s32 0, %v1071
        %v1081 = vsel %vm1079, %v1080, %v1071
        %v1082 = vshrl.u32 %v1081, 3
        %v1083 = vand.u32 %v1081, 7
        %v1084 = vsub.s32 0, %v1083
        %v1085 = vsel %vm1079, %v1084, %v1083
        %vm1086 = vcmp.lt.s32.totalorder %v1072, 0
        %v1087 = vsub.s32 0, %v1072
        %v1088 = vsel %vm1086, %v1087, %v1072
        %v1089 = vshrl.u32 %v1088, 3
        %v1090 = vand.u32 %v1088, 7
        %v1091 = vsub.s32 0, %v1090
        %v1092 = vsel %vm1086, %v1091, %v1090
        %vm1093 = vcmp.lt.s32.totalorder %v1073, 0
        %v1094 = vsub.s32 0, %v1073
        %v1095 = vsel %vm1093, %v1094, %v1073
        %v1096 = vshrl.u32 %v1095, 3
        %v1097 = vand.u32 %v1095, 7
        %v1098 = vsub.s32 0, %v1097
        %v1099 = vsel %vm1093, %v1098, %v1097
        %vm1100 = vcmp.lt.s32.totalorder %v1074, 0
        %v1101 = vsub.s32 0, %v1074
        %v1102 = vsel %vm1100, %v1101, %v1074
        %v1103 = vshrl.u32 %v1102, 3
        %v1104 = vand.u32 %v1102, 7
        %v1105 = vsub.s32 0, %v1104
        %v1106 = vsel %vm1100, %v1105, %v1104
        %vm1107 = vcmp.lt.s32.totalorder %v1075, 0
        %v1108 = vsub.s32 0, %v1075
        %v1109 = vsel %vm1107, %v1108, %v1075
        %v1110 = vshrl.u32 %v1109, 3
        %v1111 = vand.u32 %v1109, 7
        %v1112 = vsub.s32 0, %v1111
        %v1113 = vsel %vm1107, %v1112, %v1111
        %vm1114 = vcmp.lt.s32.totalorder %v1076, 0
        %v1115 = vsub.s32 0, %v1076
        %v1116 = vsel %vm1114, %v1115, %v1076
        %v1117 = vshrl.u32 %v1116, 3
        %v1118 = vand.u32 %v1116, 7
        %v1119 = vsub.s32 0, %v1118
        %v1120 = vsel %vm1114, %v1119, %v1118
        %vm1121 = vcmp.lt.s32.totalorder %v1077, 0
        %v1122 = vsub.s32 0, %v1077
        %v1123 = vsel %vm1121, %v1122, %v1077
        %v1124 = vshrl.u32 %v1123, 3
        %v1125 = vand.u32 %v1123, 7
        %v1126 = vsub.s32 0, %v1125
        %v1127 = vsel %vm1121, %v1126, %v1125
        %vm1128 = vcmp.lt.s32.totalorder %v1078, 0
        %v1129 = vsub.s32 0, %v1078
        %v1130 = vsel %vm1128, %v1129, %v1078
        %v1131 = vshrl.u32 %v1130, 3
        %v1132 = vand.u32 %v1130, 7
        %v1133 = vsub.s32 0, %v1132
        %v1134 = vsel %vm1128, %v1133, %v1132
        %vm1135 = vcmp.ne.s32.totalorder %v1085, 0
        %vm1136 = vcmp.ne.s32.totalorder %v1092, 0
        %vm1137 = vcmp.ne.s32.totalorder %v1099, 0
        %vm1138 = vcmp.ne.s32.totalorder %v1106, 0
        %vm1139 = vcmp.ne.s32.totalorder %v1113, 0
        %vm1140 = vcmp.ne.s32.totalorder %v1120, 0
        %vm1141 = vcmp.ne.s32.totalorder %v1127, 0
        %vm1142 = vcmp.ne.s32.totalorder %v1134, 0
        %vm1143 = vcmp.lt.s32.totalorder %v1085, 0
        %vm1144 = vcmp.lt.s32.totalorder %v1092, 0
        %vm1145 = vcmp.lt.s32.totalorder %v1099, 0
        %vm1146 = vcmp.lt.s32.totalorder %v1106, 0
        %vm1147 = vcmp.lt.s32.totalorder %v1113, 0
        %vm1148 = vcmp.lt.s32.totalorder %v1120, 0
        %vm1149 = vcmp.lt.s32.totalorder %v1127, 0
        %vm1150 = vcmp.lt.s32.totalorder %v1134, 0
        %vm1151 = vmand %vm1143, %vm1135
        %vm1152 = vmand %vm1144, %vm1136
        %vm1153 = vmand %vm1145, %vm1137
        %vm1154 = vmand %vm1146, %vm1138
        %vm1155 = vmand %vm1147, %vm1139
        %vm1156 = vmand %vm1148, %vm1140
        %vm1157 = vmand %vm1149, %vm1141
        %vm1158 = vmand %vm1150, %vm1142
        %v1159 = vadd.s32 %v1085, 8
        %v1160 = vadd.s32 %v1092, 8
        %v1161 = vadd.s32 %v1099, 8
        %v1162 = vadd.s32 %v1106, 8
        %v1163 = vadd.s32 %v1113, 8
        %v1164 = vadd.s32 %v1120, 8
        %v1165 = vadd.s32 %v1127, 8
        %v1166 = vadd.s32 %v1134, 8
        %v1167 = vsel %vm1151, %v1159, %v1085
        %v1168 = vsel %vm1152, %v1160, %v1092
        %v1169 = vsel %vm1153, %v1161, %v1099
        %v1170 = vsel %vm1154, %v1162, %v1106
        %v1171 = vsel %vm1155, %v1163, %v1113
        %v1172 = vsel %vm1156, %v1164, %v1120
        %v1173 = vsel %vm1157, %v1165, %v1127
        %v1174 = vsel %vm1158, %v1166, %v1134
        %v1175 = vld [vmem:[#allocation2] sm:$0xff]
        %v1176 = vld [vmem:[#allocation2 + $0x8] sm:$0xff]
        %v1177 = vld [vmem:[#allocation2 + $0x10] sm:$0xff]
        %v1178 = vld [vmem:[#allocation2 + $0x18] sm:$0xff]
        %v1179 = vld [vmem:[#allocation2 + $0x20] sm:$0xff]
        %v1180 = vld [vmem:[#allocation2 + $0x28] sm:$0xff]
        %v1181 = vld [vmem:[#allocation2 + $0x30] sm:$0xff]
        %v1182 = vld [vmem:[#allocation2 + $0x38] sm:$0xff]
        %v1183 = vld [vmem:[#allocation2 + $0x40] sm:$0xff]
        %v1184 = vld [vmem:[#allocation2 + $0x48] sm:$0xff]
        %v1185 = vld [vmem:[#allocation2 + $0x50] sm:$0xff]
        %v1186 = vld [vmem:[#allocation2 + $0x58] sm:$0xff]
        %v1187 = vld [vmem:[#allocation2 + $0x60] sm:$0xff]
        %v1188 = vld [vmem:[#allocation2 + $0x68] sm:$0xff]
        %v1189 = vld [vmem:[#allocation2 + $0x70] sm:$0xff]
        %v1190 = vld [vmem:[#allocation2 + $0x78] sm:$0xff]
        %v1191 = vpack.c.bf16 %v1177, %v1175
        %v1192 = vpack.c.bf16 %v1178, %v1176
        %v1193 = vpack.c.bf16 %v1181, %v1179
        %v1194 = vpack.c.bf16 %v1182, %v1180
        %v1195 = vpack.c.bf16 %v1185, %v1183
        %v1196 = vpack.c.bf16 %v1186, %v1184
        %v1197 = vpack.c.bf16 %v1189, %v1187
        %v1198 = vpack.c.bf16 %v1190, %v1188
        %v1199 = vld [vmem:[#allocation12] sm:$0xff]
        %v1200 = vld [vmem:[#allocation12 + $0x8] sm:$0xf]
        %v1201 = vld [vmem:[#allocation12 + $0xc] sm:$0xff]
        %v1202 = vld [vmem:[#allocation12 + $0x14] sm:$0xf]
        %v1203 = vld [vmem:[#allocation12 + $0x18] sm:$0xff]
        %v1204 = vld [vmem:[#allocation12 + $0x20] sm:$0xf]
        %v1205 = vld [vmem:[#allocation12 + $0x24] sm:$0xff]
        %v1206 = vld [vmem:[#allocation12 + $0x2c] sm:$0xf]
        %v1207 = vld [vmem:[#allocation12 + $0x30] sm:$0xff]
        %v1208 = vld [vmem:[#allocation12 + $0x38] sm:$0xf]
        %v1209 = vld [vmem:[#allocation12 + $0x3c] sm:$0xff]
        %v1210 = vld [vmem:[#allocation12 + $0x44] sm:$0xf]
        %v1211 = vld [vmem:[#allocation12 + $0x48] sm:$0xff]
        %v1212 = vld [vmem:[#allocation12 + $0x50] sm:$0xf]
        %v1213 = vld [vmem:[#allocation12 + $0x54] sm:$0xff]
        %v1214 = vld [vmem:[#allocation12 + $0x5c] sm:$0xf]
        %v1215 = vld [vmem:[#allocation12 + $0x60] sm:$0xff]
        %v1216 = vld [vmem:[#allocation12 + $0x68] sm:$0xf]
        %v1217 = vld [vmem:[#allocation12 + $0x6c] sm:$0xff]
        %v1218 = vld [vmem:[#allocation12 + $0x74] sm:$0xf]
        %v1219 = vld [vmem:[#allocation12 + $0x78] sm:$0xff]
        %v1220 = vld [vmem:[#allocation12 + $0x80] sm:$0xf]
        %v1221 = vld [vmem:[#allocation12 + $0x84] sm:$0xff]
        %v1222 = vld [vmem:[#allocation12 + $0x8c] sm:$0xf]
        %v1223 = vld [vmem:[#allocation12 + $0x90] sm:$0xff]
        %v1224 = vld [vmem:[#allocation12 + $0x98] sm:$0xf]
        %v1225 = vld [vmem:[#allocation12 + $0x9c] sm:$0xff]
        %v1226 = vld [vmem:[#allocation12 + $0xa4] sm:$0xf]
        %v1227 = vld [vmem:[#allocation12 + $0xa8] sm:$0xff]
        %v1228 = vld [vmem:[#allocation12 + $0xb0] sm:$0xf]
        %v1229 = vld [vmem:[#allocation12 + $0xb4] sm:$0xff]
        %v1230 = vld [vmem:[#allocation12 + $0xbc] sm:$0xf]
        %v1231 = vld [vmem:[#allocation12 + $0xc0] sm:$0xff]
        %v1232 = vld [vmem:[#allocation12 + $0xc8] sm:$0xf]
        %v1233 = vld [vmem:[#allocation12 + $0xcc] sm:$0xff]
        %v1234 = vld [vmem:[#allocation12 + $0xd4] sm:$0xf]
        %v1235 = vld [vmem:[#allocation12 + $0xd8] sm:$0xff]
        %v1236 = vld [vmem:[#allocation12 + $0xe0] sm:$0xf]
        %v1237 = vld [vmem:[#allocation12 + $0xe4] sm:$0xff]
        %v1238 = vld [vmem:[#allocation12 + $0xec] sm:$0xf]
        %v1239 = vld [vmem:[#allocation12 + $0xf0] sm:$0xff]
        %v1240 = vld [vmem:[#allocation12 + $0xf8] sm:$0xf]
        %v1241 = vld [vmem:[#allocation12 + $0xfc] sm:$0xff]
        %v1242 = vld [vmem:[#allocation12 + $0x104] sm:$0xf]
        %v1243 = vld [vmem:[#allocation12 + $0x108] sm:$0xff]
        %v1244 = vld [vmem:[#allocation12 + $0x110] sm:$0xf]
        %v1245 = vld [vmem:[#allocation12 + $0x114] sm:$0xff]
        %v1246 = vld [vmem:[#allocation12 + $0x11c] sm:$0xf]
        %v1247 = vld [vmem:[#allocation12 + $0x120] sm:$0xff]
        %v1248 = vld [vmem:[#allocation12 + $0x128] sm:$0xf]
        %v1249 = vld [vmem:[#allocation12 + $0x12c] sm:$0xff]
        %v1250 = vld [vmem:[#allocation12 + $0x134] sm:$0xf]
        %v1251 = vld [vmem:[#allocation12 + $0x138] sm:$0xff]
        %v1252 = vld [vmem:[#allocation12 + $0x140] sm:$0xf]
        %v1253 = vld [vmem:[#allocation12 + $0x144] sm:$0xff]
        %v1254 = vld [vmem:[#allocation12 + $0x14c] sm:$0xf]
        %v1255 = vld [vmem:[#allocation12 + $0x150] sm:$0xff]
        %v1256 = vld [vmem:[#allocation12 + $0x158] sm:$0xf]
        %v1257 = vld [vmem:[#allocation12 + $0x15c] sm:$0xff]
        %v1258 = vld [vmem:[#allocation12 + $0x164] sm:$0xf]
        %v1259 = vld [vmem:[#allocation12 + $0x168] sm:$0xff]
        %v1260 = vld [vmem:[#allocation12 + $0x170] sm:$0xf]
        %v1261 = vld [vmem:[#allocation12 + $0x174] sm:$0xff]
        %v1262 = vld [vmem:[#allocation12 + $0x17c] sm:$0xf]
        %v1327 = vunpack.c.l.b16 %v1199
        %v1328 = vunpack.c.h.b16 %v1199
        %v1329 = vunpack.c.l.b16 %v1200
        %v1330 = vunpack.c.l.b16 %v1201
        %v1331 = vunpack.c.h.b16 %v1201
        %v1332 = vunpack.c.l.b16 %v1202
        %v1333 = vunpack.c.l.b16 %v1203
        %v1334 = vunpack.c.h.b16 %v1203
        %v1335 = vunpack.c.l.b16 %v1204
        %v1336 = vunpack.c.l.b16 %v1205
        %v1337 = vunpack.c.h.b16 %v1205
        %v1338 = vunpack.c.l.b16 %v1206
        %v1339 = vunpack.c.l.b16 %v1207
        %v1340 = vunpack.c.h.b16 %v1207
        %v1341 = vunpack.c.l.b16 %v1208
        %v1342 = vunpack.c.l.b16 %v1209
        %v1343 = vunpack.c.h.b16 %v1209
        %v1344 = vunpack.c.l.b16 %v1210
        %v1345 = vunpack.c.l.b16 %v1211
        %v1346 = vunpack.c.h.b16 %v1211
        %v1347 = vunpack.c.l.b16 %v1212
        %v1348 = vunpack.c.l.b16 %v1213
        %v1349 = vunpack.c.h.b16 %v1213
        %v1350 = vunpack.c.l.b16 %v1214
        %v1351 = vunpack.c.l.b16 %v1215
        %v1352 = vunpack.c.h.b16 %v1215
        %v1353 = vunpack.c.l.b16 %v1216
        %v1354 = vunpack.c.l.b16 %v1217
        %v1355 = vunpack.c.h.b16 %v1217
        %v1356 = vunpack.c.l.b16 %v1218
        %v1357 = vunpack.c.l.b16 %v1219
        %v1358 = vunpack.c.h.b16 %v1219
        %v1359 = vunpack.c.l.b16 %v1220
        %v1360 = vunpack.c.l.b16 %v1221
        %v1361 = vunpack.c.h.b16 %v1221
        %v1362 = vunpack.c.l.b16 %v1222
        %v1363 = vunpack.c.l.b16 %v1223
        %v1364 = vunpack.c.h.b16 %v1223
        %v1365 = vunpack.c.l.b16 %v1224
        %v1366 = vunpack.c.l.b16 %v1225
        %v1367 = vunpack.c.h.b16 %v1225
        %v1368 = vunpack.c.l.b16 %v1226
        %v1369 = vunpack.c.l.b16 %v1227
        %v1370 = vunpack.c.h.b16 %v1227
        %v1371 = vunpack.c.l.b16 %v1228
        %v1372 = vunpack.c.l.b16 %v1229
        %v1373 = vunpack.c.h.b16 %v1229
        %v1374 = vunpack.c.l.b16 %v1230
        %v1375 = vunpack.c.l.b16 %v1231
        %v1376 = vunpack.c.h.b16 %v1231
        %v1377 = vunpack.c.l.b16 %v1232
        %v1378 = vunpack.c.l.b16 %v1233
        %v1379 = vunpack.c.h.b16 %v1233
        %v1380 = vunpack.c.l.b16 %v1234
        %v1381 = vunpack.c.l.b16 %v1235
        %v1382 = vunpack.c.h.b16 %v1235
        %v1383 = vunpack.c.l.b16 %v1236
        %v1384 = vunpack.c.l.b16 %v1237
        %v1385 = vunpack.c.h.b16 %v1237
        %v1386 = vunpack.c.l.b16 %v1238
        %v1387 = vunpack.c.l.b16 %v1239
        %v1388 = vunpack.c.h.b16 %v1239
        %v1389 = vunpack.c.l.b16 %v1240
        %v1390 = vunpack.c.l.b16 %v1241
        %v1391 = vunpack.c.h.b16 %v1241
        %v1392 = vunpack.c.l.b16 %v1242
        %v1393 = vunpack.c.l.b16 %v1243
        %v1394 = vunpack.c.h.b16 %v1243
        %v1395 = vunpack.c.l.b16 %v1244
        %v1396 = vunpack.c.l.b16 %v1245
        %v1397 = vunpack.c.h.b16 %v1245
        %v1398 = vunpack.c.l.b16 %v1246
        %v1399 = vunpack.c.l.b16 %v1247
        %v1400 = vunpack.c.h.b16 %v1247
        %v1401 = vunpack.c.l.b16 %v1248
        %v1402 = vunpack.c.l.b16 %v1249
        %v1403 = vunpack.c.h.b16 %v1249
        %v1404 = vunpack.c.l.b16 %v1250
        %v1405 = vunpack.c.l.b16 %v1251
        %v1406 = vunpack.c.h.b16 %v1251
        %v1407 = vunpack.c.l.b16 %v1252
        %v1408 = vunpack.c.l.b16 %v1253
        %v1409 = vunpack.c.h.b16 %v1253
        %v1410 = vunpack.c.l.b16 %v1254
        %v1411 = vunpack.c.l.b16 %v1255
        %v1412 = vunpack.c.h.b16 %v1255
        %v1413 = vunpack.c.l.b16 %v1256
        %v1414 = vunpack.c.l.b16 %v1257
        %v1415 = vunpack.c.h.b16 %v1257
        %v1416 = vunpack.c.l.b16 %v1258
        %v1417 = vunpack.c.l.b16 %v1259
        %v1418 = vunpack.c.h.b16 %v1259
        %v1419 = vunpack.c.l.b16 %v1260
        %v1420 = vunpack.c.l.b16 %v1261
        %v1421 = vunpack.c.h.b16 %v1261
        %v1422 = vunpack.c.l.b16 %v1262
        %v1423 = vpack.c.b16 %v1330, %v1327
        %v1424 = vpack.c.b16 %v1331, %v1328
        %v1425 = vpack.c.b16 %v1332, %v1329
        %v1426 = vpack.c.b16 %v1336, %v1333
        %v1427 = vpack.c.b16 %v1337, %v1334
        %v1428 = vpack.c.b16 %v1338, %v1335
        %v1429 = vpack.c.b16 %v1342, %v1339
        %v1430 = vpack.c.b16 %v1343, %v1340
        %v1431 = vpack.c.b16 %v1344, %v1341
        %v1432 = vpack.c.b16 %v1348, %v1345
        %v1433 = vpack.c.b16 %v1349, %v1346
        %v1434 = vpack.c.b16 %v1350, %v1347
        %v1435 = vpack.c.b16 %v1354, %v1351
        %v1436 = vpack.c.b16 %v1355, %v1352
        %v1437 = vpack.c.b16 %v1356, %v1353
        %v1438 = vpack.c.b16 %v1360, %v1357
        %v1439 = vpack.c.b16 %v1361, %v1358
        %v1440 = vpack.c.b16 %v1362, %v1359
        %v1441 = vpack.c.b16 %v1366, %v1363
        %v1442 = vpack.c.b16 %v1367, %v1364
        %v1443 = vpack.c.b16 %v1368, %v1365
        %v1444 = vpack.c.b16 %v1372, %v1369
        %v1445 = vpack.c.b16 %v1373, %v1370
        %v1446 = vpack.c.b16 %v1374, %v1371
        %v1447 = vpack.c.b16 %v1378, %v1375
        %v1448 = vpack.c.b16 %v1379, %v1376
        %v1449 = vpack.c.b16 %v1380, %v1377
        %v1450 = vpack.c.b16 %v1384, %v1381
        %v1451 = vpack.c.b16 %v1385, %v1382
        %v1452 = vpack.c.b16 %v1386, %v1383
        %v1453 = vpack.c.b16 %v1390, %v1387
        %v1454 = vpack.c.b16 %v1391, %v1388
        %v1455 = vpack.c.b16 %v1392, %v1389
        %v1456 = vpack.c.b16 %v1396, %v1393
        %v1457 = vpack.c.b16 %v1397, %v1394
        %v1458 = vpack.c.b16 %v1398, %v1395
        %v1459 = vpack.c.b16 %v1402, %v1399
        %v1460 = vpack.c.b16 %v1403, %v1400
        %v1461 = vpack.c.b16 %v1404, %v1401
        %v1462 = vpack.c.b16 %v1408, %v1405
        %v1463 = vpack.c.b16 %v1409, %v1406
        %v1464 = vpack.c.b16 %v1410, %v1407
        %v1465 = vpack.c.b16 %v1414, %v1411
        %v1466 = vpack.c.b16 %v1415, %v1412
        %v1467 = vpack.c.b16 %v1416, %v1413
        %v1468 = vpack.c.b16 %v1420, %v1417
        %v1469 = vpack.c.b16 %v1421, %v1418
        %v1470 = vpack.c.b16 %v1422, %v1419
        %1519 = vmatprep.subr.bf16.mxu0 %v1445
        %1520 = vmatpush1.bf16.msra.mxu0 %v1444
        %1521 = vmatprep.subr.bf16.mxu0 %v1442
        %1522 = vmatpush1.bf16.msra.mxu0 %v1441
        %1523 = vmatprep.subr.bf16.mxu0 %v1439
        %1524 = vmatpush1.bf16.msra.mxu0 %v1438
        %1525 = vmatprep.subr.bf16.mxu0 %v1436
        %1526 = vmatpush1.bf16.msra.mxu0 %v1435
        %1527 = vmatprep.subr.bf16.mxu0 %v1433
        %1528 = vmatpush1.bf16.msra.mxu0 %v1432
        %1529 = vmatprep.subr.bf16.mxu0 %v1430
        %1530 = vmatpush1.bf16.msra.mxu0 %v1429
        %1531 = vmatprep.subr.bf16.mxu0 %v1427
        %1532 = vmatpush1.bf16.msra.mxu0 %v1426
        %1533 = vmatprep.subr.bf16.mxu0 %v1424
        %1534 = vmatpush1.bf16.msra.mxu0 %v1423
        %1535 = vmatprep.subr.bf16.mxu0 %v1469
        %1536 = vmatpush2.bf16.msra.mxu0 %v1468
        %1537 = vmatprep.subr.bf16.mxu0 %v1466
        %1538 = vmatpush2.bf16.msra.mxu0 %v1465
        %1539 = vmatprep.subr.bf16.mxu0 %v1463
        %1540 = vmatpush2.bf16.msra.mxu0 %v1462
        %1541 = vmatprep.subr.bf16.mxu0 %v1460
        %1542 = vmatpush2.bf16.msra.mxu0 %v1459
        %1543 = vmatprep.subr.bf16.mxu0 %v1457
        %1544 = vmatpush2.bf16.msra.mxu0 %v1456
        %1545 = vmatprep.subr.bf16.mxu0 %v1454
        %1546 = vmatpush2.bf16.msra.mxu0 %v1453
        %1547 = vmatprep.subr.bf16.mxu0 %v1451
        %1548 = vmatpush2.bf16.msra.mxu0 %v1450
        %1549 = vmatprep.subr.bf16.mxu0 %v1448
        %1550 = vmatpush2.bf16.msra.mxu0 %v1447
        %1551 = vmatprep.mubr.bf16.mxu0 %v1192
        %1552 = vmatmul.mubr.bf16.gmra.mxu0 %v1191
        %v1553 = vpop.f32.mrf.mxu0
        %v1554 = vadd.f32 0.0, %v1553
        %v1555 = vpop.f32.mrf.mxu0
        %v1556 = vadd.f32 0.0, %v1555
        %v1557 = vpop.f32.mrf.mxu0
        %v1558 = vadd.f32 0.0, %v1557
        %v1559 = vpop.f32.mrf.mxu0
        %v1560 = vadd.f32 0.0, %v1559
        %1561 = vmatprep.mubr.bf16.mxu0 %v1194
        %1562 = vmatmul.mubr.bf16.gmra.mxu0 %v1193
        %v1563 = vpop.f32.mrf.mxu0
        %v1564 = vadd.f32 0.0, %v1563
        %v1565 = vpop.f32.mrf.mxu0
        %v1566 = vadd.f32 0.0, %v1565
        %v1567 = vpop.f32.mrf.mxu0
        %v1568 = vadd.f32 0.0, %v1567
        %v1569 = vpop.f32.mrf.mxu0
        %v1570 = vadd.f32 0.0, %v1569
        %1571 = vmatprep.mubr.bf16.mxu0 %v1196
        %1572 = vmatmul.mubr.bf16.gmra.mxu0 %v1195
        %v1573 = vpop.f32.mrf.mxu0
        %v1574 = vadd.f32 0.0, %v1573
        %v1575 = vpop.f32.mrf.mxu0
        %v1576 = vadd.f32 0.0, %v1575
        %v1577 = vpop.f32.mrf.mxu0
        %v1578 = vadd.f32 0.0, %v1577
        %v1579 = vpop.f32.mrf.mxu0
        %v1580 = vadd.f32 0.0, %v1579
        %1581 = vmatprep.mubr.bf16.mxu0 %v1198
        %1582 = vmatmul.mubr.bf16.gmra.mxu0 %v1197
        %v1583 = vpop.f32.mrf.mxu0
        %v1584 = vadd.f32 0.0, %v1583
        %v1585 = vpop.f32.mrf.mxu0
        %v1586 = vadd.f32 0.0, %v1585
        %v1587 = vpop.f32.mrf.mxu0
        %v1588 = vadd.f32 0.0, %v1587
        %v1589 = vpop.f32.mrf.mxu0
        %v1590 = vadd.f32 0.0, %v1589
        %1591 = vdwg.mxu0
        %1592 = vmatprep.subr.bf16.mxu0 0
        %1593 = vmatpush1.bf16.msra.mxu0 %v1446
        %1594 = vmatprep.subr.bf16.mxu0 0
        %1595 = vmatpush1.bf16.msra.mxu0 %v1443
        %1596 = vmatprep.subr.bf16.mxu0 0
        %1597 = vmatpush1.bf16.msra.mxu0 %v1440
        %1598 = vmatprep.subr.bf16.mxu0 0
        %1599 = vmatpush1.bf16.msra.mxu0 %v1437
        %1600 = vmatprep.subr.bf16.mxu0 0
        %1601 = vmatpush1.bf16.msra.mxu0 %v1434
        %1602 = vmatprep.subr.bf16.mxu0 0
        %1603 = vmatpush1.bf16.msra.mxu0 %v1431
        %1604 = vmatprep.subr.bf16.mxu0 0
        %1605 = vmatpush1.bf16.msra.mxu0 %v1428
        %1606 = vmatprep.subr.bf16.mxu0 0
        %1607 = vmatpush1.bf16.msra.mxu0 %v1425
        %1608 = vmatprep.subr.bf16.mxu0 0
        %1609 = vmatpush2.bf16.msra.mxu0 %v1470
        %1610 = vmatprep.subr.bf16.mxu0 0
        %1611 = vmatpush2.bf16.msra.mxu0 %v1467
        %1612 = vmatprep.subr.bf16.mxu0 0
        %1613 = vmatpush2.bf16.msra.mxu0 %v1464
        %1614 = vmatprep.subr.bf16.mxu0 0
        %1615 = vmatpush2.bf16.msra.mxu0 %v1461
        %1616 = vmatprep.subr.bf16.mxu0 0
        %1617 = vmatpush2.bf16.msra.mxu0 %v1458
        %1618 = vmatprep.subr.bf16.mxu0 0
        %1619 = vmatpush2.bf16.msra.mxu0 %v1455
        %1620 = vmatprep.subr.bf16.mxu0 0
        %1621 = vmatpush2.bf16.msra.mxu0 %v1452
        %1622 = vmatprep.subr.bf16.mxu0 0
        %1623 = vmatpush2.bf16.msra.mxu0 %v1449
        %1624 = vmatprep.mubr.bf16.mxu0 %v1192
        %1625 = vmatmul.mubr.bf16.gmra.mxu0 %v1191
        %v1626 = vpop.f32.mrf.mxu0
        %v1627 = vadd.f32 0.0, %v1626
        %v1628 = vpop.f32.mrf.mxu0
        %v1629 = vpop.f32.mrf.mxu0
        %v1630 = vadd.f32 0.0, %v1629
        %v1631 = vpop.f32.mrf.mxu0
        %1632 = vmatprep.mubr.bf16.mxu0 %v1194
        %1633 = vmatmul.mubr.bf16.gmra.mxu0 %v1193
        %v1634 = vpop.f32.mrf.mxu0
        %v1635 = vadd.f32 0.0, %v1634
        %v1636 = vpop.f32.mrf.mxu0
        %v1637 = vpop.f32.mrf.mxu0
        %v1638 = vadd.f32 0.0, %v1637
        %v1639 = vpop.f32.mrf.mxu0
        %1640 = vmatprep.mubr.bf16.mxu0 %v1196
        %1641 = vmatmul.mubr.bf16.gmra.mxu0 %v1195
        %v1642 = vpop.f32.mrf.mxu0
        %v1643 = vadd.f32 0.0, %v1642
        %v1644 = vpop.f32.mrf.mxu0
        %v1645 = vpop.f32.mrf.mxu0
        %v1646 = vadd.f32 0.0, %v1645
        %v1647 = vpop.f32.mrf.mxu0
        %1648 = vmatprep.mubr.bf16.mxu0 %v1198
        %1649 = vmatmul.mubr.bf16.gmra.mxu0 %v1197
        %v1650 = vpop.f32.mrf.mxu0
        %v1651 = vadd.f32 0.0, %v1650
        %v1652 = vpop.f32.mrf.mxu0
        %v1653 = vpop.f32.mrf.mxu0
        %v1654 = vadd.f32 0.0, %v1653
        %v1655 = vpop.f32.mrf.mxu0
        %1656 = vdwg.mxu0
        %vm1657 = vcmp.ge.s32.totalorder %v1167, 1
        %vm1658 = vcmp.ge.s32.totalorder %v1168, 1
        %vm1659 = vcmp.ge.s32.totalorder %v1169, 1
        %vm1660 = vcmp.ge.s32.totalorder %v1170, 1
        %vm1661 = vcmp.ge.s32.totalorder %v1171, 1
        %vm1662 = vcmp.ge.s32.totalorder %v1172, 1
        %vm1663 = vcmp.ge.s32.totalorder %v1173, 1
        %vm1664 = vcmp.ge.s32.totalorder %v1174, 1
        %v1665 = vrot.slane %v1554, 7
        %v1666 = vrot.slane %v1558, 7
        %v1667 = vrot.slane %v1564, 7
        %v1668 = vrot.slane %v1568, 7
        %v1669 = vrot.slane %v1574, 7
        %v1670 = vrot.slane %v1578, 7
        %v1671 = vrot.slane %v1584, 7
        %v1672 = vrot.slane %v1588, 7
        %vm1673 = vcmp.lt.s32.totalorder %v1071, 1
        %v1674 = vsel %vm1673, %v1671, %v1672
        %v1675 = vsel %vm1673, %v1670, %v1671
        %v1676 = vsel %vm1673, %v1669, %v1670
        %v1677 = vsel %vm1673, %v1668, %v1669
        %v1678 = vsel %vm1673, %v1667, %v1668
        %v1679 = vsel %vm1673, %v1666, %v1667
        %v1680 = vsel %vm1673, %v1665, %v1666
        %v1681 = vsel %vm1673, %v1672, %v1665
        %v1682 = vsel %vm1657, %v1681, 0.0
        %v1683 = vsel %vm1658, %v1680, 0.0
        %v1684 = vsel %vm1659, %v1679, 0.0
        %v1685 = vsel %vm1660, %v1678, 0.0
        %v1686 = vsel %vm1661, %v1677, 0.0
        %v1687 = vsel %vm1662, %v1676, 0.0
        %v1688 = vsel %vm1663, %v1675, 0.0
        %v1689 = vsel %vm1664, %v1674, 0.0
        %v1690 = vadd.f32 %v1556, %v1682
        %v1691 = vadd.f32 %v1560, %v1683
        %v1692 = vadd.f32 %v1566, %v1684
        %v1693 = vadd.f32 %v1570, %v1685
        %v1694 = vadd.f32 %v1576, %v1686
        %v1695 = vadd.f32 %v1580, %v1687
        %v1696 = vadd.f32 %v1586, %v1688
        %v1697 = vadd.f32 %v1590, %v1689
        %vm1698 = vcmp.le.s32.totalorder %v1167, 6
        %vm1699 = vcmp.le.s32.totalorder %v1168, 6
        %vm1700 = vcmp.le.s32.totalorder %v1169, 6
        %vm1701 = vcmp.le.s32.totalorder %v1170, 6
        %vm1702 = vcmp.le.s32.totalorder %v1171, 6
        %vm1703 = vcmp.le.s32.totalorder %v1172, 6
        %vm1704 = vcmp.le.s32.totalorder %v1173, 6
        %vm1705 = vcmp.le.s32.totalorder %v1174, 6
        %v1706 = vrot.slane %v1627, 1
        %v1707 = vrot.slane %v1630, 1
        %v1708 = vrot.slane %v1635, 1
        %v1709 = vrot.slane %v1638, 1
        %v1710 = vrot.slane %v1643, 1
        %v1711 = vrot.slane %v1646, 1
        %v1712 = vrot.slane %v1651, 1
        %v1713 = vrot.slane %v1654, 1
        %vm1714 = vcmp.lt.s32.totalorder %v1071, 7
        %v1715 = vsel %vm1714, %v1712, %v1713
        %v1716 = vsel %vm1714, %v1711, %v1712
        %v1717 = vsel %vm1714, %v1710, %v1711
        %v1718 = vsel %vm1714, %v1709, %v1710
        %v1719 = vsel %vm1714, %v1708, %v1709
        %v1720 = vsel %vm1714, %v1707, %v1708
        %v1721 = vsel %vm1714, %v1706, %v1707
        %v1722 = vsel %vm1714, %v1713, %v1706
        %v1723 = vsel %vm1698, %v1721, 0.0
        %v1724 = vsel %vm1699, %v1720, 0.0
        %v1725 = vsel %vm1700, %v1719, 0.0
        %v1726 = vsel %vm1701, %v1718, 0.0
        %v1727 = vsel %vm1702, %v1717, 0.0
        %v1728 = vsel %vm1703, %v1716, 0.0
        %v1729 = vsel %vm1704, %v1715, 0.0
        %v1730 = vsel %vm1705, %v1722, 0.0
        %v1731 = vadd.f32 %v1690, %v1723
        %v1732 = vadd.f32 %v1691, %v1724
        %v1733 = vadd.f32 %v1692, %v1725
        %v1734 = vadd.f32 %v1693, %v1726
        %v1735 = vadd.f32 %v1694, %v1727
        %v1736 = vadd.f32 %v1695, %v1728
        %v1737 = vadd.f32 %v1696, %v1729
        %v1738 = vadd.f32 %v1697, %v1730
        %1739 = vst [vmem:[#allocation3] sm:$0xff] %v1731
        %1740 = vst [vmem:[#allocation3 + $0x8] sm:$0xff] %v1732
        %1741 = vst [vmem:[#allocation3 + $0x10] sm:$0xff] %v1733
        %1742 = vst [vmem:[#allocation3 + $0x18] sm:$0xff] %v1734
        %1743 = vst [vmem:[#allocation3 + $0x20] sm:$0xff] %v1735
        %1744 = vst [vmem:[#allocation3 + $0x28] sm:$0xff] %v1736
        %1745 = vst [vmem:[#allocation3 + $0x30] sm:$0xff] %v1737
        %1746 = vst [vmem:[#allocation3 + $0x38] sm:$0xff] %v1738
        %v1747 = vld [vmem:[#allocation2 + $0x10] sm:$0xff]
        %v1748 = vld [vmem:[#allocation2 + $0x18] sm:$0xff]
        %v1749 = vld [vmem:[#allocation2 + $0x20] sm:$0xff]
        %v1750 = vld [vmem:[#allocation2 + $0x28] sm:$0xff]
        %v1751 = vld [vmem:[#allocation2 + $0x30] sm:$0xff]
        %v1752 = vld [vmem:[#allocation2 + $0x38] sm:$0xff]
        %v1753 = vld [vmem:[#allocation2 + $0x40] sm:$0xff]
        %v1754 = vld [vmem:[#allocation2 + $0x48] sm:$0xff]
        %v1755 = vld [vmem:[#allocation2 + $0x50] sm:$0xff]
        %v1756 = vld [vmem:[#allocation2 + $0x58] sm:$0xff]
        %v1757 = vld [vmem:[#allocation2 + $0x60] sm:$0xff]
        %v1758 = vld [vmem:[#allocation2 + $0x68] sm:$0xff]
        %v1759 = vld [vmem:[#allocation2 + $0x70] sm:$0xff]
        %v1760 = vld [vmem:[#allocation2 + $0x78] sm:$0xff]
        %v1761 = vld [vmem:[#allocation2 + $0x80] sm:$0xff]
        %v1762 = vld [vmem:[#allocation2 + $0x88] sm:$0xff]
        %v1763 = vpack.c.bf16 %v1749, %v1747
        %v1764 = vpack.c.bf16 %v1750, %v1748
        %v1765 = vpack.c.bf16 %v1753, %v1751
        %v1766 = vpack.c.bf16 %v1754, %v1752
        %v1767 = vpack.c.bf16 %v1757, %v1755
        %v1768 = vpack.c.bf16 %v1758, %v1756
        %v1769 = vpack.c.bf16 %v1761, %v1759
        %v1770 = vpack.c.bf16 %v1762, %v1760
        %s1771 = scalar_lea.vmem [#allocation12], 384
        %v1772 = vld [vmem:[%s1771] sm:$0xff]
        %v1773 = vld [vmem:[%s1771 + $0x8] sm:$0xf]
        %v1774 = vld [vmem:[%s1771 + $0xc] sm:$0xff]
        %v1775 = vld [vmem:[%s1771 + $0x14] sm:$0xf]
        %v1776 = vld [vmem:[%s1771 + $0x18] sm:$0xff]
        %v1777 = vld [vmem:[%s1771 + $0x20] sm:$0xf]
        %v1778 = vld [vmem:[%s1771 + $0x24] sm:$0xff]
        %v1779 = vld [vmem:[%s1771 + $0x2c] sm:$0xf]
        %v1780 = vld [vmem:[%s1771 + $0x30] sm:$0xff]
        %v1781 = vld [vmem:[%s1771 + $0x38] sm:$0xf]
        %v1782 = vld [vmem:[%s1771 + $0x3c] sm:$0xff]
        %v1783 = vld [vmem:[%s1771 + $0x44] sm:$0xf]
        %v1784 = vld [vmem:[%s1771 + $0x48] sm:$0xff]
        %v1785 = vld [vmem:[%s1771 + $0x50] sm:$0xf]
        %v1786 = vld [vmem:[%s1771 + $0x54] sm:$0xff]
        %v1787 = vld [vmem:[%s1771 + $0x5c] sm:$0xf]
        %v1788 = vld [vmem:[%s1771 + $0x60] sm:$0xff]
        %v1789 = vld [vmem:[%s1771 + $0x68] sm:$0xf]
        %v1790 = vld [vmem:[%s1771 + $0x6c] sm:$0xff]
        %v1791 = vld [vmem:[%s1771 + $0x74] sm:$0xf]
        %v1792 = vld [vmem:[%s1771 + $0x78] sm:$0xff]
        %v1793 = vld [vmem:[%s1771 + $0x80] sm:$0xf]
        %v1794 = vld [vmem:[%s1771 + $0x84] sm:$0xff]
        %v1795 = vld [vmem:[%s1771 + $0x8c] sm:$0xf]
        %v1796 = vld [vmem:[%s1771 + $0x90] sm:$0xff]
        %v1797 = vld [vmem:[%s1771 + $0x98] sm:$0xf]
        %v1798 = vld [vmem:[%s1771 + $0x9c] sm:$0xff]
        %v1799 = vld [vmem:[%s1771 + $0xa4] sm:$0xf]
        %v1800 = vld [vmem:[%s1771 + $0xa8] sm:$0xff]
        %v1801 = vld [vmem:[%s1771 + $0xb0] sm:$0xf]
        %v1802 = vld [vmem:[%s1771 + $0xb4] sm:$0xff]
        %v1803 = vld [vmem:[%s1771 + $0xbc] sm:$0xf]
        %v1804 = vld [vmem:[%s1771 + $0xc0] sm:$0xff]
        %v1805 = vld [vmem:[%s1771 + $0xc8] sm:$0xf]
        %v1806 = vld [vmem:[%s1771 + $0xcc] sm:$0xff]
        %v1807 = vld [vmem:[%s1771 + $0xd4] sm:$0xf]
        %v1808 = vld [vmem:[%s1771 + $0xd8] sm:$0xff]
        %v1809 = vld [vmem:[%s1771 + $0xe0] sm:$0xf]
        %v1810 = vld [vmem:[%s1771 + $0xe4] sm:$0xff]
        %v1811 = vld [vmem:[%s1771 + $0xec] sm:$0xf]
        %v1812 = vld [vmem:[%s1771 + $0xf0] sm:$0xff]
        %v1813 = vld [vmem:[%s1771 + $0xf8] sm:$0xf]
        %v1814 = vld [vmem:[%s1771 + $0xfc] sm:$0xff]
        %v1815 = vld [vmem:[%s1771 + $0x104] sm:$0xf]
        %v1816 = vld [vmem:[%s1771 + $0x108] sm:$0xff]
        %v1817 = vld [vmem:[%s1771 + $0x110] sm:$0xf]
        %v1818 = vld [vmem:[%s1771 + $0x114] sm:$0xff]
        %v1819 = vld [vmem:[%s1771 + $0x11c] sm:$0xf]
        %v1820 = vld [vmem:[%s1771 + $0x120] sm:$0xff]
        %v1821 = vld [vmem:[%s1771 + $0x128] sm:$0xf]
        %v1822 = vld [vmem:[%s1771 + $0x12c] sm:$0xff]
        %v1823 = vld [vmem:[%s1771 + $0x134] sm:$0xf]
        %v1824 = vld [vmem:[%s1771 + $0x138] sm:$0xff]
        %v1825 = vld [vmem:[%s1771 + $0x140] sm:$0xf]
        %v1826 = vld [vmem:[%s1771 + $0x144] sm:$0xff]
        %v1827 = vld [vmem:[%s1771 + $0x14c] sm:$0xf]
        %v1828 = vld [vmem:[%s1771 + $0x150] sm:$0xff]
        %v1829 = vld [vmem:[%s1771 + $0x158] sm:$0xf]
        %v1830 = vld [vmem:[%s1771 + $0x15c] sm:$0xff]
        %v1831 = vld [vmem:[%s1771 + $0x164] sm:$0xf]
        %v1832 = vld [vmem:[%s1771 + $0x168] sm:$0xff]
        %v1833 = vld [vmem:[%s1771 + $0x170] sm:$0xf]
        %v1834 = vld [vmem:[%s1771 + $0x174] sm:$0xff]
        %v1835 = vld [vmem:[%s1771 + $0x17c] sm:$0xf]
        %v1900 = vunpack.c.l.b16 %v1772
        %v1901 = vunpack.c.h.b16 %v1772
        %v1902 = vunpack.c.l.b16 %v1773
        %v1903 = vunpack.c.l.b16 %v1774
        %v1904 = vunpack.c.h.b16 %v1774
        %v1905 = vunpack.c.l.b16 %v1775
        %v1906 = vunpack.c.l.b16 %v1776
        %v1907 = vunpack.c.h.b16 %v1776
        %v1908 = vunpack.c.l.b16 %v1777
        %v1909 = vunpack.c.l.b16 %v1778
        %v1910 = vunpack.c.h.b16 %v1778
        %v1911 = vunpack.c.l.b16 %v1779
        %v1912 = vunpack.c.l.b16 %v1780
        %v1913 = vunpack.c.h.b16 %v1780
        %v1914 = vunpack.c.l.b16 %v1781
        %v1915 = vunpack.c.l.b16 %v1782
        %v1916 = vunpack.c.h.b16 %v1782
        %v1917 = vunpack.c.l.b16 %v1783
        %v1918 = vunpack.c.l.b16 %v1784
        %v1919 = vunpack.c.h.b16 %v1784
        %v1920 = vunpack.c.l.b16 %v1785
        %v1921 = vunpack.c.l.b16 %v1786
        %v1922 = vunpack.c.h.b16 %v1786
        %v1923 = vunpack.c.l.b16 %v1787
        %v1924 = vunpack.c.l.b16 %v1788
        %v1925 = vunpack.c.h.b16 %v1788
        %v1926 = vunpack.c.l.b16 %v1789
        %v1927 = vunpack.c.l.b16 %v1790
        %v1928 = vunpack.c.h.b16 %v1790
        %v1929 = vunpack.c.l.b16 %v1791
        %v1930 = vunpack.c.l.b16 %v1792
        %v1931 = vunpack.c.h.b16 %v1792
        %v1932 = vunpack.c.l.b16 %v1793
        %v1933 = vunpack.c.l.b16 %v1794
        %v1934 = vunpack.c.h.b16 %v1794
        %v1935 = vunpack.c.l.b16 %v1795
        %v1936 = vunpack.c.l.b16 %v1796
        %v1937 = vunpack.c.h.b16 %v1796
        %v1938 = vunpack.c.l.b16 %v1797
        %v1939 = vunpack.c.l.b16 %v1798
        %v1940 = vunpack.c.h.b16 %v1798
        %v1941 = vunpack.c.l.b16 %v1799
        %v1942 = vunpack.c.l.b16 %v1800
        %v1943 = vunpack.c.h.b16 %v1800
        %v1944 = vunpack.c.l.b16 %v1801
        %v1945 = vunpack.c.l.b16 %v1802
        %v1946 = vunpack.c.h.b16 %v1802
        %v1947 = vunpack.c.l.b16 %v1803
        %v1948 = vunpack.c.l.b16 %v1804
        %v1949 = vunpack.c.h.b16 %v1804
        %v1950 = vunpack.c.l.b16 %v1805
        %v1951 = vunpack.c.l.b16 %v1806
        %v1952 = vunpack.c.h.b16 %v1806
        %v1953 = vunpack.c.l.b16 %v1807
        %v1954 = vunpack.c.l.b16 %v1808
        %v1955 = vunpack.c.h.b16 %v1808
        %v1956 = vunpack.c.l.b16 %v1809
        %v1957 = vunpack.c.l.b16 %v1810
        %v1958 = vunpack.c.h.b16 %v1810
        %v1959 = vunpack.c.l.b16 %v1811
        %v1960 = vunpack.c.l.b16 %v1812
        %v1961 = vunpack.c.h.b16 %v1812
        %v1962 = vunpack.c.l.b16 %v1813
        %v1963 = vunpack.c.l.b16 %v1814
        %v1964 = vunpack.c.h.b16 %v1814
        %v1965 = vunpack.c.l.b16 %v1815
        %v1966 = vunpack.c.l.b16 %v1816
        %v1967 = vunpack.c.h.b16 %v1816
        %v1968 = vunpack.c.l.b16 %v1817
        %v1969 = vunpack.c.l.b16 %v1818
        %v1970 = vunpack.c.h.b16 %v1818
        %v1971 = vunpack.c.l.b16 %v1819
        %v1972 = vunpack.c.l.b16 %v1820
        %v1973 = vunpack.c.h.b16 %v1820
        %v1974 = vunpack.c.l.b16 %v1821
        %v1975 = vunpack.c.l.b16 %v1822
        %v1976 = vunpack.c.h.b16 %v1822
        %v1977 = vunpack.c.l.b16 %v1823
        %v1978 = vunpack.c.l.b16 %v1824
        %v1979 = vunpack.c.h.b16 %v1824
        %v1980 = vunpack.c.l.b16 %v1825
        %v1981 = vunpack.c.l.b16 %v1826
        %v1982 = vunpack.c.h.b16 %v1826
        %v1983 = vunpack.c.l.b16 %v1827
        %v1984 = vunpack.c.l.b16 %v1828
        %v1985 = vunpack.c.h.b16 %v1828
        %v1986 = vunpack.c.l.b16 %v1829
        %v1987 = vunpack.c.l.b16 %v1830
        %v1988 = vunpack.c.h.b16 %v1830
        %v1989 = vunpack.c.l.b16 %v1831
        %v1990 = vunpack.c.l.b16 %v1832
        %v1991 = vunpack.c.h.b16 %v1832
        %v1992 = vunpack.c.l.b16 %v1833
        %v1993 = vunpack.c.l.b16 %v1834
        %v1994 = vunpack.c.h.b16 %v1834
        %v1995 = vunpack.c.l.b16 %v1835
        %v1996 = vpack.c.b16 %v1903, %v1900
        %v1997 = vpack.c.b16 %v1904, %v1901
        %v1998 = vpack.c.b16 %v1905, %v1902
        %v1999 = vpack.c.b16 %v1909, %v1906
        %v2000 = vpack.c.b16 %v1910, %v1907
        %v2001 = vpack.c.b16 %v1911, %v1908
        %v2002 = vpack.c.b16 %v1915, %v1912
        %v2003 = vpack.c.b16 %v1916, %v1913
        %v2004 = vpack.c.b16 %v1917, %v1914
        %v2005 = vpack.c.b16 %v1921, %v1918
        %v2006 = vpack.c.b16 %v1922, %v1919
        %v2007 = vpack.c.b16 %v1923, %v1920
        %v2008 = vpack.c.b16 %v1927, %v1924
        %v2009 = vpack.c.b16 %v1928, %v1925
        %v2010 = vpack.c.b16 %v1929, %v1926
        %v2011 = vpack.c.b16 %v1933, %v1930
        %v2012 = vpack.c.b16 %v1934, %v1931
        %v2013 = vpack.c.b16 %v1935, %v1932
        %v2014 = vpack.c.b16 %v1939, %v1936
        %v2015 = vpack.c.b16 %v1940, %v1937
        %v2016 = vpack.c.b16 %v1941, %v1938
        %v2017 = vpack.c.b16 %v1945, %v1942
        %v2018 = vpack.c.b16 %v1946, %v1943
        %v2019 = vpack.c.b16 %v1947, %v1944
        %v2020 = vpack.c.b16 %v1951, %v1948
        %v2021 = vpack.c.b16 %v1952, %v1949
        %v2022 = vpack.c.b16 %v1953, %v1950
        %v2023 = vpack.c.b16 %v1957, %v1954
        %v2024 = vpack.c.b16 %v1958, %v1955
        %v2025 = vpack.c.b16 %v1959, %v1956
        %v2026 = vpack.c.b16 %v1963, %v1960
        %v2027 = vpack.c.b16 %v1964, %v1961
        %v2028 = vpack.c.b16 %v1965, %v1962
        %v2029 = vpack.c.b16 %v1969, %v1966
        %v2030 = vpack.c.b16 %v1970, %v1967
        %v2031 = vpack.c.b16 %v1971, %v1968
        %v2032 = vpack.c.b16 %v1975, %v1972
        %v2033 = vpack.c.b16 %v1976, %v1973
        %v2034 = vpack.c.b16 %v1977, %v1974
        %v2035 = vpack.c.b16 %v1981, %v1978
        %v2036 = vpack.c.b16 %v1982, %v1979
        %v2037 = vpack.c.b16 %v1983, %v1980
        %v2038 = vpack.c.b16 %v1987, %v1984
        %v2039 = vpack.c.b16 %v1988, %v1985
        %v2040 = vpack.c.b16 %v1989, %v1986
        %v2041 = vpack.c.b16 %v1993, %v1990
        %v2042 = vpack.c.b16 %v1994, %v1991
        %v2043 = vpack.c.b16 %v1995, %v1992
        %2092 = vmatprep.subr.bf16.mxu0 %v2018
        %2093 = vmatpush1.bf16.msra.mxu0 %v2017
        %2094 = vmatprep.subr.bf16.mxu0 %v2015
        %2095 = vmatpush1.bf16.msra.mxu0 %v2014
        %2096 = vmatprep.subr.bf16.mxu0 %v2012
        %2097 = vmatpush1.bf16.msra.mxu0 %v2011
        %2098 = vmatprep.subr.bf16.mxu0 %v2009
        %2099 = vmatpush1.bf16.msra.mxu0 %v2008
        %2100 = vmatprep.subr.bf16.mxu0 %v2006
        %2101 = vmatpush1.bf16.msra.mxu0 %v2005
        %2102 = vmatprep.subr.bf16.mxu0 %v2003
        %2103 = vmatpush1.bf16.msra.mxu0 %v2002
        %2104 = vmatprep.subr.bf16.mxu0 %v2000
        %2105 = vmatpush1.bf16.msra.mxu0 %v1999
        %2106 = vmatprep.subr.bf16.mxu0 %v1997
        %2107 = vmatpush1.bf16.msra.mxu0 %v1996
        %2108 = vmatprep.subr.bf16.mxu0 %v2042
        %2109 = vmatpush2.bf16.msra.mxu0 %v2041
        %2110 = vmatprep.subr.bf16.mxu0 %v2039
        %2111 = vmatpush2.bf16.msra.mxu0 %v2038
        %2112 = vmatprep.subr.bf16.mxu0 %v2036
        %2113 = vmatpush2.bf16.msra.mxu0 %v2035
        %2114 = vmatprep.subr.bf16.mxu0 %v2033
        %2115 = vmatpush2.bf16.msra.mxu0 %v2032
        %2116 = vmatprep.subr.bf16.mxu0 %v2030
        %2117 = vmatpush2.bf16.msra.mxu0 %v2029
        %2118 = vmatprep.subr.bf16.mxu0 %v2027
        %2119 = vmatpush2.bf16.msra.mxu0 %v2026
        %2120 = vmatprep.subr.bf16.mxu0 %v2024
        %2121 = vmatpush2.bf16.msra.mxu0 %v2023
        %2122 = vmatprep.subr.bf16.mxu0 %v2021
        %2123 = vmatpush2.bf16.msra.mxu0 %v2020
        %2124 = vmatprep.mubr.bf16.mxu0 %v1764
        %2125 = vmatmul.mubr.bf16.gmra.mxu0 %v1763
        %v2126 = vpop.f32.mrf.mxu0
        %v2127 = vadd.f32 0.0, %v2126
        %v2128 = vpop.f32.mrf.mxu0
        %v2129 = vadd.f32 0.0, %v2128
        %v2130 = vpop.f32.mrf.mxu0
        %v2131 = vadd.f32 0.0, %v2130
        %v2132 = vpop.f32.mrf.mxu0
        %v2133 = vadd.f32 0.0, %v2132
        %2134 = vmatprep.mubr.bf16.mxu0 %v1766
        %2135 = vmatmul.mubr.bf16.gmra.mxu0 %v1765
        %v2136 = vpop.f32.mrf.mxu0
        %v2137 = vadd.f32 0.0, %v2136
        %v2138 = vpop.f32.mrf.mxu0
        %v2139 = vadd.f32 0.0, %v2138
        %v2140 = vpop.f32.mrf.mxu0
        %v2141 = vadd.f32 0.0, %v2140
        %v2142 = vpop.f32.mrf.mxu0
        %v2143 = vadd.f32 0.0, %v2142
        %2144 = vmatprep.mubr.bf16.mxu0 %v1768
        %2145 = vmatmul.mubr.bf16.gmra.mxu0 %v1767
        %v2146 = vpop.f32.mrf.mxu0
        %v2147 = vadd.f32 0.0, %v2146
        %v2148 = vpop.f32.mrf.mxu0
        %v2149 = vadd.f32 0.0, %v2148
        %v2150 = vpop.f32.mrf.mxu0
        %v2151 = vadd.f32 0.0, %v2150
        %v2152 = vpop.f32.mrf.mxu0
        %v2153 = vadd.f32 0.0, %v2152
        %2154 = vmatprep.mubr.bf16.mxu0 %v1770
        %2155 = vmatmul.mubr.bf16.gmra.mxu0 %v1769
        %v2156 = vpop.f32.mrf.mxu0
        %v2157 = vadd.f32 0.0, %v2156
        %v2158 = vpop.f32.mrf.mxu0
        %v2159 = vadd.f32 0.0, %v2158
        %v2160 = vpop.f32.mrf.mxu0
        %v2161 = vadd.f32 0.0, %v2160
        %v2162 = vpop.f32.mrf.mxu0
        %v2163 = vadd.f32 0.0, %v2162
        %2164 = vdwg.mxu0
        %2165 = vmatprep.subr.bf16.mxu0 0
        %2166 = vmatpush1.bf16.msra.mxu0 %v2019
        %2167 = vmatprep.subr.bf16.mxu0 0
        %2168 = vmatpush1.bf16.msra.mxu0 %v2016
        %2169 = vmatprep.subr.bf16.mxu0 0
        %2170 = vmatpush1.bf16.msra.mxu0 %v2013
        %2171 = vmatprep.subr.bf16.mxu0 0
        %2172 = vmatpush1.bf16.msra.mxu0 %v2010
        %2173 = vmatprep.subr.bf16.mxu0 0
        %2174 = vmatpush1.bf16.msra.mxu0 %v2007
        %2175 = vmatprep.subr.bf16.mxu0 0
        %2176 = vmatpush1.bf16.msra.mxu0 %v2004
        %2177 = vmatprep.subr.bf16.mxu0 0
        %2178 = vmatpush1.bf16.msra.mxu0 %v2001
        %2179 = vmatprep.subr.bf16.mxu0 0
        %2180 = vmatpush1.bf16.msra.mxu0 %v1998
        %2181 = vmatprep.subr.bf16.mxu0 0
        %2182 = vmatpush2.bf16.msra.mxu0 %v2043
        %2183 = vmatprep.subr.bf16.mxu0 0
        %2184 = vmatpush2.bf16.msra.mxu0 %v2040
        %2185 = vmatprep.subr.bf16.mxu0 0
        %2186 = vmatpush2.bf16.msra.mxu0 %v2037
        %2187 = vmatprep.subr.bf16.mxu0 0
        %2188 = vmatpush2.bf16.msra.mxu0 %v2034
        %2189 = vmatprep.subr.bf16.mxu0 0
        %2190 = vmatpush2.bf16.msra.mxu0 %v2031
        %2191 = vmatprep.subr.bf16.mxu0 0
        %2192 = vmatpush2.bf16.msra.mxu0 %v2028
        %2193 = vmatprep.subr.bf16.mxu0 0
        %2194 = vmatpush2.bf16.msra.mxu0 %v2025
        %2195 = vmatprep.subr.bf16.mxu0 0
        %2196 = vmatpush2.bf16.msra.mxu0 %v2022
        %2197 = vmatprep.mubr.bf16.mxu0 %v1764
        %2198 = vmatmul.mubr.bf16.gmra.mxu0 %v1763
        %v2199 = vpop.f32.mrf.mxu0
        %v2200 = vadd.f32 0.0, %v2199
        %v2201 = vpop.f32.mrf.mxu0
        %v2202 = vpop.f32.mrf.mxu0
        %v2203 = vadd.f32 0.0, %v2202
        %v2204 = vpop.f32.mrf.mxu0
        %2205 = vmatprep.mubr.bf16.mxu0 %v1766
        %2206 = vmatmul.mubr.bf16.gmra.mxu0 %v1765
        %v2207 = vpop.f32.mrf.mxu0
        %v2208 = vadd.f32 0.0, %v2207
        %v2209 = vpop.f32.mrf.mxu0
        %v2210 = vpop.f32.mrf.mxu0
        %v2211 = vadd.f32 0.0, %v2210
        %v2212 = vpop.f32.mrf.mxu0
        %2213 = vmatprep.mubr.bf16.mxu0 %v1768
        %2214 = vmatmul.mubr.bf16.gmra.mxu0 %v1767
        %v2215 = vpop.f32.mrf.mxu0
        %v2216 = vadd.f32 0.0, %v2215
        %v2217 = vpop.f32.mrf.mxu0
        %v2218 = vpop.f32.mrf.mxu0
        %v2219 = vadd.f32 0.0, %v2218
        %v2220 = vpop.f32.mrf.mxu0
        %2221 = vmatprep.mubr.bf16.mxu0 %v1770
        %2222 = vmatmul.mubr.bf16.gmra.mxu0 %v1769
        %v2223 = vpop.f32.mrf.mxu0
        %v2224 = vadd.f32 0.0, %v2223
        %v2225 = vpop.f32.mrf.mxu0
        %v2226 = vpop.f32.mrf.mxu0
        %v2227 = vadd.f32 0.0, %v2226
        %v2228 = vpop.f32.mrf.mxu0
        %2229 = vdwg.mxu0
        %v2230 = vrot.slane %v2127, 7
        %v2231 = vrot.slane %v2131, 7
        %v2232 = vrot.slane %v2137, 7
        %v2233 = vrot.slane %v2141, 7
        %v2234 = vrot.slane %v2147, 7
        %v2235 = vrot.slane %v2151, 7
        %v2236 = vrot.slane %v2157, 7
        %v2237 = vrot.slane %v2161, 7
        %v2238 = vsel %vm1673, %v2236, %v2237
        %v2239 = vsel %vm1673, %v2235, %v2236
        %v2240 = vsel %vm1673, %v2234, %v2235
        %v2241 = vsel %vm1673, %v2233, %v2234
        %v2242 = vsel %vm1673, %v2232, %v2233
        %v2243 = vsel %vm1673, %v2231, %v2232
        %v2244 = vsel %vm1673, %v2230, %v2231
        %v2245 = vsel %vm1673, %v2237, %v2230
        %v2246 = vsel %vm1657, %v2245, 0.0
        %v2247 = vsel %vm1658, %v2244, 0.0
        %v2248 = vsel %vm1659, %v2243, 0.0
        %v2249 = vsel %vm1660, %v2242, 0.0
        %v2250 = vsel %vm1661, %v2241, 0.0
        %v2251 = vsel %vm1662, %v2240, 0.0
        %v2252 = vsel %vm1663, %v2239, 0.0
        %v2253 = vsel %vm1664, %v2238, 0.0
        %v2254 = vadd.f32 %v2129, %v2246
        %v2255 = vadd.f32 %v2133, %v2247
        %v2256 = vadd.f32 %v2139, %v2248
        %v2257 = vadd.f32 %v2143, %v2249
        %v2258 = vadd.f32 %v2149, %v2250
        %v2259 = vadd.f32 %v2153, %v2251
        %v2260 = vadd.f32 %v2159, %v2252
        %v2261 = vadd.f32 %v2163, %v2253
        %v2262 = vrot.slane %v2200, 1
        %v2263 = vrot.slane %v2203, 1
        %v2264 = vrot.slane %v2208, 1
        %v2265 = vrot.slane %v2211, 1
        %v2266 = vrot.slane %v2216, 1
        %v2267 = vrot.slane %v2219, 1
        %v2268 = vrot.slane %v2224, 1
        %v2269 = vrot.slane %v2227, 1
        %v2270 = vsel %vm1714, %v2268, %v2269
        %v2271 = vsel %vm1714, %v2267, %v2268
        %v2272 = vsel %vm1714, %v2266, %v2267
        %v2273 = vsel %vm1714, %v2265, %v2266
        %v2274 = vsel %vm1714, %v2264, %v2265
        %v2275 = vsel %vm1714, %v2263, %v2264
        %v2276 = vsel %vm1714, %v2262, %v2263
        %v2277 = vsel %vm1714, %v2269, %v2262
        %v2278 = vsel %vm1698, %v2276, 0.0
        %v2279 = vsel %vm1699, %v2275, 0.0
        %v2280 = vsel %vm1700, %v2274, 0.0
        %v2281 = vsel %vm1701, %v2273, 0.0
        %v2282 = vsel %vm1702, %v2272, 0.0
        %v2283 = vsel %vm1703, %v2271, 0.0
        %v2284 = vsel %vm1704, %v2270, 0.0
        %v2285 = vsel %vm1705, %v2277, 0.0
        %v2286 = vadd.f32 %v2254, %v2278
        %v2287 = vadd.f32 %v2255, %v2279
        %v2288 = vadd.f32 %v2256, %v2280
        %v2289 = vadd.f32 %v2257, %v2281
        %v2290 = vadd.f32 %v2258, %v2282
        %v2291 = vadd.f32 %v2259, %v2283
        %v2292 = vadd.f32 %v2260, %v2284
        %v2293 = vadd.f32 %v2261, %v2285
        %v2294 = vld [vmem:[#allocation3] sm:$0xff]
        %v2295 = vld [vmem:[#allocation3 + $0x8] sm:$0xff]
        %v2296 = vld [vmem:[#allocation3 + $0x10] sm:$0xff]
        %v2297 = vld [vmem:[#allocation3 + $0x18] sm:$0xff]
        %v2298 = vld [vmem:[#allocation3 + $0x20] sm:$0xff]
        %v2299 = vld [vmem:[#allocation3 + $0x28] sm:$0xff]
        %v2300 = vld [vmem:[#allocation3 + $0x30] sm:$0xff]
        %v2301 = vld [vmem:[#allocation3 + $0x38] sm:$0xff]
        %v2302 = vadd.f32 %v2294, %v2286
        %v2303 = vadd.f32 %v2295, %v2287
        %v2304 = vadd.f32 %v2296, %v2288
        %v2305 = vadd.f32 %v2297, %v2289
        %v2306 = vadd.f32 %v2298, %v2290
        %v2307 = vadd.f32 %v2299, %v2291
        %v2308 = vadd.f32 %v2300, %v2292
        %v2309 = vadd.f32 %v2301, %v2293
        %2310 = vst [vmem:[#allocation3] sm:$0xff] %v2302
        %2311 = vst [vmem:[#allocation3 + $0x8] sm:$0xff] %v2303
        %2312 = vst [vmem:[#allocation3 + $0x10] sm:$0xff] %v2304
        %2313 = vst [vmem:[#allocation3 + $0x18] sm:$0xff] %v2305
        %2314 = vst [vmem:[#allocation3 + $0x20] sm:$0xff] %v2306
        %2315 = vst [vmem:[#allocation3 + $0x28] sm:$0xff] %v2307
        %2316 = vst [vmem:[#allocation3 + $0x30] sm:$0xff] %v2308
        %2317 = vst [vmem:[#allocation3 + $0x38] sm:$0xff] %v2309
        %v2318 = vld [vmem:[#allocation2 + $0x20] sm:$0xff]
        %v2319 = vld [vmem:[#allocation2 + $0x28] sm:$0xff]
        %v2320 = vld [vmem:[#allocation2 + $0x30] sm:$0xff]
        %v2321 = vld [vmem:[#allocation2 + $0x38] sm:$0xff]
        %v2322 = vld [vmem:[#allocation2 + $0x40] sm:$0xff]
        %v2323 = vld [vmem:[#allocation2 + $0x48] sm:$0xff]
        %v2324 = vld [vmem:[#allocation2 + $0x50] sm:$0xff]
        %v2325 = vld [vmem:[#allocation2 + $0x58] sm:$0xff]
        %v2326 = vld [vmem:[#allocation2 + $0x60] sm:$0xff]
        %v2327 = vld [vmem:[#allocation2 + $0x68] sm:$0xff]
        %v2328 = vld [vmem:[#allocation2 + $0x70] sm:$0xff]
        %v2329 = vld [vmem:[#allocation2 + $0x78] sm:$0xff]
        %v2330 = vld [vmem:[#allocation2 + $0x80] sm:$0xff]
        %v2331 = vld [vmem:[#allocation2 + $0x88] sm:$0xff]
        %v2332 = vld [vmem:[#allocation2 + $0x90] sm:$0xff]
        %v2333 = vld [vmem:[#allocation2 + $0x98] sm:$0xff]
        %v2334 = vpack.c.bf16 %v2320, %v2318
        %v2335 = vpack.c.bf16 %v2321, %v2319
        %v2336 = vpack.c.bf16 %v2324, %v2322
        %v2337 = vpack.c.bf16 %v2325, %v2323
        %v2338 = vpack.c.bf16 %v2328, %v2326
        %v2339 = vpack.c.bf16 %v2329, %v2327
        %v2340 = vpack.c.bf16 %v2332, %v2330
        %v2341 = vpack.c.bf16 %v2333, %v2331
        %s2342 = scalar_lea.vmem [#allocation12], 768
        %v2343 = vld [vmem:[%s2342] sm:$0xff]
        %v2344 = vld [vmem:[%s2342 + $0x8] sm:$0xf]
        %v2345 = vld [vmem:[%s2342 + $0xc] sm:$0xff]
        %v2346 = vld [vmem:[%s2342 + $0x14] sm:$0xf]
        %v2347 = vld [vmem:[%s2342 + $0x18] sm:$0xff]
        %v2348 = vld [vmem:[%s2342 + $0x20] sm:$0xf]
        %v2349 = vld [vmem:[%s2342 + $0x24] sm:$0xff]
        %v2350 = vld [vmem:[%s2342 + $0x2c] sm:$0xf]
        %v2351 = vld [vmem:[%s2342 + $0x30] sm:$0xff]
        %v2352 = vld [vmem:[%s2342 + $0x38] sm:$0xf]
        %v2353 = vld [vmem:[%s2342 + $0x3c] sm:$0xff]
        %v2354 = vld [vmem:[%s2342 + $0x44] sm:$0xf]
        %v2355 = vld [vmem:[%s2342 + $0x48] sm:$0xff]
        %v2356 = vld [vmem:[%s2342 + $0x50] sm:$0xf]
        %v2357 = vld [vmem:[%s2342 + $0x54] sm:$0xff]
        %v2358 = vld [vmem:[%s2342 + $0x5c] sm:$0xf]
        %v2359 = vld [vmem:[%s2342 + $0x60] sm:$0xff]
        %v2360 = vld [vmem:[%s2342 + $0x68] sm:$0xf]
        %v2361 = vld [vmem:[%s2342 + $0x6c] sm:$0xff]
        %v2362 = vld [vmem:[%s2342 + $0x74] sm:$0xf]
        %v2363 = vld [vmem:[%s2342 + $0x78] sm:$0xff]
        %v2364 = vld [vmem:[%s2342 + $0x80] sm:$0xf]
        %v2365 = vld [vmem:[%s2342 + $0x84] sm:$0xff]
        %v2366 = vld [vmem:[%s2342 + $0x8c] sm:$0xf]
        %v2367 = vld [vmem:[%s2342 + $0x90] sm:$0xff]
        %v2368 = vld [vmem:[%s2342 + $0x98] sm:$0xf]
        %v2369 = vld [vmem:[%s2342 + $0x9c] sm:$0xff]
        %v2370 = vld [vmem:[%s2342 + $0xa4] sm:$0xf]
        %v2371 = vld [vmem:[%s2342 + $0xa8] sm:$0xff]
        %v2372 = vld [vmem:[%s2342 + $0xb0] sm:$0xf]
        %v2373 = vld [vmem:[%s2342 + $0xb4] sm:$0xff]
        %v2374 = vld [vmem:[%s2342 + $0xbc] sm:$0xf]
        %v2375 = vld [vmem:[%s2342 + $0xc0] sm:$0xff]
        %v2376 = vld [vmem:[%s2342 + $0xc8] sm:$0xf]
        %v2377 = vld [vmem:[%s2342 + $0xcc] sm:$0xff]
        %v2378 = vld [vmem:[%s2342 + $0xd4] sm:$0xf]
        %v2379 = vld [vmem:[%s2342 + $0xd8] sm:$0xff]
        %v2380 = vld [vmem:[%s2342 + $0xe0] sm:$0xf]
        %v2381 = vld [vmem:[%s2342 + $0xe4] sm:$0xff]
        %v2382 = vld [vmem:[%s2342 + $0xec] sm:$0xf]
        %v2383 = vld [vmem:[%s2342 + $0xf0] sm:$0xff]
        %v2384 = vld [vmem:[%s2342 + $0xf8] sm:$0xf]
        %v2385 = vld [vmem:[%s2342 + $0xfc] sm:$0xff]
        %v2386 = vld [vmem:[%s2342 + $0x104] sm:$0xf]
        %v2387 = vld [vmem:[%s2342 + $0x108] sm:$0xff]
        %v2388 = vld [vmem:[%s2342 + $0x110] sm:$0xf]
        %v2389 = vld [vmem:[%s2342 + $0x114] sm:$0xff]
        %v2390 = vld [vmem:[%s2342 + $0x11c] sm:$0xf]
        %v2391 = vld [vmem:[%s2342 + $0x120] sm:$0xff]
        %v2392 = vld [vmem:[%s2342 + $0x128] sm:$0xf]
        %v2393 = vld [vmem:[%s2342 + $0x12c] sm:$0xff]
        %v2394 = vld [vmem:[%s2342 + $0x134] sm:$0xf]
        %v2395 = vld [vmem:[%s2342 + $0x138] sm:$0xff]
        %v2396 = vld [vmem:[%s2342 + $0x140] sm:$0xf]
        %v2397 = vld [vmem:[%s2342 + $0x144] sm:$0xff]
        %v2398 = vld [vmem:[%s2342 + $0x14c] sm:$0xf]
        %v2399 = vld [vmem:[%s2342 + $0x150] sm:$0xff]
        %v2400 = vld [vmem:[%s2342 + $0x158] sm:$0xf]
        %v2401 = vld [vmem:[%s2342 + $0x15c] sm:$0xff]
        %v2402 = vld [vmem:[%s2342 + $0x164] sm:$0xf]
        %v2403 = vld [vmem:[%s2342 + $0x168] sm:$0xff]
        %v2404 = vld [vmem:[%s2342 + $0x170] sm:$0xf]
        %v2405 = vld [vmem:[%s2342 + $0x174] sm:$0xff]
        %v2406 = vld [vmem:[%s2342 + $0x17c] sm:$0xf]
        %v2471 = vunpack.c.l.b16 %v2343
        %v2472 = vunpack.c.h.b16 %v2343
        %v2473 = vunpack.c.l.b16 %v2344
        %v2474 = vunpack.c.l.b16 %v2345
        %v2475 = vunpack.c.h.b16 %v2345
        %v2476 = vunpack.c.l.b16 %v2346
        %v2477 = vunpack.c.l.b16 %v2347
        %v2478 = vunpack.c.h.b16 %v2347
        %v2479 = vunpack.c.l.b16 %v2348
        %v2480 = vunpack.c.l.b16 %v2349
        %v2481 = vunpack.c.h.b16 %v2349
        %v2482 = vunpack.c.l.b16 %v2350
        %v2483 = vunpack.c.l.b16 %v2351
        %v2484 = vunpack.c.h.b16 %v2351
        %v2485 = vunpack.c.l.b16 %v2352
        %v2486 = vunpack.c.l.b16 %v2353
        %v2487 = vunpack.c.h.b16 %v2353
        %v2488 = vunpack.c.l.b16 %v2354
        %v2489 = vunpack.c.l.b16 %v2355
        %v2490 = vunpack.c.h.b16 %v2355
        %v2491 = vunpack.c.l.b16 %v2356
        %v2492 = vunpack.c.l.b16 %v2357
        %v2493 = vunpack.c.h.b16 %v2357
        %v2494 = vunpack.c.l.b16 %v2358
        %v2495 = vunpack.c.l.b16 %v2359
        %v2496 = vunpack.c.h.b16 %v2359
        %v2497 = vunpack.c.l.b16 %v2360
        %v2498 = vunpack.c.l.b16 %v2361
        %v2499 = vunpack.c.h.b16 %v2361
        %v2500 = vunpack.c.l.b16 %v2362
        %v2501 = vunpack.c.l.b16 %v2363
        %v2502 = vunpack.c.h.b16 %v2363
        %v2503 = vunpack.c.l.b16 %v2364
        %v2504 = vunpack.c.l.b16 %v2365
        %v2505 = vunpack.c.h.b16 %v2365
        %v2506 = vunpack.c.l.b16 %v2366
        %v2507 = vunpack.c.l.b16 %v2367
        %v2508 = vunpack.c.h.b16 %v2367
        %v2509 = vunpack.c.l.b16 %v2368
        %v2510 = vunpack.c.l.b16 %v2369
        %v2511 = vunpack.c.h.b16 %v2369
        %v2512 = vunpack.c.l.b16 %v2370
        %v2513 = vunpack.c.l.b16 %v2371
        %v2514 = vunpack.c.h.b16 %v2371
        %v2515 = vunpack.c.l.b16 %v2372
        %v2516 = vunpack.c.l.b16 %v2373
        %v2517 = vunpack.c.h.b16 %v2373
        %v2518 = vunpack.c.l.b16 %v2374
        %v2519 = vunpack.c.l.b16 %v2375
        %v2520 = vunpack.c.h.b16 %v2375
        %v2521 = vunpack.c.l.b16 %v2376
        %v2522 = vunpack.c.l.b16 %v2377
        %v2523 = vunpack.c.h.b16 %v2377
        %v2524 = vunpack.c.l.b16 %v2378
        %v2525 = vunpack.c.l.b16 %v2379
        %v2526 = vunpack.c.h.b16 %v2379
        %v2527 = vunpack.c.l.b16 %v2380
        %v2528 = vunpack.c.l.b16 %v2381
        %v2529 = vunpack.c.h.b16 %v2381
        %v2530 = vunpack.c.l.b16 %v2382
        %v2531 = vunpack.c.l.b16 %v2383
        %v2532 = vunpack.c.h.b16 %v2383
        %v2533 = vunpack.c.l.b16 %v2384
        %v2534 = vunpack.c.l.b16 %v2385
        %v2535 = vunpack.c.h.b16 %v2385
        %v2536 = vunpack.c.l.b16 %v2386
        %v2537 = vunpack.c.l.b16 %v2387
        %v2538 = vunpack.c.h.b16 %v2387
        %v2539 = vunpack.c.l.b16 %v2388
        %v2540 = vunpack.c.l.b16 %v2389
        %v2541 = vunpack.c.h.b16 %v2389
        %v2542 = vunpack.c.l.b16 %v2390
        %v2543 = vunpack.c.l.b16 %v2391
        %v2544 = vunpack.c.h.b16 %v2391
        %v2545 = vunpack.c.l.b16 %v2392
        %v2546 = vunpack.c.l.b16 %v2393
        %v2547 = vunpack.c.h.b16 %v2393
        %v2548 = vunpack.c.l.b16 %v2394
        %v2549 = vunpack.c.l.b16 %v2395
        %v2550 = vunpack.c.h.b16 %v2395
        %v2551 = vunpack.c.l.b16 %v2396
        %v2552 = vunpack.c.l.b16 %v2397
        %v2553 = vunpack.c.h.b16 %v2397
        %v2554 = vunpack.c.l.b16 %v2398
        %v2555 = vunpack.c.l.b16 %v2399
        %v2556 = vunpack.c.h.b16 %v2399
        %v2557 = vunpack.c.l.b16 %v2400
        %v2558 = vunpack.c.l.b16 %v2401
        %v2559 = vunpack.c.h.b16 %v2401
        %v2560 = vunpack.c.l.b16 %v2402
        %v2561 = vunpack.c.l.b16 %v2403
        %v2562 = vunpack.c.h.b16 %v2403
        %v2563 = vunpack.c.l.b16 %v2404
        %v2564 = vunpack.c.l.b16 %v2405
        %v2565 = vunpack.c.h.b16 %v2405
        %v2566 = vunpack.c.l.b16 %v2406
        %v2567 = vpack.c.b16 %v2474, %v2471
        %v2568 = vpack.c.b16 %v2475, %v2472
        %v2569 = vpack.c.b16 %v2476, %v2473
        %v2570 = vpack.c.b16 %v2480, %v2477
        %v2571 = vpack.c.b16 %v2481, %v2478
        %v2572 = vpack.c.b16 %v2482, %v2479
        %v2573 = vpack.c.b16 %v2486, %v2483
        %v2574 = vpack.c.b16 %v2487, %v2484
        %v2575 = vpack.c.b16 %v2488, %v2485
        %v2576 = vpack.c.b16 %v2492, %v2489
        %v2577 = vpack.c.b16 %v2493, %v2490
        %v2578 = vpack.c.b16 %v2494, %v2491
        %v2579 = vpack.c.b16 %v2498, %v2495
        %v2580 = vpack.c.b16 %v2499, %v2496
        %v2581 = vpack.c.b16 %v2500, %v2497
        %v2582 = vpack.c.b16 %v2504, %v2501
        %v2583 = vpack.c.b16 %v2505, %v2502
        %v2584 = vpack.c.b16 %v2506, %v2503
        %v2585 = vpack.c.b16 %v2510, %v2507
        %v2586 = vpack.c.b16 %v2511, %v2508
        %v2587 = vpack.c.b16 %v2512, %v2509
        %v2588 = vpack.c.b16 %v2516, %v2513
        %v2589 = vpack.c.b16 %v2517, %v2514
        %v2590 = vpack.c.b16 %v2518, %v2515
        %v2591 = vpack.c.b16 %v2522, %v2519
        %v2592 = vpack.c.b16 %v2523, %v2520
        %v2593 = vpack.c.b16 %v2524, %v2521
        %v2594 = vpack.c.b16 %v2528, %v2525
        %v2595 = vpack.c.b16 %v2529, %v2526
        %v2596 = vpack.c.b16 %v2530, %v2527
        %v2597 = vpack.c.b16 %v2534, %v2531
        %v2598 = vpack.c.b16 %v2535, %v2532
        %v2599 = vpack.c.b16 %v2536, %v2533
        %v2600 = vpack.c.b16 %v2540, %v2537
        %v2601 = vpack.c.b16 %v2541, %v2538
        %v2602 = vpack.c.b16 %v2542, %v2539
        %v2603 = vpack.c.b16 %v2546, %v2543
        %v2604 = vpack.c.b16 %v2547, %v2544
        %v2605 = vpack.c.b16 %v2548, %v2545
        %v2606 = vpack.c.b16 %v2552, %v2549
        %v2607 = vpack.c.b16 %v2553, %v2550
        %v2608 = vpack.c.b16 %v2554, %v2551
        %v2609 = vpack.c.b16 %v2558, %v2555
        %v2610 = vpack.c.b16 %v2559, %v2556
        %v2611 = vpack.c.b16 %v2560, %v2557
        %v2612 = vpack.c.b16 %v2564, %v2561
        %v2613 = vpack.c.b16 %v2565, %v2562
        %v2614 = vpack.c.b16 %v2566, %v2563
        %2663 = vmatprep.subr.bf16.mxu0 %v2589
        %2664 = vmatpush1.bf16.msra.mxu0 %v2588
        %2665 = vmatprep.subr.bf16.mxu0 %v2586
        %2666 = vmatpush1.bf16.msra.mxu0 %v2585
        %2667 = vmatprep.subr.bf16.mxu0 %v2583
        %2668 = vmatpush1.bf16.msra.mxu0 %v2582
        %2669 = vmatprep.subr.bf16.mxu0 %v2580
        %2670 = vmatpush1.bf16.msra.mxu0 %v2579
        %2671 = vmatprep.subr.bf16.mxu0 %v2577
        %2672 = vmatpush1.bf16.msra.mxu0 %v2576
        %2673 = vmatprep.subr.bf16.mxu0 %v2574
        %2674 = vmatpush1.bf16.msra.mxu0 %v2573
        %2675 = vmatprep.subr.bf16.mxu0 %v2571
        %2676 = vmatpush1.bf16.msra.mxu0 %v2570
        %2677 = vmatprep.subr.bf16.mxu0 %v2568
        %2678 = vmatpush1.bf16.msra.mxu0 %v2567
        %2679 = vmatprep.subr.bf16.mxu0 %v2613
        %2680 = vmatpush2.bf16.msra.mxu0 %v2612
        %2681 = vmatprep.subr.bf16.mxu0 %v2610
        %2682 = vmatpush2.bf16.msra.mxu0 %v2609
        %2683 = vmatprep.subr.bf16.mxu0 %v2607
        %2684 = vmatpush2.bf16.msra.mxu0 %v2606
        %2685 = vmatprep.subr.bf16.mxu0 %v2604
        %2686 = vmatpush2.bf16.msra.mxu0 %v2603
        %2687 = vmatprep.subr.bf16.mxu0 %v2601
        %2688 = vmatpush2.bf16.msra.mxu0 %v2600
        %2689 = vmatprep.subr.bf16.mxu0 %v2598
        %2690 = vmatpush2.bf16.msra.mxu0 %v2597
        %2691 = vmatprep.subr.bf16.mxu0 %v2595
        %2692 = vmatpush2.bf16.msra.mxu0 %v2594
        %2693 = vmatprep.subr.bf16.mxu0 %v2592
        %2694 = vmatpush2.bf16.msra.mxu0 %v2591
        %2695 = vmatprep.mubr.bf16.mxu0 %v2335
        %2696 = vmatmul.mubr.bf16.gmra.mxu0 %v2334
        %v2697 = vpop.f32.mrf.mxu0
        %v2698 = vadd.f32 0.0, %v2697
        %v2699 = vpop.f32.mrf.mxu0
        %v2700 = vadd.f32 0.0, %v2699
        %v2701 = vpop.f32.mrf.mxu0
        %v2702 = vadd.f32 0.0, %v2701
        %v2703 = vpop.f32.mrf.mxu0
        %v2704 = vadd.f32 0.0, %v2703
        %2705 = vmatprep.mubr.bf16.mxu0 %v2337
        %2706 = vmatmul.mubr.bf16.gmra.mxu0 %v2336
        %v2707 = vpop.f32.mrf.mxu0
        %v2708 = vadd.f32 0.0, %v2707
        %v2709 = vpop.f32.mrf.mxu0
        %v2710 = vadd.f32 0.0, %v2709
        %v2711 = vpop.f32.mrf.mxu0
        %v2712 = vadd.f32 0.0, %v2711
        %v2713 = vpop.f32.mrf.mxu0
        %v2714 = vadd.f32 0.0, %v2713
        %2715 = vmatprep.mubr.bf16.mxu0 %v2339
        %2716 = vmatmul.mubr.bf16.gmra.mxu0 %v2338
        %v2717 = vpop.f32.mrf.mxu0
        %v2718 = vadd.f32 0.0, %v2717
        %v2719 = vpop.f32.mrf.mxu0
        %v2720 = vadd.f32 0.0, %v2719
        %v2721 = vpop.f32.mrf.mxu0
        %v2722 = vadd.f32 0.0, %v2721
        %v2723 = vpop.f32.mrf.mxu0
        %v2724 = vadd.f32 0.0, %v2723
        %2725 = vmatprep.mubr.bf16.mxu0 %v2341
        %2726 = vmatmul.mubr.bf16.gmra.mxu0 %v2340
        %v2727 = vpop.f32.mrf.mxu0
        %v2728 = vadd.f32 0.0, %v2727
        %v2729 = vpop.f32.mrf.mxu0
        %v2730 = vadd.f32 0.0, %v2729
        %v2731 = vpop.f32.mrf.mxu0
        %v2732 = vadd.f32 0.0, %v2731
        %v2733 = vpop.f32.mrf.mxu0
        %v2734 = vadd.f32 0.0, %v2733
        %2735 = vdwg.mxu0
        %2736 = vmatprep.subr.bf16.mxu0 0
        %2737 = vmatpush1.bf16.msra.mxu0 %v2590
        %2738 = vmatprep.subr.bf16.mxu0 0
        %2739 = vmatpush1.bf16.msra.mxu0 %v2587
        %2740 = vmatprep.subr.bf16.mxu0 0
        %2741 = vmatpush1.bf16.msra.mxu0 %v2584
        %2742 = vmatprep.subr.bf16.mxu0 0
        %2743 = vmatpush1.bf16.msra.mxu0 %v2581
        %2744 = vmatprep.subr.bf16.mxu0 0
        %2745 = vmatpush1.bf16.msra.mxu0 %v2578
        %2746 = vmatprep.subr.bf16.mxu0 0
        %2747 = vmatpush1.bf16.msra.mxu0 %v2575
        %2748 = vmatprep.subr.bf16.mxu0 0
        %2749 = vmatpush1.bf16.msra.mxu0 %v2572
        %2750 = vmatprep.subr.bf16.mxu0 0
        %2751 = vmatpush1.bf16.msra.mxu0 %v2569
        %2752 = vmatprep.subr.bf16.mxu0 0
        %2753 = vmatpush2.bf16.msra.mxu0 %v2614
        %2754 = vmatprep.subr.bf16.mxu0 0
        %2755 = vmatpush2.bf16.msra.mxu0 %v2611
        %2756 = vmatprep.subr.bf16.mxu0 0
        %2757 = vmatpush2.bf16.msra.mxu0 %v2608
        %2758 = vmatprep.subr.bf16.mxu0 0
        %2759 = vmatpush2.bf16.msra.mxu0 %v2605
        %2760 = vmatprep.subr.bf16.mxu0 0
        %2761 = vmatpush2.bf16.msra.mxu0 %v2602
        %2762 = vmatprep.subr.bf16.mxu0 0
        %2763 = vmatpush2.bf16.msra.mxu0 %v2599
        %2764 = vmatprep.subr.bf16.mxu0 0
        %2765 = vmatpush2.bf16.msra.mxu0 %v2596
        %2766 = vmatprep.subr.bf16.mxu0 0
        %2767 = vmatpush2.bf16.msra.mxu0 %v2593
        %2768 = vmatprep.mubr.bf16.mxu0 %v2335
        %2769 = vmatmul.mubr.bf16.gmra.mxu0 %v2334
        %v2770 = vpop.f32.mrf.mxu0
        %v2771 = vadd.f32 0.0, %v2770
        %v2772 = vpop.f32.mrf.mxu0
        %v2773 = vpop.f32.mrf.mxu0
        %v2774 = vadd.f32 0.0, %v2773
        %v2775 = vpop.f32.mrf.mxu0
        %2776 = vmatprep.mubr.bf16.mxu0 %v2337
        %2777 = vmatmul.mubr.bf16.gmra.mxu0 %v2336
        %v2778 = vpop.f32.mrf.mxu0
        %v2779 = vadd.f32 0.0, %v2778
        %v2780 = vpop.f32.mrf.mxu0
        %v2781 = vpop.f32.mrf.mxu0
        %v2782 = vadd.f32 0.0, %v2781
        %v2783 = vpop.f32.mrf.mxu0
        %2784 = vmatprep.mubr.bf16.mxu0 %v2339
        %2785 = vmatmul.mubr.bf16.gmra.mxu0 %v2338
        %v2786 = vpop.f32.mrf.mxu0
        %v2787 = vadd.f32 0.0, %v2786
        %v2788 = vpop.f32.mrf.mxu0
        %v2789 = vpop.f32.mrf.mxu0
        %v2790 = vadd.f32 0.0, %v2789
        %v2791 = vpop.f32.mrf.mxu0
        %2792 = vmatprep.mubr.bf16.mxu0 %v2341
        %2793 = vmatmul.mubr.bf16.gmra.mxu0 %v2340
        %v2794 = vpop.f32.mrf.mxu0
        %v2795 = vadd.f32 0.0, %v2794
        %v2796 = vpop.f32.mrf.mxu0
        %v2797 = vpop.f32.mrf.mxu0
        %v2798 = vadd.f32 0.0, %v2797
        %v2799 = vpop.f32.mrf.mxu0
        %2800 = vdwg.mxu0
        %v2801 = vrot.slane %v2698, 7
        %v2802 = vrot.slane %v2702, 7
        %v2803 = vrot.slane %v2708, 7
        %v2804 = vrot.slane %v2712, 7
        %v2805 = vrot.slane %v2718, 7
        %v2806 = vrot.slane %v2722, 7
        %v2807 = vrot.slane %v2728, 7
        %v2808 = vrot.slane %v2732, 7
        %v2809 = vsel %vm1673, %v2807, %v2808
        %v2810 = vsel %vm1673, %v2806, %v2807
        %v2811 = vsel %vm1673, %v2805, %v2806
        %v2812 = vsel %vm1673, %v2804, %v2805
        %v2813 = vsel %vm1673, %v2803, %v2804
        %v2814 = vsel %vm1673, %v2802, %v2803
        %v2815 = vsel %vm1673, %v2801, %v2802
        %v2816 = vsel %vm1673, %v2808, %v2801
        %v2817 = vsel %vm1657, %v2816, 0.0
        %v2818 = vsel %vm1658, %v2815, 0.0
        %v2819 = vsel %vm1659, %v2814, 0.0
        %v2820 = vsel %vm1660, %v2813, 0.0
        %v2821 = vsel %vm1661, %v2812, 0.0
        %v2822 = vsel %vm1662, %v2811, 0.0
        %v2823 = vsel %vm1663, %v2810, 0.0
        %v2824 = vsel %vm1664, %v2809, 0.0
        %v2825 = vadd.f32 %v2700, %v2817
        %v2826 = vadd.f32 %v2704, %v2818
        %v2827 = vadd.f32 %v2710, %v2819
        %v2828 = vadd.f32 %v2714, %v2820
        %v2829 = vadd.f32 %v2720, %v2821
        %v2830 = vadd.f32 %v2724, %v2822
        %v2831 = vadd.f32 %v2730, %v2823
        %v2832 = vadd.f32 %v2734, %v2824
        %v2833 = vrot.slane %v2771, 1
        %v2834 = vrot.slane %v2774, 1
        %v2835 = vrot.slane %v2779, 1
        %v2836 = vrot.slane %v2782, 1
        %v2837 = vrot.slane %v2787, 1
        %v2838 = vrot.slane %v2790, 1
        %v2839 = vrot.slane %v2795, 1
        %v2840 = vrot.slane %v2798, 1
        %v2841 = vsel %vm1714, %v2839, %v2840
        %v2842 = vsel %vm1714, %v2838, %v2839
        %v2843 = vsel %vm1714, %v2837, %v2838
        %v2844 = vsel %vm1714, %v2836, %v2837
        %v2845 = vsel %vm1714, %v2835, %v2836
        %v2846 = vsel %vm1714, %v2834, %v2835
        %v2847 = vsel %vm1714, %v2833, %v2834
        %v2848 = vsel %vm1714, %v2840, %v2833
        %v2849 = vsel %vm1698, %v2847, 0.0
        %v2850 = vsel %vm1699, %v2846, 0.0
        %v2851 = vsel %vm1700, %v2845, 0.0
        %v2852 = vsel %vm1701, %v2844, 0.0
        %v2853 = vsel %vm1702, %v2843, 0.0
        %v2854 = vsel %vm1703, %v2842, 0.0
        %v2855 = vsel %vm1704, %v2841, 0.0
        %v2856 = vsel %vm1705, %v2848, 0.0
        %v2857 = vadd.f32 %v2825, %v2849
        %v2858 = vadd.f32 %v2826, %v2850
        %v2859 = vadd.f32 %v2827, %v2851
        %v2860 = vadd.f32 %v2828, %v2852
        %v2861 = vadd.f32 %v2829, %v2853
        %v2862 = vadd.f32 %v2830, %v2854
        %v2863 = vadd.f32 %v2831, %v2855
        %v2864 = vadd.f32 %v2832, %v2856
        %v2865 = vld [vmem:[#allocation3] sm:$0xff]
        %v2866 = vld [vmem:[#allocation3 + $0x8] sm:$0xff]
        %v2867 = vld [vmem:[#allocation3 + $0x10] sm:$0xff]
        %v2868 = vld [vmem:[#allocation3 + $0x18] sm:$0xff]
        %v2869 = vld [vmem:[#allocation3 + $0x20] sm:$0xff]
        %v2870 = vld [vmem:[#allocation3 + $0x28] sm:$0xff]
        %v2871 = vld [vmem:[#allocation3 + $0x30] sm:$0xff]
        %v2872 = vld [vmem:[#allocation3 + $0x38] sm:$0xff]
        %v2873 = vadd.f32 %v2865, %v2857
        %v2874 = vadd.f32 %v2866, %v2858
        %v2875 = vadd.f32 %v2867, %v2859
        %v2876 = vadd.f32 %v2868, %v2860
        %v2877 = vadd.f32 %v2869, %v2861
        %v2878 = vadd.f32 %v2870, %v2862
        %v2879 = vadd.f32 %v2871, %v2863
        %v2880 = vadd.f32 %v2872, %v2864
        %2881 = vst [vmem:[#allocation3] sm:$0xff] %v2873
        %2882 = vst [vmem:[#allocation3 + $0x8] sm:$0xff] %v2874
        %2883 = vst [vmem:[#allocation3 + $0x10] sm:$0xff] %v2875
        %2884 = vst [vmem:[#allocation3 + $0x18] sm:$0xff] %v2876
        %2885 = vst [vmem:[#allocation3 + $0x20] sm:$0xff] %v2877
        %2886 = vst [vmem:[#allocation3 + $0x28] sm:$0xff] %v2878
        %2887 = vst [vmem:[#allocation3 + $0x30] sm:$0xff] %v2879
        %2888 = vst [vmem:[#allocation3 + $0x38] sm:$0xff] %v2880
        %v2889 = vld [vmem:[#allocation3] sm:$0xff]
        %v2890 = vld [vmem:[#allocation3 + $0x8] sm:$0xff]
        %v2891 = vld [vmem:[#allocation3 + $0x10] sm:$0xff]
        %v2892 = vld [vmem:[#allocation3 + $0x18] sm:$0xff]
        %v2893 = vld [vmem:[#allocation3 + $0x20] sm:$0xff]
        %v2894 = vld [vmem:[#allocation3 + $0x28] sm:$0xff]
        %v2895 = vld [vmem:[#allocation3 + $0x30] sm:$0xff]
        %v2896 = vld [vmem:[#allocation3 + $0x38] sm:$0xff]
        %v2897 = vld [vmem:[%s6] sm:$0x1]
        %v2899 = vlaneseq
        %v2900 = vshrl.u32 %v2899, 7
        %v2901 = vsub.s32 0, %v2900
        %v2902 = vrot.slane %v2897, %v2901
        %v2904 = vadd.f32 %v2889, %v2902
        %v2905 = vadd.f32 %v2890, %v2902
        %v2906 = vadd.f32 %v2891, %v2902
        %v2907 = vadd.f32 %v2892, %v2902
        %v2908 = vadd.f32 %v2893, %v2902
        %v2909 = vadd.f32 %v2894, %v2902
        %v2910 = vadd.f32 %v2895, %v2902
        %v2911 = vadd.f32 %v2896, %v2902
        %v2912 = vmax.f32 %v2904, 0.0
        %v2913 = vmax.f32 %v2905, 0.0
        %v2914 = vmax.f32 %v2906, 0.0
        %v2915 = vmax.f32 %v2907, 0.0
        %v2916 = vmax.f32 %v2908, 0.0
        %v2917 = vmax.f32 %v2909, 0.0
        %v2918 = vmax.f32 %v2910, 0.0
        %v2919 = vmax.f32 %v2911, 0.0
        %v2920 = vpack.c.bf16 %v2913, %v2912
        %v2921 = vpack.c.bf16 %v2915, %v2914
        %v2922 = vpack.c.bf16 %v2917, %v2916
        %v2923 = vpack.c.bf16 %v2919, %v2918
        %v2924 = vld [vmem:[#allocation13] sm:$0xf]
        %v2925 = vld [vmem:[#allocation13 + $0x4] sm:$0xf]
        %v2926 = vld [vmem:[#allocation13 + $0x8] sm:$0xf]
        %v2927 = vld [vmem:[#allocation13 + $0xc] sm:$0xf]
        %v2928 = vld [vmem:[#allocation13 + $0x10] sm:$0xf]
        %v2929 = vld [vmem:[#allocation13 + $0x14] sm:$0xf]
        %v2930 = vld [vmem:[#allocation13 + $0x18] sm:$0xf]
        %v2931 = vld [vmem:[#allocation13 + $0x1c] sm:$0xf]
        %v2932 = vld [vmem:[#allocation13 + $0x20] sm:$0xf]
        %v2933 = vld [vmem:[#allocation13 + $0x24] sm:$0xf]
        %v2934 = vld [vmem:[#allocation13 + $0x28] sm:$0xf]
        %v2935 = vld [vmem:[#allocation13 + $0x2c] sm:$0xf]
        %v2936 = vld [vmem:[#allocation13 + $0x30] sm:$0xf]
        %v2937 = vld [vmem:[#allocation13 + $0x34] sm:$0xf]
        %v2938 = vld [vmem:[#allocation13 + $0x38] sm:$0xf]
        %v2939 = vld [vmem:[#allocation13 + $0x3c] sm:$0xf]
        %v2940 = vld [vmem:[%s8] sm:$0x1]
        %v2942 = vlaneseq
        %v2943 = vshrl.u32 %v2942, 7
        %v2944 = vsub.s32 0, %v2943
        %v2945 = vrot.slane %v2940, %v2944
        %v2963 = vunpack.c.l.b16 %v2924
        %v2964 = vunpack.c.l.b16 %v2925
        %v2965 = vunpack.c.l.b16 %v2926
        %v2966 = vunpack.c.l.b16 %v2927
        %v2967 = vunpack.c.l.b16 %v2928
        %v2968 = vunpack.c.l.b16 %v2929
        %v2969 = vunpack.c.l.b16 %v2930
        %v2970 = vunpack.c.l.b16 %v2931
        %v2971 = vunpack.c.l.b16 %v2932
        %v2972 = vunpack.c.l.b16 %v2933
        %v2973 = vunpack.c.l.b16 %v2934
        %v2974 = vunpack.c.l.b16 %v2935
        %v2975 = vunpack.c.l.b16 %v2936
        %v2976 = vunpack.c.l.b16 %v2937
        %v2977 = vunpack.c.l.b16 %v2938
        %v2978 = vunpack.c.l.b16 %v2939
        %v2979 = vpack.c.b16 %v2964, %v2963
        %v2980 = vpack.c.b16 %v2966, %v2965
        %v2981 = vpack.c.b16 %v2968, %v2967
        %v2982 = vpack.c.b16 %v2970, %v2969
        %v2983 = vpack.c.b16 %v2972, %v2971
        %v2984 = vpack.c.b16 %v2974, %v2973
        %v2985 = vpack.c.b16 %v2976, %v2975
        %v2986 = vpack.c.b16 %v2978, %v2977
        %2995 = vmatprep.subr.bf16.mxu0 0
        %2996 = vmatpush1.bf16.msra.mxu0 %v2986
        %2997 = vmatprep.subr.bf16.mxu0 0
        %2998 = vmatpush1.bf16.msra.mxu0 %v2985
        %2999 = vmatprep.subr.bf16.mxu0 0
        %3000 = vmatpush1.bf16.msra.mxu0 %v2984
        %3001 = vmatprep.subr.bf16.mxu0 0
        %3002 = vmatpush1.bf16.msra.mxu0 %v2983
        %3003 = vmatprep.subr.bf16.mxu0 0
        %3004 = vmatpush1.bf16.msra.mxu0 %v2982
        %3005 = vmatprep.subr.bf16.mxu0 0
        %3006 = vmatpush1.bf16.msra.mxu0 %v2981
        %3007 = vmatprep.subr.bf16.mxu0 0
        %3008 = vmatpush1.bf16.msra.mxu0 %v2980
        %3009 = vmatprep.subr.bf16.mxu0 0
        %3010 = vmatpush1.bf16.msra.mxu0 %v2979
        %3011 = vmatprep.subr.bf16.mxu0 0
        %3012 = vmatpush2.bf16.msra.mxu0 0
        %3013 = vmatprep.subr.bf16.mxu0 0
        %3014 = vmatpush2.bf16.msra.mxu0 0
        %3015 = vmatprep.subr.bf16.mxu0 0
        %3016 = vmatpush2.bf16.msra.mxu0 0
        %3017 = vmatprep.subr.bf16.mxu0 0
        %3018 = vmatpush2.bf16.msra.mxu0 0
        %3019 = vmatprep.subr.bf16.mxu0 0
        %3020 = vmatpush2.bf16.msra.mxu0 0
        %3021 = vmatprep.subr.bf16.mxu0 0
        %3022 = vmatpush2.bf16.msra.mxu0 0
        %3023 = vmatprep.subr.bf16.mxu0 0
        %3024 = vmatpush2.bf16.msra.mxu0 0
        %3025 = vmatprep.subr.bf16.mxu0 0
        %3026 = vmatpush2.bf16.msra.mxu0 0
        %3027 = vmatprep.mubr.bf16.mxu0 0
        %3028 = vmatmul.mubr.bf16.gmra.mxu0 %v2920
        %v3029 = vpop.f32.mrf.mxu0
        %v3030 = vadd.f32 %v2945, %v3029
        %v3031 = vpop.f32.mrf.mxu0
        %v3032 = vpop.f32.mrf.mxu0
        %v3033 = vadd.f32 %v2945, %v3032
        %v3034 = vpop.f32.mrf.mxu0
        %3035 = vmatprep.mubr.bf16.mxu0 0
        %3036 = vmatmul.mubr.bf16.gmra.mxu0 %v2921
        %v3037 = vpop.f32.mrf.mxu0
        %v3038 = vadd.f32 %v2945, %v3037
        %v3039 = vpop.f32.mrf.mxu0
        %v3040 = vpop.f32.mrf.mxu0
        %v3041 = vadd.f32 %v2945, %v3040
        %v3042 = vpop.f32.mrf.mxu0
        %3043 = vmatprep.mubr.bf16.mxu0 0
        %3044 = vmatmul.mubr.bf16.gmra.mxu0 %v2922
        %v3045 = vpop.f32.mrf.mxu0
        %v3046 = vadd.f32 %v2945, %v3045
        %v3047 = vpop.f32.mrf.mxu0
        %v3048 = vpop.f32.mrf.mxu0
        %v3049 = vadd.f32 %v2945, %v3048
        %v3050 = vpop.f32.mrf.mxu0
        %3051 = vmatprep.mubr.bf16.mxu0 0
        %3052 = vmatmul.mubr.bf16.gmra.mxu0 %v2923
        %v3053 = vpop.f32.mrf.mxu0
        %v3054 = vadd.f32 %v2945, %v3053
        %v3055 = vpop.f32.mrf.mxu0
        %v3056 = vpop.f32.mrf.mxu0
        %v3057 = vadd.f32 %v2945, %v3056
        %v3058 = vpop.f32.mrf.mxu0
        %3059 = vdwg.mxu0
        %v3060 = vmul.f32 %v3030, %v3030
        %v3061 = vmul.f32 %v3033, %v3033
        %v3062 = vmul.f32 %v3038, %v3038
        %v3063 = vmul.f32 %v3041, %v3041
        %v3064 = vmul.f32 %v3046, %v3046
        %v3065 = vmul.f32 %v3049, %v3049
        %v3066 = vmul.f32 %v3054, %v3054
        %v3067 = vmul.f32 %v3057, %v3057
        %3068 = vadd.xlane.f32.xlu0 %v3060
        %v3069 = vpop.xlane.xlu0 %3068
        %3070 = vadd.xlane.f32.xlu0 %v3061
        %v3071 = vpop.xlane.xlu0 %3070
        %3072 = vadd.xlane.f32.xlu0 %v3062
        %v3073 = vpop.xlane.xlu0 %3072
        %3074 = vadd.xlane.f32.xlu0 %v3063
        %v3075 = vpop.xlane.xlu0 %3074
        %3076 = vadd.xlane.f32.xlu0 %v3064
        %v3077 = vpop.xlane.xlu0 %3076
        %3078 = vadd.xlane.f32.xlu0 %v3065
        %v3079 = vpop.xlane.xlu0 %3078
        %3080 = vadd.xlane.f32.xlu0 %v3066
        %v3081 = vpop.xlane.xlu0 %3080
        %3082 = vadd.xlane.f32.xlu0 %v3067
        %v3083 = vpop.xlane.xlu0 %3082
        %v3084 = vmax.f32 %v3069, 1e-24
        %v3085 = vmax.f32 %v3071, 1e-24
        %v3086 = vmax.f32 %v3073, 1e-24
        %v3087 = vmax.f32 %v3075, 1e-24
        %v3088 = vmax.f32 %v3077, 1e-24
        %v3089 = vmax.f32 %v3079, 1e-24
        %v3090 = vmax.f32 %v3081, 1e-24
        %v3091 = vmax.f32 %v3083, 1e-24
        %v3092 = vrsqrt.pop %v3084
        %v3093 = vrsqrt.pop %v3085
        %v3094 = vrsqrt.pop %v3086
        %v3095 = vrsqrt.pop %v3087
        %v3096 = vrsqrt.pop %v3088
        %v3097 = vrsqrt.pop %v3089
        %v3098 = vrsqrt.pop %v3090
        %v3099 = vrsqrt.pop %v3091
        %v3100 = vmul.f32 %v3030, %v3092
        %v3101 = vmul.f32 %v3033, %v3093
        %v3102 = vmul.f32 %v3038, %v3094
        %v3103 = vmul.f32 %v3041, %v3095
        %v3104 = vmul.f32 %v3046, %v3096
        %v3105 = vmul.f32 %v3049, %v3097
        %v3106 = vmul.f32 %v3054, %v3098
        %v3107 = vmul.f32 %v3057, %v3099
        %3108 = vst [vmem:[%s515] sm:$0xff] %v3100
        %3109 = vst [vmem:[%s515 + $0x8] sm:$0xff] %v3101
        %3110 = vst [vmem:[%s515 + $0x10] sm:$0xff] %v3102
        %3111 = vst [vmem:[%s515 + $0x18] sm:$0xff] %v3103
        %3112 = vst [vmem:[%s515 + $0x20] sm:$0xff] %v3104
        %3113 = vst [vmem:[%s515 + $0x28] sm:$0xff] %v3105
        %3114 = vst [vmem:[%s515 + $0x30] sm:$0xff] %v3106
        %3115 = vst [vmem:[%s515 + $0x38] sm:$0xff] %v3107
        %s3116 = sand.u32 %s279, 1
        %s3117 = scalar_lea.sflag [#allocation6], %s3116
        %s3118 = sand.u32 %s279, 1
        %s3119 = smul.addr %s3118, 64
        %s3120 = scalar_lea.vmem [#allocation15], %s3119
        // Predicated region
        $region85: #{tpu_custom_call.1} parent=55 // pred_check
          %p3121 = pneg %p289
        $region86: #{tpu_custom_call.1} parent=55 // pred_check_branch
          %3123 = sbr.rel (%p3121) target = $region88
        $region87: #{tpu_custom_call.1} parent=55 // pred_region
          %s3124 = smul.u32 8, %s36
          %s3126 = ssub.s32 1024, 1024
          %3127 = vsyncadd %s3117, %s3126
          %s3128 = smul.addr %s35, 8
          %s3129 = sadd.s32 %s3124, %s3128
          %s3130 = smul.addr %s3129, 128
          %s3131 = scalar_lea.hbm %s9, %s3130
          %s3132 = sshll.u32 %s3120, 4
          %s3133 = int_to_ptr.vmem [resolvable:$true] %s3132
          %3138 = dma.vmem_to_hbm [thread:$0]  %s3133, 1024, %s3131, %s3117, 128, 128, 8
        $region88: #{tpu_custom_call.1} parent=55 // pred_fallthru
          _
      $region56: #{tpu_custom_call.1} parent=5 // pred_fallthru
        _
      %p3139 = scmp.le.s32.totalorder 2, %s26
      // Predicated region
      $region89: #{tpu_custom_call.1} parent=5 // pred_check
        %p3140 = pneg %p3139
      $region90: #{tpu_custom_call.1} parent=5 // pred_check_branch
        %3142 = sbr.rel (%p3140) target = $region92
      $region91: #{tpu_custom_call.1} parent=5 // pred_region
        %s3143 = ssub.s32 %s26, 2
        // Predicated region
        $region93: #{tpu_custom_call.1} parent=91 // pred_check
          %p3144 = pneg %p295
        $region94: #{tpu_custom_call.1} parent=91 // pred_check_branch
          %3146 = sbr.rel (%p3144) target = $region96
        $region95: #{tpu_custom_call.1} parent=91 // pred_region
          %s3147 = sand.u32 %s280, 1
          %s3148 = scalar_lea.sflag [#allocation6], %s3147
          %s3149 = sand.u32 %s280, 1
          %s3150 = smul.addr %s3149, 64
          %s3151 = scalar_lea.vmem [#allocation15], %s3150
          %3152 = dma.done %s3148, 1024
        $region96: #{tpu_custom_call.1} parent=91 // pred_fallthru
          _
      $region92: #{tpu_custom_call.1} parent=5 // pred_fallthru
        _
    $region6: #{tpu_custom_call.1} parent=1 // loop_footer
      %s30 = sadd.s32 1, %s26
    $region7: #{tpu_custom_call.1} parent=1 // loop_footer_branch
      %25 = sbr.rel target = $region3
    $region8: #{tpu_custom_call.1} parent=1 // loop_exit
      _
    %3153 = vsyncpa [#allocation5], 1
    %s3154 = scalar_lea.sflag [#allocation5], 1
    %3155 = vsyncpa %s3154, 1
    %3156 = vsyncpa [#allocation8], 1
    %s3157 = scalar_lea.sflag [#allocation8], 1
    %3158 = vsyncpa %s3157, 1
    %3159 = vsyncpa [#allocation11], 1
    %3160 = vsyncpa [#allocation14], 1
    %3161 = vsyncpa [#allocation6], 1
    %s3162 = scalar_lea.sflag [#allocation6], 1
    %3163 = vsyncpa %s3162, 1

</llo_original>
